<compile_context>
chip_gen: v7x
topology: tpu7x:2x2x1
jax: 0.10.0
libtpu: 0.0.40
codegen_flags: <defaults>
</compile_context>

<pallas_src>
import math

import jax
import jax.numpy as jnp
from jax.experimental import pallas as pl
from jax.experimental.pallas import tpu as pltpu

# ---------------- tiny config (stand-in for GPT2Config + user config) --------
VOCAB = 64          # vocab_size
N_POS = 16          # n_positions
N_EMBD = 32         # n_embd (gpt_config.output_size)
N_HEAD = 2          # n_head
N_LAYER = 2         # n_layer
HEAD_DIM = N_EMBD // N_HEAD
ATT_UNIT = 16       # config['attention-unit']
ATT_HOPS = 4        # config['attention-hops']
NFC = 32            # config['nfc']
CLASSES = 3         # config['classes']
B = 2               # batch
S = 8               # sequence length
LN_EPS = 1e-5
SLAB_W = 128        # parameter-slab lane width (>= widest parameter row)

assert S & (S - 1) == 0, "S must be a power of two for the in-kernel batch-block mask"
LOG2_S = S.bit_length() - 1
assert 4 * N_EMBD <= SLAB_W and ATT_HOPS * N_EMBD <= SLAB_W


# ---------------- parameter-slab layout (static, baked into the kernel) ------
def _build_layout():
    layout = {}
    row = 0

    def add(name, nrows, ncols):
        nonlocal row
        layout[name] = (row, nrows, ncols)
        row += ((nrows + 7) // 8) * 8       # keep every block sublane-aligned

    for l in range(N_LAYER):
        add(f"ln1_g{l}", 1, N_EMBD); add(f"ln1_b{l}", 1, N_EMBD)
        add(f"attn_w{l}", N_EMBD, 3 * N_EMBD); add(f"attn_b{l}", 1, 3 * N_EMBD)
        add(f"proj_w{l}", N_EMBD, N_EMBD); add(f"proj_b{l}", 1, N_EMBD)
        add(f"ln2_g{l}", 1, N_EMBD); add(f"ln2_b{l}", 1, N_EMBD)
        add(f"mfc_w{l}", N_EMBD, 4 * N_EMBD); add(f"mfc_b{l}", 1, 4 * N_EMBD)
        add(f"mproj_w{l}", 4 * N_EMBD, N_EMBD); add(f"mproj_b{l}", 1, N_EMBD)
    add("lnf_g", 1, N_EMBD); add("lnf_b", 1, N_EMBD)
    add("ws1", N_EMBD, ATT_UNIT); add("ws2", ATT_UNIT, ATT_HOPS)
    add("fc_w", ATT_HOPS * N_EMBD, NFC); add("fc_b", 1, NFC)
    add("pred_w", NFC, CLASSES); add("pred_b", 1, CLASSES)
    return layout, row


_LAYOUT, _SLAB_ROWS = _build_layout()


def _p(slab_ref, name):
    """Static slice of the packed parameter slab (zero-cost ref view + load)."""
    r0, nr, nc = _LAYOUT[name]
    return slab_ref[r0:r0 + nr, 0:nc]


# ---------------- in-kernel helpers (operate on values, not refs) ------------
def _ln(x, g, b):
    mean = jnp.mean(x, axis=-1, keepdims=True)
    xc = x - mean
    var = jnp.mean(xc * xc, axis=-1, keepdims=True)
    return xc * jax.lax.rsqrt(var + LN_EPS) * g + b


def _gelu_new(y):
    # GPT-2 'gelu_new' tanh approximation
    return 0.5 * y * (1.0 + jnp.tanh(0.7978845608028654 * (y + 0.044715 * y * y * y)))


# ---------------- the single fused kernel -------------------------------------
def _fused_forward_kernel(x0_ref, pad_ref, slab_ref, preds_out_ref, att_out_ref):
    f32 = jnp.float32
    h = x0_ref[...]                                   # (B*S, E) token+pos embeddings
    pad = pad_ref[...]                                # (B, S): 0 or -10000
    scale = 1.0 / math.sqrt(HEAD_DIM)

    # causal + same-batch block-diagonal bias, built in-kernel (2 iotas + cmps)
    ri = jax.lax.broadcasted_iota(jnp.int32, (B * S, B * S), 0)
    ci = jax.lax.broadcasted_iota(jnp.int32, (B * S, B * S), 1)
    same_batch = (ri >> LOG2_S) == (ci >> LOG2_S)
    attn_bias = jnp.where((ci <= ri) & same_batch, 0.0, -1e9).astype(f32)

    # ---------------- GPT-2 blocks (static unroll, everything VMEM-resident) --
    for l in range(N_LAYER):
        # attention sub-block
        x = _ln(h, _p(slab_ref, f"ln1_g{l}"), _p(slab_ref, f"ln1_b{l}"))
        qkv = (jnp.dot(x, _p(slab_ref, f"attn_w{l}"), preferred_element_type=f32)
               + _p(slab_ref, f"attn_b{l}"))                       # (B*S, 3E)
        heads = []
        for hd in range(N_HEAD):
            c0 = hd * HEAD_DIM
            q = qkv[:, c0:c0 + HEAD_DIM]
            k = qkv[:, N_EMBD + c0:N_EMBD + c0 + HEAD_DIM]
            v = qkv[:, 2 * N_EMBD + c0:2 * N_EMBD + c0 + HEAD_DIM]
            sc = jax.lax.dot_general(q, k, (((1,), (1,)), ((), ())),
                                     preferred_element_type=f32) * scale
            sc = sc + attn_bias
            sc = sc - jnp.max(sc, axis=-1, keepdims=True)
            p = jnp.exp(sc)
            p = p * pl.reciprocal(jnp.sum(p, axis=-1, keepdims=True), approx=True)
            heads.append(jnp.dot(p, v, preferred_element_type=f32))  # (B*S, D)
        o_cat = jnp.concatenate(heads, axis=-1)                      # lane concat -> (B*S, E)
        h = (h
             + jnp.dot(o_cat, _p(slab_ref, f"proj_w{l}"), preferred_element_type=f32)
             + _p(slab_ref, f"proj_b{l}"))                           # fused residual

        # MLP sub-block
        x2 = _ln(h, _p(slab_ref, f"ln2_g{l}"), _p(slab_ref, f"ln2_b{l}"))
        m = _gelu_new(jnp.dot(x2, _p(slab_ref, f"mfc_w{l}"), preferred_element_type=f32)
                      + _p(slab_ref, f"mfc_b{l}"))
        h = (h
             + jnp.dot(m, _p(slab_ref, f"mproj_w{l}"), preferred_element_type=f32)
             + _p(slab_ref, f"mproj_b{l}"))

    hf = _ln(h, _p(slab_ref, "lnf_g"), _p(slab_ref, "lnf_b"))        # (B*S, E)

    # ---------------- self-attentive pooling + classifier head ---------------
    hbar = jnp.tanh(jnp.dot(hf, _p(slab_ref, "ws1"),
                            preferred_element_type=f32))             # (B*S, U)
    # scores for BOTH batches in one matmul: (HOPS, B*S)
    scores = jax.lax.dot_general(_p(slab_ref, "ws2"), hbar,
                                 (((0,), (1,)), ((), ())),
                                 preferred_element_type=f32)

    att_rows = []
    flat_rows = []
    for b in range(B):
        sc = scores[:, b * S:(b + 1) * S] + pad[b:b + 1, :]          # (HOPS, S)
        sc = sc - jnp.max(sc, axis=-1, keepdims=True)
        p = jnp.exp(sc)
        att_b = p / jnp.sum(p, axis=-1, keepdims=True)               # exact (user-visible)
        att_rows.append(att_b)
        pooled = jnp.dot(att_b, hf[b * S:(b + 1) * S, :],
                         preferred_element_type=f32)                 # (HOPS, E)
        # row-major flatten of (HOPS, E) as a lane concat (no reshape op)
        flat_rows.append(jnp.concatenate(
            [pooled[hp:hp + 1, :] for hp in range(ATT_HOPS)], axis=-1))  # (1, HOPS*E)

    flat = jnp.concatenate(flat_rows, axis=0)                        # (B, HOPS*E)=(B,128)
    fc_out = jnp.tanh(jnp.dot(flat, _p(slab_ref, "fc_w"), preferred_element_type=f32)
                      + _p(slab_ref, "fc_b"))                        # (B, NFC)
    preds = (jnp.dot(fc_out, _p(slab_ref, "pred_w"), preferred_element_type=f32)
             + _p(slab_ref, "pred_b"))                               # (B, CLASSES)

    preds_out_ref[...] = preds
    att_out_ref[...] = jnp.concatenate(att_rows, axis=0)             # (B*HOPS, S)


# ---------------- wrapper ------------------------------------------------------
def self_attentive_gpt2_forward(input_ids, wte, wpe, slab):
    pos = jnp.arange(S)
    x0 = (wte[input_ids] + wpe[pos][None]).reshape(B * S, N_EMBD).astype(jnp.float32)
    pad = (input_ids == 0).astype(jnp.float32) * (-10000.0)          # (B, S)

    vmem = pl.BlockSpec(memory_space=pltpu.MemorySpace.VMEM)
    preds, att_flat = pl.pallas_call(
        _fused_forward_kernel,
        out_shape=(
            jax.ShapeDtypeStruct((B, CLASSES), jnp.float32),
            jax.ShapeDtypeStruct((B * ATT_HOPS, S), jnp.float32),
        ),
        in_specs=[vmem, vmem, vmem],
        out_specs=(vmem, vmem),
    )(x0, pad, slab)
    return preds, att_flat.reshape(B, ATT_HOPS, S)


# ---------------- deterministic parameter init (stacked over layers) ----------
def init_params(seed=0):
    key = jax.random.PRNGKey(seed)
    keys = iter(jax.random.split(key, 32))

    def nrm(shape, std=0.02):
        return (std * jax.random.normal(next(keys), shape)).astype(jnp.float32)

    def zeros(shape):
        return jnp.zeros(shape, jnp.float32)

    def ones(shape):
        return jnp.ones(shape, jnp.float32)

    L = N_LAYER
    return {
        "wte": nrm((VOCAB, N_EMBD)),
        "wpe": nrm((N_POS, N_EMBD), std=0.01),
        "ln1_g": ones((L, 1, N_EMBD)), "ln1_b": zeros((L, 1, N_EMBD)),
        "attn_w": nrm((L, N_EMBD, 3 * N_EMBD)), "attn_b": zeros((L, 1, 3 * N_EMBD)),
        "proj_w": nrm((L, N_EMBD, N_EMBD)), "proj_b": zeros((L, 1, N_EMBD)),
        "ln2_g": ones((L, 1, N_EMBD)), "ln2_b": zeros((L, 1, N_EMBD)),
        "mlp_fc_w": nrm((L, N_EMBD, 4 * N_EMBD)), "mlp_fc_b": zeros((L, 1, 4 * N_EMBD)),
        "mproj_w": nrm((L, 4 * N_EMBD, N_EMBD)), "mproj_b": zeros((L, 1, N_EMBD)),
        "lnf_g": ones((1, N_EMBD)), "lnf_b": zeros((1, N_EMBD)),
        "ws1": nrm((N_EMBD, ATT_UNIT)),
        "ws2": nrm((ATT_UNIT, ATT_HOPS)),
        "fc_w": nrm((N_EMBD * ATT_HOPS, NFC)), "fc_b": zeros((1, NFC)),
        "pred_w": nrm((NFC, CLASSES)), "pred_b": zeros((1, CLASSES)),
    }


def pack_params(P):
    """Pack every non-embedding parameter into one (rows, 128) f32 slab."""
    slab = jnp.zeros((_SLAB_ROWS, SLAB_W), jnp.float32)

    def put(s, name, arr):
        r0, nr, nc = _LAYOUT[name]
        return s.at[r0:r0 + nr, 0:nc].set(jnp.asarray(arr, jnp.float32).reshape(nr, nc))

    for l in range(N_LAYER):
        slab = put(slab, f"ln1_g{l}", P["ln1_g"][l]); slab = put(slab, f"ln1_b{l}", P["ln1_b"][l])
        slab = put(slab, f"attn_w{l}", P["attn_w"][l]); slab = put(slab, f"attn_b{l}", P["attn_b"][l])
        slab = put(slab, f"proj_w{l}", P["proj_w"][l]); slab = put(slab, f"proj_b{l}", P["proj_b"][l])
        slab = put(slab, f"ln2_g{l}", P["ln2_g"][l]); slab = put(slab, f"ln2_b{l}", P["ln2_b"][l])
        slab = put(slab, f"mfc_w{l}", P["mlp_fc_w"][l]); slab = put(slab, f"mfc_b{l}", P["mlp_fc_b"][l])
        slab = put(slab, f"mproj_w{l}", P["mproj_w"][l]); slab = put(slab, f"mproj_b{l}", P["mproj_b"][l])
    slab = put(slab, "lnf_g", P["lnf_g"]); slab = put(slab, "lnf_b", P["lnf_b"])
    slab = put(slab, "ws1", P["ws1"]); slab = put(slab, "ws2", P["ws2"])
    slab = put(slab, "fc_w", P["fc_w"]); slab = put(slab, "fc_b", P["fc_b"])
    slab = put(slab, "pred_w", P["pred_w"]); slab = put(slab, "pred_b", P["pred_b"])
    return slab


# ---------------- main ---------------------------------------------------------
if __name__ == "__main__":
    params = init_params(seed=0)
    slab = pack_params(params)
    ids = jax.random.randint(jax.random.PRNGKey(0), (B, S), 0, VOCAB, dtype=jnp.int32)

    fwd = jax.jit(self_attentive_gpt2_forward)
    preds, att = fwd(ids, params["wte"], params["wpe"], slab)
    jax.block_until_ready((preds, att))

    assert preds.shape == (B, CLASSES)
    assert att.shape == (B, ATT_HOPS, S)
    # attention rows are a softmax over the sequence -> must sum to 1
    assert bool(jnp.allclose(jnp.sum(att, axis=-1), 1.0, atol=1e-5))
    print("KERNEL_OK")
</pallas_src>

<mosaic_0001>
module attributes {stable_mosaic.version = 11 : i64} {
  func.func @_fused_forward_kernel(%arg0: memref<16x32xf32, #tpu.memory_space<vmem>>, %arg1: memref<2x8xf32, #tpu.memory_space<vmem>>, %arg2: memref<816x128xf32, #tpu.memory_space<vmem>>, %arg3: memref<2x3xf32, #tpu.memory_space<vmem>>, %arg4: memref<8x8xf32, #tpu.memory_space<vmem>>) attributes {dimension_semantics = [], scalar_prefetch = 0 : i64, scratch_operands = 0 : i64, tpu.core_type = #tpu.core_type<tc>} {
    %c0 = arith.constant 0 : index
    %c0_0 = arith.constant 0 : index
    %0 = vector.load %arg0[%c0, %c0_0] : memref<16x32xf32, #tpu.memory_space<vmem>>, vector<16x32xf32>
    %c0_1 = arith.constant 0 : index
    %c0_2 = arith.constant 0 : index
    %1 = vector.load %arg1[%c0_1, %c0_2] : memref<2x8xf32, #tpu.memory_space<vmem>>, vector<2x8xf32>
    %2 = tpu.iota {dimensions = array<i32: 0>} : vector<16x16xi32>
    %3 = tpu.iota {dimensions = array<i32: 1>} : vector<16x16xi32>
    %c3_i32 = arith.constant 3 : i32
    %4 = vector.broadcast %c3_i32 : i32 to vector<16x16xi32>
    %5 = arith.shrsi %2, %4 : vector<16x16xi32>
    %c3_i32_3 = arith.constant 3 : i32
    %6 = vector.broadcast %c3_i32_3 : i32 to vector<16x16xi32>
    %7 = arith.shrsi %3, %6 : vector<16x16xi32>
    %8 = arith.cmpi eq, %5, %7 : vector<16x16xi32>
    %9 = arith.cmpi sle, %3, %2 : vector<16x16xi32>
    %10 = arith.andi %9, %8 : vector<16x16xi1>
    %cst = arith.constant 0.000000e+00 : f32
    %cst_4 = arith.constant -1.000000e+09 : f32
    %11 = vector.broadcast %cst : f32 to vector<16x16xf32>
    %12 = vector.broadcast %cst_4 : f32 to vector<16x16xf32>
    %13 = arith.select %10, %11, %12 : vector<16x16xi1>, vector<16x16xf32>
    %c0_5 = arith.constant 0 : index
    %c0_6 = arith.constant 0 : index
    %14 = vector.load %arg2[%c0_5, %c0_6] : memref<816x128xf32, #tpu.memory_space<vmem>>, vector<1x32xf32>
    %c8 = arith.constant 8 : index
    %c0_7 = arith.constant 0 : index
    %15 = vector.load %arg2[%c8, %c0_7] : memref<816x128xf32, #tpu.memory_space<vmem>>, vector<1x32xf32>
    %cst_8 = arith.constant dense<0.000000e+00> : vector<16xf32>
    %16 = vector.multi_reduction <add>, %0, %cst_8 [1] : vector<16x32xf32> to vector<16xf32>
    %17 = vector.shape_cast %16 : vector<16xf32> to vector<16x1xf32>
    %cst_9 = arith.constant 3.200000e+01 : f32
    %18 = vector.broadcast %cst_9 : f32 to vector<16x1xf32>
    %19 = arith.divf %17, %18 : vector<16x1xf32>
    %20 = vector.broadcast %19 : vector<16x1xf32> to vector<16x32xf32>
    %21 = arith.subf %0, %20 : vector<16x32xf32>
    %22 = arith.mulf %21, %21 : vector<16x32xf32>
    %cst_10 = arith.constant dense<0.000000e+00> : vector<16xf32>
    %23 = vector.multi_reduction <add>, %22, %cst_10 [1] : vector<16x32xf32> to vector<16xf32>
    %24 = vector.shape_cast %23 : vector<16xf32> to vector<16x1xf32>
    %cst_11 = arith.constant 3.200000e+01 : f32
    %25 = vector.broadcast %cst_11 : f32 to vector<16x1xf32>
    %26 = arith.divf %24, %25 : vector<16x1xf32>
    %cst_12 = arith.constant 9.99999974E-6 : f32
    %27 = vector.broadcast %cst_12 : f32 to vector<16x1xf32>
    %28 = arith.addf %26, %27 : vector<16x1xf32>
    %29 = math.rsqrt %28 : vector<16x1xf32>
    %30 = vector.broadcast %29 : vector<16x1xf32> to vector<16x32xf32>
    %31 = arith.mulf %21, %30 : vector<16x32xf32>
    %32 = vector.broadcast %14 : vector<1x32xf32> to vector<16x32xf32>
    %33 = arith.mulf %31, %32 : vector<16x32xf32>
    %34 = vector.broadcast %15 : vector<1x32xf32> to vector<16x32xf32>
    %35 = arith.addf %33, %34 : vector<16x32xf32>
    %c16 = arith.constant 16 : index
    %c0_13 = arith.constant 0 : index
    %36 = vector.load %arg2[%c16, %c0_13] : memref<816x128xf32, #tpu.memory_space<vmem>>, vector<32x96xf32>
    %cst_14 = arith.constant dense<0.000000e+00> : vector<16x96xf32>
    %37 = tpu.matmul %35, %36, %cst_14 {dimension_numbers = #tpu.dot_dimension_numbers<[1], [0], [0], [1], [0, 0, 1, 1], [], []>} : vector<16x32xf32>, vector<32x96xf32>, vector<16x96xf32> -> vector<16x96xf32>
    %c48 = arith.constant 48 : index
    %c0_15 = arith.constant 0 : index
    %38 = vector.load %arg2[%c48, %c0_15] : memref<816x128xf32, #tpu.memory_space<vmem>>, vector<1x96xf32>
    %39 = vector.broadcast %38 : vector<1x96xf32> to vector<16x96xf32>
    %40 = arith.addf %37, %39 : vector<16x96xf32>
    %41 = vector.extract_strided_slice %40 {offsets = [0, 0], sizes = [16, 16], strides = [1, 1]} : vector<16x96xf32> to vector<16x16xf32>
    %42 = vector.extract_strided_slice %40 {offsets = [0, 32], sizes = [16, 16], strides = [1, 1]} : vector<16x96xf32> to vector<16x16xf32>
    %43 = vector.extract_strided_slice %40 {offsets = [0, 64], sizes = [16, 16], strides = [1, 1]} : vector<16x96xf32> to vector<16x16xf32>
    %cst_16 = arith.constant dense<0.000000e+00> : vector<16x16xf32>
    %44 = tpu.matmul %41, %42, %cst_16 {dimension_numbers = #tpu.dot_dimension_numbers<[1], [1], [0], [0], [0, 0, 1, 0], [], []>} : vector<16x16xf32>, vector<16x16xf32>, vector<16x16xf32> -> vector<16x16xf32>
    %cst_17 = arith.constant 2.500000e-01 : f32
    %45 = vector.broadcast %cst_17 : f32 to vector<16x16xf32>
    %46 = arith.mulf %44, %45 : vector<16x16xf32>
    %47 = arith.addf %46, %13 : vector<16x16xf32>
    %cst_18 = arith.constant dense<0xFF800000> : vector<16xf32>
    %48 = vector.multi_reduction <maximumf>, %47, %cst_18 [1] : vector<16x16xf32> to vector<16xf32>
    %49 = vector.shape_cast %48 : vector<16xf32> to vector<16x1xf32>
    %50 = vector.broadcast %49 : vector<16x1xf32> to vector<16x16xf32>
    %51 = arith.subf %47, %50 : vector<16x16xf32>
    %52 = math.exp %51 : vector<16x16xf32>
    %cst_19 = arith.constant dense<0.000000e+00> : vector<16xf32>
    %53 = vector.multi_reduction <add>, %52, %cst_19 [1] : vector<16x16xf32> to vector<16xf32>
    %54 = vector.shape_cast %53 : vector<16xf32> to vector<16x1xf32>
    %55 = tpu.reciprocal %54 {approx = true} : vector<16x1xf32> -> vector<16x1xf32>
    %56 = vector.broadcast %55 : vector<16x1xf32> to vector<16x16xf32>
    %57 = arith.mulf %52, %56 : vector<16x16xf32>
    %cst_20 = arith.constant dense<0.000000e+00> : vector<16x16xf32>
    %58 = tpu.matmul %57, %43, %cst_20 {dimension_numbers = #tpu.dot_dimension_numbers<[1], [0], [0], [1], [0, 0, 1, 1], [], []>} : vector<16x16xf32>, vector<16x16xf32>, vector<16x16xf32> -> vector<16x16xf32>
    %59 = vector.extract_strided_slice %40 {offsets = [0, 16], sizes = [16, 16], strides = [1, 1]} : vector<16x96xf32> to vector<16x16xf32>
    %60 = vector.extract_strided_slice %40 {offsets = [0, 48], sizes = [16, 16], strides = [1, 1]} : vector<16x96xf32> to vector<16x16xf32>
    %61 = vector.extract_strided_slice %40 {offsets = [0, 80], sizes = [16, 16], strides = [1, 1]} : vector<16x96xf32> to vector<16x16xf32>
    %cst_21 = arith.constant dense<0.000000e+00> : vector<16x16xf32>
    %62 = tpu.matmul %59, %60, %cst_21 {dimension_numbers = #tpu.dot_dimension_numbers<[1], [1], [0], [0], [0, 0, 1, 0], [], []>} : vector<16x16xf32>, vector<16x16xf32>, vector<16x16xf32> -> vector<16x16xf32>
    %cst_22 = arith.constant 2.500000e-01 : f32
    %63 = vector.broadcast %cst_22 : f32 to vector<16x16xf32>
    %64 = arith.mulf %62, %63 : vector<16x16xf32>
    %65 = arith.addf %64, %13 : vector<16x16xf32>
    %cst_23 = arith.constant dense<0xFF800000> : vector<16xf32>
    %66 = vector.multi_reduction <maximumf>, %65, %cst_23 [1] : vector<16x16xf32> to vector<16xf32>
    %67 = vector.shape_cast %66 : vector<16xf32> to vector<16x1xf32>
    %68 = vector.broadcast %67 : vector<16x1xf32> to vector<16x16xf32>
    %69 = arith.subf %65, %68 : vector<16x16xf32>
    %70 = math.exp %69 : vector<16x16xf32>
    %cst_24 = arith.constant dense<0.000000e+00> : vector<16xf32>
    %71 = vector.multi_reduction <add>, %70, %cst_24 [1] : vector<16x16xf32> to vector<16xf32>
    %72 = vector.shape_cast %71 : vector<16xf32> to vector<16x1xf32>
    %73 = tpu.reciprocal %72 {approx = true} : vector<16x1xf32> -> vector<16x1xf32>
    %74 = vector.broadcast %73 : vector<16x1xf32> to vector<16x16xf32>
    %75 = arith.mulf %70, %74 : vector<16x16xf32>
    %cst_25 = arith.constant dense<0.000000e+00> : vector<16x16xf32>
    %76 = tpu.matmul %75, %61, %cst_25 {dimension_numbers = #tpu.dot_dimension_numbers<[1], [0], [0], [1], [0, 0, 1, 1], [], []>} : vector<16x16xf32>, vector<16x16xf32>, vector<16x16xf32> -> vector<16x16xf32>
    %77 = tpu.concatenate %58, %76 in 1 : vector<16x16xf32>, vector<16x16xf32> -> vector<16x32xf32>
    %c56 = arith.constant 56 : index
    %c0_26 = arith.constant 0 : index
    %78 = vector.load %arg2[%c56, %c0_26] : memref<816x128xf32, #tpu.memory_space<vmem>>, vector<32x32xf32>
    %cst_27 = arith.constant dense<0.000000e+00> : vector<16x32xf32>
    %79 = tpu.matmul %77, %78, %cst_27 {dimension_numbers = #tpu.dot_dimension_numbers<[1], [0], [0], [1], [0, 0, 1, 1], [], []>} : vector<16x32xf32>, vector<32x32xf32>, vector<16x32xf32> -> vector<16x32xf32>
    %80 = arith.addf %0, %79 : vector<16x32xf32>
    %c88 = arith.constant 88 : index
    %c0_28 = arith.constant 0 : index
    %81 = vector.load %arg2[%c88, %c0_28] : memref<816x128xf32, #tpu.memory_space<vmem>>, vector<1x32xf32>
    %82 = vector.broadcast %81 : vector<1x32xf32> to vector<16x32xf32>
    %83 = arith.addf %80, %82 : vector<16x32xf32>
    %c96 = arith.constant 96 : index
    %c0_29 = arith.constant 0 : index
    %84 = vector.load %arg2[%c96, %c0_29] : memref<816x128xf32, #tpu.memory_space<vmem>>, vector<1x32xf32>
    %c104 = arith.constant 104 : index
    %c0_30 = arith.constant 0 : index
    %85 = vector.load %arg2[%c104, %c0_30] : memref<816x128xf32, #tpu.memory_space<vmem>>, vector<1x32xf32>
    %cst_31 = arith.constant dense<0.000000e+00> : vector<16xf32>
    %86 = vector.multi_reduction <add>, %83, %cst_31 [1] : vector<16x32xf32> to vector<16xf32>
    %87 = vector.shape_cast %86 : vector<16xf32> to vector<16x1xf32>
    %cst_32 = arith.constant 3.200000e+01 : f32
    %88 = vector.broadcast %cst_32 : f32 to vector<16x1xf32>
    %89 = arith.divf %87, %88 : vector<16x1xf32>
    %90 = vector.broadcast %89 : vector<16x1xf32> to vector<16x32xf32>
    %91 = arith.subf %83, %90 : vector<16x32xf32>
    %92 = arith.mulf %91, %91 : vector<16x32xf32>
    %cst_33 = arith.constant dense<0.000000e+00> : vector<16xf32>
    %93 = vector.multi_reduction <add>, %92, %cst_33 [1] : vector<16x32xf32> to vector<16xf32>
    %94 = vector.shape_cast %93 : vector<16xf32> to vector<16x1xf32>
    %cst_34 = arith.constant 3.200000e+01 : f32
    %95 = vector.broadcast %cst_34 : f32 to vector<16x1xf32>
    %96 = arith.divf %94, %95 : vector<16x1xf32>
    %cst_35 = arith.constant 9.99999974E-6 : f32
    %97 = vector.broadcast %cst_35 : f32 to vector<16x1xf32>
    %98 = arith.addf %96, %97 : vector<16x1xf32>
    %99 = math.rsqrt %98 : vector<16x1xf32>
    %100 = vector.broadcast %99 : vector<16x1xf32> to vector<16x32xf32>
    %101 = arith.mulf %91, %100 : vector<16x32xf32>
    %102 = vector.broadcast %84 : vector<1x32xf32> to vector<16x32xf32>
    %103 = arith.mulf %101, %102 : vector<16x32xf32>
    %104 = vector.broadcast %85 : vector<1x32xf32> to vector<16x32xf32>
    %105 = arith.addf %103, %104 : vector<16x32xf32>
    %c112 = arith.constant 112 : index
    %c0_36 = arith.constant 0 : index
    %106 = vector.load %arg2[%c112, %c0_36] : memref<816x128xf32, #tpu.memory_space<vmem>>, vector<32x128xf32>
    %cst_37 = arith.constant dense<0.000000e+00> : vector<16x128xf32>
    %107 = tpu.matmul %105, %106, %cst_37 {dimension_numbers = #tpu.dot_dimension_numbers<[1], [0], [0], [1], [0, 0, 1, 1], [], []>} : vector<16x32xf32>, vector<32x128xf32>, vector<16x128xf32> -> vector<16x128xf32>
    %c144 = arith.constant 144 : index
    %c0_38 = arith.constant 0 : index
    %108 = vector.load %arg2[%c144, %c0_38] : memref<816x128xf32, #tpu.memory_space<vmem>>, vector<1x128xf32>
    %109 = vector.broadcast %108 : vector<1x128xf32> to vector<16x128xf32>
    %110 = arith.addf %107, %109 : vector<16x128xf32>
    %cst_39 = arith.constant 5.000000e-01 : f32
    %111 = vector.broadcast %cst_39 : f32 to vector<16x128xf32>
    %112 = arith.mulf %111, %110 : vector<16x128xf32>
    %cst_40 = arith.constant 4.471500e-02 : f32
    %113 = vector.broadcast %cst_40 : f32 to vector<16x128xf32>
    %114 = arith.mulf %113, %110 : vector<16x128xf32>
    %115 = arith.mulf %114, %110 : vector<16x128xf32>
    %116 = arith.mulf %115, %110 : vector<16x128xf32>
    %117 = arith.addf %110, %116 : vector<16x128xf32>
    %cst_41 = arith.constant 0.797884583 : f32
    %118 = vector.broadcast %cst_41 : f32 to vector<16x128xf32>
    %119 = arith.mulf %118, %117 : vector<16x128xf32>
    %120 = math.tanh %119 : vector<16x128xf32>
    %cst_42 = arith.constant 1.000000e+00 : f32
    %121 = vector.broadcast %cst_42 : f32 to vector<16x128xf32>
    %122 = arith.addf %121, %120 : vector<16x128xf32>
    %123 = arith.mulf %112, %122 : vector<16x128xf32>
    %c152 = arith.constant 152 : index
    %c0_43 = arith.constant 0 : index
    %124 = vector.load %arg2[%c152, %c0_43] : memref<816x128xf32, #tpu.memory_space<vmem>>, vector<128x32xf32>
    %cst_44 = arith.constant dense<0.000000e+00> : vector<16x32xf32>
    %125 = tpu.matmul %123, %124, %cst_44 {dimension_numbers = #tpu.dot_dimension_numbers<[1], [0], [0], [1], [0, 0, 1, 1], [], []>} : vector<16x128xf32>, vector<128x32xf32>, vector<16x32xf32> -> vector<16x32xf32>
    %126 = arith.addf %83, %125 : vector<16x32xf32>
    %c280 = arith.constant 280 : index
    %c0_45 = arith.constant 0 : index
    %127 = vector.load %arg2[%c280, %c0_45] : memref<816x128xf32, #tpu.memory_space<vmem>>, vector<1x32xf32>
    %128 = vector.broadcast %127 : vector<1x32xf32> to vector<16x32xf32>
    %129 = arith.addf %126, %128 : vector<16x32xf32>
    %c288 = arith.constant 288 : index
    %c0_46 = arith.constant 0 : index
    %130 = vector.load %arg2[%c288, %c0_46] : memref<816x128xf32, #tpu.memory_space<vmem>>, vector<1x32xf32>
    %c296 = arith.constant 296 : index
    %c0_47 = arith.constant 0 : index
    %131 = vector.load %arg2[%c296, %c0_47] : memref<816x128xf32, #tpu.memory_space<vmem>>, vector<1x32xf32>
    %cst_48 = arith.constant dense<0.000000e+00> : vector<16xf32>
    %132 = vector.multi_reduction <add>, %129, %cst_48 [1] : vector<16x32xf32> to vector<16xf32>
    %133 = vector.shape_cast %132 : vector<16xf32> to vector<16x1xf32>
    %cst_49 = arith.constant 3.200000e+01 : f32
    %134 = vector.broadcast %cst_49 : f32 to vector<16x1xf32>
    %135 = arith.divf %133, %134 : vector<16x1xf32>
    %136 = vector.broadcast %135 : vector<16x1xf32> to vector<16x32xf32>
    %137 = arith.subf %129, %136 : vector<16x32xf32>
    %138 = arith.mulf %137, %137 : vector<16x32xf32>
    %cst_50 = arith.constant dense<0.000000e+00> : vector<16xf32>
    %139 = vector.multi_reduction <add>, %138, %cst_50 [1] : vector<16x32xf32> to vector<16xf32>
    %140 = vector.shape_cast %139 : vector<16xf32> to vector<16x1xf32>
    %cst_51 = arith.constant 3.200000e+01 : f32
    %141 = vector.broadcast %cst_51 : f32 to vector<16x1xf32>
    %142 = arith.divf %140, %141 : vector<16x1xf32>
    %cst_52 = arith.constant 9.99999974E-6 : f32
    %143 = vector.broadcast %cst_52 : f32 to vector<16x1xf32>
    %144 = arith.addf %142, %143 : vector<16x1xf32>
    %145 = math.rsqrt %144 : vector<16x1xf32>
    %146 = vector.broadcast %145 : vector<16x1xf32> to vector<16x32xf32>
    %147 = arith.mulf %137, %146 : vector<16x32xf32>
    %148 = vector.broadcast %130 : vector<1x32xf32> to vector<16x32xf32>
    %149 = arith.mulf %147, %148 : vector<16x32xf32>
    %150 = vector.broadcast %131 : vector<1x32xf32> to vector<16x32xf32>
    %151 = arith.addf %149, %150 : vector<16x32xf32>
    %c304 = arith.constant 304 : index
    %c0_53 = arith.constant 0 : index
    %152 = vector.load %arg2[%c304, %c0_53] : memref<816x128xf32, #tpu.memory_space<vmem>>, vector<32x96xf32>
    %cst_54 = arith.constant dense<0.000000e+00> : vector<16x96xf32>
    %153 = tpu.matmul %151, %152, %cst_54 {dimension_numbers = #tpu.dot_dimension_numbers<[1], [0], [0], [1], [0, 0, 1, 1], [], []>} : vector<16x32xf32>, vector<32x96xf32>, vector<16x96xf32> -> vector<16x96xf32>
    %c336 = arith.constant 336 : index
    %c0_55 = arith.constant 0 : index
    %154 = vector.load %arg2[%c336, %c0_55] : memref<816x128xf32, #tpu.memory_space<vmem>>, vector<1x96xf32>
    %155 = vector.broadcast %154 : vector<1x96xf32> to vector<16x96xf32>
    %156 = arith.addf %153, %155 : vector<16x96xf32>
    %157 = vector.extract_strided_slice %156 {offsets = [0, 0], sizes = [16, 16], strides = [1, 1]} : vector<16x96xf32> to vector<16x16xf32>
    %158 = vector.extract_strided_slice %156 {offsets = [0, 32], sizes = [16, 16], strides = [1, 1]} : vector<16x96xf32> to vector<16x16xf32>
    %159 = vector.extract_strided_slice %156 {offsets = [0, 64], sizes = [16, 16], strides = [1, 1]} : vector<16x96xf32> to vector<16x16xf32>
    %cst_56 = arith.constant dense<0.000000e+00> : vector<16x16xf32>
    %160 = tpu.matmul %157, %158, %cst_56 {dimension_numbers = #tpu.dot_dimension_numbers<[1], [1], [0], [0], [0, 0, 1, 0], [], []>} : vector<16x16xf32>, vector<16x16xf32>, vector<16x16xf32> -> vector<16x16xf32>
    %cst_57 = arith.constant 2.500000e-01 : f32
    %161 = vector.broadcast %cst_57 : f32 to vector<16x16xf32>
    %162 = arith.mulf %160, %161 : vector<16x16xf32>
    %163 = arith.addf %162, %13 : vector<16x16xf32>
    %cst_58 = arith.constant dense<0xFF800000> : vector<16xf32>
    %164 = vector.multi_reduction <maximumf>, %163, %cst_58 [1] : vector<16x16xf32> to vector<16xf32>
    %165 = vector.shape_cast %164 : vector<16xf32> to vector<16x1xf32>
    %166 = vector.broadcast %165 : vector<16x1xf32> to vector<16x16xf32>
    %167 = arith.subf %163, %166 : vector<16x16xf32>
    %168 = math.exp %167 : vector<16x16xf32>
    %cst_59 = arith.constant dense<0.000000e+00> : vector<16xf32>
    %169 = vector.multi_reduction <add>, %168, %cst_59 [1] : vector<16x16xf32> to vector<16xf32>
    %170 = vector.shape_cast %169 : vector<16xf32> to vector<16x1xf32>
    %171 = tpu.reciprocal %170 {approx = true} : vector<16x1xf32> -> vector<16x1xf32>
    %172 = vector.broadcast %171 : vector<16x1xf32> to vector<16x16xf32>
    %173 = arith.mulf %168, %172 : vector<16x16xf32>
    %cst_60 = arith.constant dense<0.000000e+00> : vector<16x16xf32>
    %174 = tpu.matmul %173, %159, %cst_60 {dimension_numbers = #tpu.dot_dimension_numbers<[1], [0], [0], [1], [0, 0, 1, 1], [], []>} : vector<16x16xf32>, vector<16x16xf32>, vector<16x16xf32> -> vector<16x16xf32>
    %175 = vector.extract_strided_slice %156 {offsets = [0, 16], sizes = [16, 16], strides = [1, 1]} : vector<16x96xf32> to vector<16x16xf32>
    %176 = vector.extract_strided_slice %156 {offsets = [0, 48], sizes = [16, 16], strides = [1, 1]} : vector<16x96xf32> to vector<16x16xf32>
    %177 = vector.extract_strided_slice %156 {offsets = [0, 80], sizes = [16, 16], strides = [1, 1]} : vector<16x96xf32> to vector<16x16xf32>
    %cst_61 = arith.constant dense<0.000000e+00> : vector<16x16xf32>
    %178 = tpu.matmul %175, %176, %cst_61 {dimension_numbers = #tpu.dot_dimension_numbers<[1], [1], [0], [0], [0, 0, 1, 0], [], []>} : vector<16x16xf32>, vector<16x16xf32>, vector<16x16xf32> -> vector<16x16xf32>
    %cst_62 = arith.constant 2.500000e-01 : f32
    %179 = vector.broadcast %cst_62 : f32 to vector<16x16xf32>
    %180 = arith.mulf %178, %179 : vector<16x16xf32>
    %181 = arith.addf %180, %13 : vector<16x16xf32>
    %cst_63 = arith.constant dense<0xFF800000> : vector<16xf32>
    %182 = vector.multi_reduction <maximumf>, %181, %cst_63 [1] : vector<16x16xf32> to vector<16xf32>
    %183 = vector.shape_cast %182 : vector<16xf32> to vector<16x1xf32>
    %184 = vector.broadcast %183 : vector<16x1xf32> to vector<16x16xf32>
    %185 = arith.subf %181, %184 : vector<16x16xf32>
    %186 = math.exp %185 : vector<16x16xf32>
    %cst_64 = arith.constant dense<0.000000e+00> : vector<16xf32>
    %187 = vector.multi_reduction <add>, %186, %cst_64 [1] : vector<16x16xf32> to vector<16xf32>
    %188 = vector.shape_cast %187 : vector<16xf32> to vector<16x1xf32>
    %189 = tpu.reciprocal %188 {approx = true} : vector<16x1xf32> -> vector<16x1xf32>
    %190 = vector.broadcast %189 : vector<16x1xf32> to vector<16x16xf32>
    %191 = arith.mulf %186, %190 : vector<16x16xf32>
    %cst_65 = arith.constant dense<0.000000e+00> : vector<16x16xf32>
    %192 = tpu.matmul %191, %177, %cst_65 {dimension_numbers = #tpu.dot_dimension_numbers<[1], [0], [0], [1], [0, 0, 1, 1], [], []>} : vector<16x16xf32>, vector<16x16xf32>, vector<16x16xf32> -> vector<16x16xf32>
    %193 = tpu.concatenate %174, %192 in 1 : vector<16x16xf32>, vector<16x16xf32> -> vector<16x32xf32>
    %c344 = arith.constant 344 : index
    %c0_66 = arith.constant 0 : index
    %194 = vector.load %arg2[%c344, %c0_66] : memref<816x128xf32, #tpu.memory_space<vmem>>, vector<32x32xf32>
    %cst_67 = arith.constant dense<0.000000e+00> : vector<16x32xf32>
    %195 = tpu.matmul %193, %194, %cst_67 {dimension_numbers = #tpu.dot_dimension_numbers<[1], [0], [0], [1], [0, 0, 1, 1], [], []>} : vector<16x32xf32>, vector<32x32xf32>, vector<16x32xf32> -> vector<16x32xf32>
    %196 = arith.addf %129, %195 : vector<16x32xf32>
    %c376 = arith.constant 376 : index
    %c0_68 = arith.constant 0 : index
    %197 = vector.load %arg2[%c376, %c0_68] : memref<816x128xf32, #tpu.memory_space<vmem>>, vector<1x32xf32>
    %198 = vector.broadcast %197 : vector<1x32xf32> to vector<16x32xf32>
    %199 = arith.addf %196, %198 : vector<16x32xf32>
    %c384 = arith.constant 384 : index
    %c0_69 = arith.constant 0 : index
    %200 = vector.load %arg2[%c384, %c0_69] : memref<816x128xf32, #tpu.memory_space<vmem>>, vector<1x32xf32>
    %c392 = arith.constant 392 : index
    %c0_70 = arith.constant 0 : index
    %201 = vector.load %arg2[%c392, %c0_70] : memref<816x128xf32, #tpu.memory_space<vmem>>, vector<1x32xf32>
    %cst_71 = arith.constant dense<0.000000e+00> : vector<16xf32>
    %202 = vector.multi_reduction <add>, %199, %cst_71 [1] : vector<16x32xf32> to vector<16xf32>
    %203 = vector.shape_cast %202 : vector<16xf32> to vector<16x1xf32>
    %cst_72 = arith.constant 3.200000e+01 : f32
    %204 = vector.broadcast %cst_72 : f32 to vector<16x1xf32>
    %205 = arith.divf %203, %204 : vector<16x1xf32>
    %206 = vector.broadcast %205 : vector<16x1xf32> to vector<16x32xf32>
    %207 = arith.subf %199, %206 : vector<16x32xf32>
    %208 = arith.mulf %207, %207 : vector<16x32xf32>
    %cst_73 = arith.constant dense<0.000000e+00> : vector<16xf32>
    %209 = vector.multi_reduction <add>, %208, %cst_73 [1] : vector<16x32xf32> to vector<16xf32>
    %210 = vector.shape_cast %209 : vector<16xf32> to vector<16x1xf32>
    %cst_74 = arith.constant 3.200000e+01 : f32
    %211 = vector.broadcast %cst_74 : f32 to vector<16x1xf32>
    %212 = arith.divf %210, %211 : vector<16x1xf32>
    %cst_75 = arith.constant 9.99999974E-6 : f32
    %213 = vector.broadcast %cst_75 : f32 to vector<16x1xf32>
    %214 = arith.addf %212, %213 : vector<16x1xf32>
    %215 = math.rsqrt %214 : vector<16x1xf32>
    %216 = vector.broadcast %215 : vector<16x1xf32> to vector<16x32xf32>
    %217 = arith.mulf %207, %216 : vector<16x32xf32>
    %218 = vector.broadcast %200 : vector<1x32xf32> to vector<16x32xf32>
    %219 = arith.mulf %217, %218 : vector<16x32xf32>
    %220 = vector.broadcast %201 : vector<1x32xf32> to vector<16x32xf32>
    %221 = arith.addf %219, %220 : vector<16x32xf32>
    %c400 = arith.constant 400 : index
    %c0_76 = arith.constant 0 : index
    %222 = vector.load %arg2[%c400, %c0_76] : memref<816x128xf32, #tpu.memory_space<vmem>>, vector<32x128xf32>
    %cst_77 = arith.constant dense<0.000000e+00> : vector<16x128xf32>
    %223 = tpu.matmul %221, %222, %cst_77 {dimension_numbers = #tpu.dot_dimension_numbers<[1], [0], [0], [1], [0, 0, 1, 1], [], []>} : vector<16x32xf32>, vector<32x128xf32>, vector<16x128xf32> -> vector<16x128xf32>
    %c432 = arith.constant 432 : index
    %c0_78 = arith.constant 0 : index
    %224 = vector.load %arg2[%c432, %c0_78] : memref<816x128xf32, #tpu.memory_space<vmem>>, vector<1x128xf32>
    %225 = vector.broadcast %224 : vector<1x128xf32> to vector<16x128xf32>
    %226 = arith.addf %223, %225 : vector<16x128xf32>
    %cst_79 = arith.constant 5.000000e-01 : f32
    %227 = vector.broadcast %cst_79 : f32 to vector<16x128xf32>
    %228 = arith.mulf %227, %226 : vector<16x128xf32>
    %cst_80 = arith.constant 4.471500e-02 : f32
    %229 = vector.broadcast %cst_80 : f32 to vector<16x128xf32>
    %230 = arith.mulf %229, %226 : vector<16x128xf32>
    %231 = arith.mulf %230, %226 : vector<16x128xf32>
    %232 = arith.mulf %231, %226 : vector<16x128xf32>
    %233 = arith.addf %226, %232 : vector<16x128xf32>
    %cst_81 = arith.constant 0.797884583 : f32
    %234 = vector.broadcast %cst_81 : f32 to vector<16x128xf32>
    %235 = arith.mulf %234, %233 : vector<16x128xf32>
    %236 = math.tanh %235 : vector<16x128xf32>
    %cst_82 = arith.constant 1.000000e+00 : f32
    %237 = vector.broadcast %cst_82 : f32 to vector<16x128xf32>
    %238 = arith.addf %237, %236 : vector<16x128xf32>
    %239 = arith.mulf %228, %238 : vector<16x128xf32>
    %c440 = arith.constant 440 : index
    %c0_83 = arith.constant 0 : index
    %240 = vector.load %arg2[%c440, %c0_83] : memref<816x128xf32, #tpu.memory_space<vmem>>, vector<128x32xf32>
    %cst_84 = arith.constant dense<0.000000e+00> : vector<16x32xf32>
    %241 = tpu.matmul %239, %240, %cst_84 {dimension_numbers = #tpu.dot_dimension_numbers<[1], [0], [0], [1], [0, 0, 1, 1], [], []>} : vector<16x128xf32>, vector<128x32xf32>, vector<16x32xf32> -> vector<16x32xf32>
    %242 = arith.addf %199, %241 : vector<16x32xf32>
    %c568 = arith.constant 568 : index
    %c0_85 = arith.constant 0 : index
    %243 = vector.load %arg2[%c568, %c0_85] : memref<816x128xf32, #tpu.memory_space<vmem>>, vector<1x32xf32>
    %244 = vector.broadcast %243 : vector<1x32xf32> to vector<16x32xf32>
    %245 = arith.addf %242, %244 : vector<16x32xf32>
    %c576 = arith.constant 576 : index
    %c0_86 = arith.constant 0 : index
    %246 = vector.load %arg2[%c576, %c0_86] : memref<816x128xf32, #tpu.memory_space<vmem>>, vector<1x32xf32>
    %c584 = arith.constant 584 : index
    %c0_87 = arith.constant 0 : index
    %247 = vector.load %arg2[%c584, %c0_87] : memref<816x128xf32, #tpu.memory_space<vmem>>, vector<1x32xf32>
    %cst_88 = arith.constant dense<0.000000e+00> : vector<16xf32>
    %248 = vector.multi_reduction <add>, %245, %cst_88 [1] : vector<16x32xf32> to vector<16xf32>
    %249 = vector.shape_cast %248 : vector<16xf32> to vector<16x1xf32>
    %cst_89 = arith.constant 3.200000e+01 : f32
    %250 = vector.broadcast %cst_89 : f32 to vector<16x1xf32>
    %251 = arith.divf %249, %250 : vector<16x1xf32>
    %252 = vector.broadcast %251 : vector<16x1xf32> to vector<16x32xf32>
    %253 = arith.subf %245, %252 : vector<16x32xf32>
    %254 = arith.mulf %253, %253 : vector<16x32xf32>
    %cst_90 = arith.constant dense<0.000000e+00> : vector<16xf32>
    %255 = vector.multi_reduction <add>, %254, %cst_90 [1] : vector<16x32xf32> to vector<16xf32>
    %256 = vector.shape_cast %255 : vector<16xf32> to vector<16x1xf32>
    %cst_91 = arith.constant 3.200000e+01 : f32
    %257 = vector.broadcast %cst_91 : f32 to vector<16x1xf32>
    %258 = arith.divf %256, %257 : vector<16x1xf32>
    %cst_92 = arith.constant 9.99999974E-6 : f32
    %259 = vector.broadcast %cst_92 : f32 to vector<16x1xf32>
    %260 = arith.addf %258, %259 : vector<16x1xf32>
    %261 = math.rsqrt %260 : vector<16x1xf32>
    %262 = vector.broadcast %261 : vector<16x1xf32> to vector<16x32xf32>
    %263 = arith.mulf %253, %262 : vector<16x32xf32>
    %264 = vector.broadcast %246 : vector<1x32xf32> to vector<16x32xf32>
    %265 = arith.mulf %263, %264 : vector<16x32xf32>
    %266 = vector.broadcast %247 : vector<1x32xf32> to vector<16x32xf32>
    %267 = arith.addf %265, %266 : vector<16x32xf32>
    %c592 = arith.constant 592 : index
    %c0_93 = arith.constant 0 : index
    %268 = vector.load %arg2[%c592, %c0_93] : memref<816x128xf32, #tpu.memory_space<vmem>>, vector<32x16xf32>
    %cst_94 = arith.constant dense<0.000000e+00> : vector<16x16xf32>
    %269 = tpu.matmul %267, %268, %cst_94 {dimension_numbers = #tpu.dot_dimension_numbers<[1], [0], [0], [1], [0, 0, 1, 1], [], []>} : vector<16x32xf32>, vector<32x16xf32>, vector<16x16xf32> -> vector<16x16xf32>
    %270 = math.tanh %269 : vector<16x16xf32>
    %c624 = arith.constant 624 : index
    %c0_95 = arith.constant 0 : index
    %271 = vector.load %arg2[%c624, %c0_95] : memref<816x128xf32, #tpu.memory_space<vmem>>, vector<16x4xf32>
    %cst_96 = arith.constant dense<0.000000e+00> : vector<4x16xf32>
    %272 = tpu.matmul %271, %270, %cst_96 {dimension_numbers = #tpu.dot_dimension_numbers<[0], [1], [1], [0], [0, 1, 1, 0], [], []>} : vector<16x4xf32>, vector<16x16xf32>, vector<4x16xf32> -> vector<4x16xf32>
    %273 = vector.extract_strided_slice %272 {offsets = [0, 0], sizes = [4, 8], strides = [1, 1]} : vector<4x16xf32> to vector<4x8xf32>
    %274 = vector.extract_strided_slice %1 {offsets = [0, 0], sizes = [1, 8], strides = [1, 1]} : vector<2x8xf32> to vector<1x8xf32>
    %275 = vector.broadcast %274 : vector<1x8xf32> to vector<4x8xf32>
    %276 = arith.addf %273, %275 : vector<4x8xf32>
    %cst_97 = arith.constant dense<0xFF800000> : vector<4xf32>
    %277 = vector.multi_reduction <maximumf>, %276, %cst_97 [1] : vector<4x8xf32> to vector<4xf32>
    %278 = vector.shape_cast %277 : vector<4xf32> to vector<4x1xf32>
    %279 = vector.broadcast %278 : vector<4x1xf32> to vector<4x8xf32>
    %280 = arith.subf %276, %279 : vector<4x8xf32>
    %281 = math.exp %280 : vector<4x8xf32>
    %cst_98 = arith.constant dense<0.000000e+00> : vector<4xf32>
    %282 = vector.multi_reduction <add>, %281, %cst_98 [1] : vector<4x8xf32> to vector<4xf32>
    %283 = vector.shape_cast %282 : vector<4xf32> to vector<4x1xf32>
    %284 = vector.broadcast %283 : vector<4x1xf32> to vector<4x8xf32>
    %285 = arith.divf %281, %284 : vector<4x8xf32>
    %286 = vector.extract_strided_slice %267 {offsets = [0, 0], sizes = [8, 32], strides = [1, 1]} : vector<16x32xf32> to vector<8x32xf32>
    %cst_99 = arith.constant dense<0.000000e+00> : vector<4x32xf32>
    %287 = tpu.matmul %285, %286, %cst_99 {dimension_numbers = #tpu.dot_dimension_numbers<[1], [0], [0], [1], [0, 0, 1, 1], [], []>} : vector<4x8xf32>, vector<8x32xf32>, vector<4x32xf32> -> vector<4x32xf32>
    %288 = vector.extract_strided_slice %287 {offsets = [0, 0], sizes = [1, 32], strides = [1, 1]} : vector<4x32xf32> to vector<1x32xf32>
    %289 = vector.extract_strided_slice %287 {offsets = [1, 0], sizes = [1, 32], strides = [1, 1]} : vector<4x32xf32> to vector<1x32xf32>
    %290 = vector.extract_strided_slice %287 {offsets = [2, 0], sizes = [1, 32], strides = [1, 1]} : vector<4x32xf32> to vector<1x32xf32>
    %291 = vector.extract_strided_slice %287 {offsets = [3, 0], sizes = [1, 32], strides = [1, 1]} : vector<4x32xf32> to vector<1x32xf32>
    %292 = tpu.concatenate %288, %289, %290, %291 in 1 : vector<1x32xf32>, vector<1x32xf32>, vector<1x32xf32>, vector<1x32xf32> -> vector<1x128xf32>
    %293 = vector.extract_strided_slice %272 {offsets = [0, 8], sizes = [4, 8], strides = [1, 1]} : vector<4x16xf32> to vector<4x8xf32>
    %294 = vector.extract_strided_slice %1 {offsets = [1, 0], sizes = [1, 8], strides = [1, 1]} : vector<2x8xf32> to vector<1x8xf32>
    %295 = vector.broadcast %294 : vector<1x8xf32> to vector<4x8xf32>
    %296 = arith.addf %293, %295 : vector<4x8xf32>
    %cst_100 = arith.constant dense<0xFF800000> : vector<4xf32>
    %297 = vector.multi_reduction <maximumf>, %296, %cst_100 [1] : vector<4x8xf32> to vector<4xf32>
    %298 = vector.shape_cast %297 : vector<4xf32> to vector<4x1xf32>
    %299 = vector.broadcast %298 : vector<4x1xf32> to vector<4x8xf32>
    %300 = arith.subf %296, %299 : vector<4x8xf32>
    %301 = math.exp %300 : vector<4x8xf32>
    %cst_101 = arith.constant dense<0.000000e+00> : vector<4xf32>
    %302 = vector.multi_reduction <add>, %301, %cst_101 [1] : vector<4x8xf32> to vector<4xf32>
    %303 = vector.shape_cast %302 : vector<4xf32> to vector<4x1xf32>
    %304 = vector.broadcast %303 : vector<4x1xf32> to vector<4x8xf32>
    %305 = arith.divf %301, %304 : vector<4x8xf32>
    %306 = vector.extract_strided_slice %267 {offsets = [8, 0], sizes = [8, 32], strides = [1, 1]} : vector<16x32xf32> to vector<8x32xf32>
    %cst_102 = arith.constant dense<0.000000e+00> : vector<4x32xf32>
    %307 = tpu.matmul %305, %306, %cst_102 {dimension_numbers = #tpu.dot_dimension_numbers<[1], [0], [0], [1], [0, 0, 1, 1], [], []>} : vector<4x8xf32>, vector<8x32xf32>, vector<4x32xf32> -> vector<4x32xf32>
    %308 = vector.extract_strided_slice %307 {offsets = [0, 0], sizes = [1, 32], strides = [1, 1]} : vector<4x32xf32> to vector<1x32xf32>
    %309 = vector.extract_strided_slice %307 {offsets = [1, 0], sizes = [1, 32], strides = [1, 1]} : vector<4x32xf32> to vector<1x32xf32>
    %310 = vector.extract_strided_slice %307 {offsets = [2, 0], sizes = [1, 32], strides = [1, 1]} : vector<4x32xf32> to vector<1x32xf32>
    %311 = vector.extract_strided_slice %307 {offsets = [3, 0], sizes = [1, 32], strides = [1, 1]} : vector<4x32xf32> to vector<1x32xf32>
    %312 = tpu.concatenate %308, %309, %310, %311 in 1 : vector<1x32xf32>, vector<1x32xf32>, vector<1x32xf32>, vector<1x32xf32> -> vector<1x128xf32>
    %313 = tpu.concatenate %292, %312 in 0 : vector<1x128xf32>, vector<1x128xf32> -> vector<2x128xf32>
    %c640 = arith.constant 640 : index
    %c0_103 = arith.constant 0 : index
    %314 = vector.load %arg2[%c640, %c0_103] : memref<816x128xf32, #tpu.memory_space<vmem>>, vector<128x32xf32>
    %cst_104 = arith.constant dense<0.000000e+00> : vector<2x32xf32>
    %315 = tpu.matmul %313, %314, %cst_104 {dimension_numbers = #tpu.dot_dimension_numbers<[1], [0], [0], [1], [0, 0, 1, 1], [], []>} : vector<2x128xf32>, vector<128x32xf32>, vector<2x32xf32> -> vector<2x32xf32>
    %c768 = arith.constant 768 : index
    %c0_105 = arith.constant 0 : index
    %316 = vector.load %arg2[%c768, %c0_105] : memref<816x128xf32, #tpu.memory_space<vmem>>, vector<1x32xf32>
    %317 = vector.broadcast %316 : vector<1x32xf32> to vector<2x32xf32>
    %318 = arith.addf %315, %317 : vector<2x32xf32>
    %319 = math.tanh %318 : vector<2x32xf32>
    %c776 = arith.constant 776 : index
    %c0_106 = arith.constant 0 : index
    %320 = vector.load %arg2[%c776, %c0_106] : memref<816x128xf32, #tpu.memory_space<vmem>>, vector<32x3xf32>
    %cst_107 = arith.constant dense<0.000000e+00> : vector<2x3xf32>
    %321 = tpu.matmul %319, %320, %cst_107 {dimension_numbers = #tpu.dot_dimension_numbers<[1], [0], [0], [1], [0, 0, 1, 1], [], []>} : vector<2x32xf32>, vector<32x3xf32>, vector<2x3xf32> -> vector<2x3xf32>
    %c808 = arith.constant 808 : index
    %c0_108 = arith.constant 0 : index
    %322 = vector.load %arg2[%c808, %c0_108] : memref<816x128xf32, #tpu.memory_space<vmem>>, vector<1x3xf32>
    %323 = vector.broadcast %322 : vector<1x3xf32> to vector<2x3xf32>
    %324 = arith.addf %321, %323 : vector<2x3xf32>
    %c0_109 = arith.constant 0 : index
    %c0_110 = arith.constant 0 : index
    %325 = vector.load %arg3[%c0_109, %c0_110] : memref<2x3xf32, #tpu.memory_space<vmem>>, vector<2x3xf32>
    tpu.vector_store %arg3[%c0_109, %c0_110], %324 {strides = array<i32>} : memref<2x3xf32, #tpu.memory_space<vmem>>, vector<2x3xf32>,
    %326 = tpu.concatenate %285, %305 in 0 : vector<4x8xf32>, vector<4x8xf32> -> vector<8x8xf32>
    %c0_111 = arith.constant 0 : index
    %c0_112 = arith.constant 0 : index
    %327 = vector.load %arg4[%c0_111, %c0_112] : memref<8x8xf32, #tpu.memory_space<vmem>>, vector<8x8xf32>
    tpu.vector_store %arg4[%c0_111, %c0_112], %326 {strides = array<i32>} : memref<8x8xf32, #tpu.memory_space<vmem>>, vector<8x8xf32>,
    return
  }
}

</mosaic_0001>

<llo_original>
// kernel: self_attentive_gpt2_forward.1
$region0: #{self_attentive_gpt2_forward.1}
  #allocation0 [shape = 'u32[]', space=smem, size = 0x4, offset = 0x4, fixed_abs, tag = 'smem constant byte address 0x4 - core index']
  #allocation1 [shape = 'u32[144,128]{1,0:T(1,128)}', space=vmem, size = 0x12000, scoped, tag = 'internal scratch']
  %s0 = inlined_call_operand.vmem [shape: f32[16,32], index: 0, kind: input, shape index: {}]
  %s1 = inlined_call_operand.vmem [shape: f32[2,8], index: 1, kind: input, shape index: {}]
  %s2 = inlined_call_operand.hbm [shape: f32[816,128], index: 2, kind: input, shape index: {}]
  %s3 = inlined_call_operand.hbm [shape: f32[2,3], index: 3, kind: output, shape index: {0}]
  %s4 = inlined_call_operand.hbm [shape: f32[8,8], index: 4, kind: output, shape index: {1}]
  %5 = xla_tuple %s3, %s4
  %s6 = sld [smem:[#allocation0]]
  $region34: #{self_attentive_gpt2_forward.1} parent=0
    _
  %s8 = ssub.s32 1, %s6
  %s9 = scalar_select 0, %s8, %s6
  $region1: #{self_attentive_gpt2_forward.1} parent=0
    #allocation2 [shape = 'u8[417792]{0}', space=vmem, size = 0x66000, scoped, tag = 'input window, operand 2, single buffered']
    #allocation3 [shape = 's32[1]{0}', space=sflag, size = 0x4, scoped, tag = 'scoped memory for self_attentive_gpt2_forward.1']
    #allocation4 [shape = 's32[1]{0}', space=sflag, size = 0x4, scoped, tag = 'scoped memory for self_attentive_gpt2_forward.1']
    #allocation5 [shape = 'u8[1024]{0}', space=vmem, size = 0x400, scoped, tag = 'output window, operand 0, single buffered']
    #allocation6 [shape = 'u8[4096]{0}', space=vmem, size = 0x1000, scoped, tag = 'output window, operand 1, single buffered']
    #allocation7 [shape = 's32[1]{0}', space=sflag, size = 0x4, scoped, tag = 'scoped memory for self_attentive_gpt2_forward.1']
    %10 = vsyncpa [#allocation3], 0
    %11 = vsyncpa [#allocation4], 0
    %12 = vsyncpa [#allocation7], 0
    // Predicated region
    $region2: #{self_attentive_gpt2_forward.1} parent=1 // pred_check
      _
    $region3: #{self_attentive_gpt2_forward.1} parent=1 // pred_check_branch
      %14 = sbr.rel (0) target = $region5
    $region4: #{self_attentive_gpt2_forward.1} parent=1 // pred_region
      _
    $region5: #{self_attentive_gpt2_forward.1} parent=1 // pred_fallthru
      _
    // Predicated region
    $region6: #{self_attentive_gpt2_forward.1} parent=1 // pred_check
      _
    $region7: #{self_attentive_gpt2_forward.1} parent=1 // pred_check_branch
      %16 = sbr.rel (0) target = $region9
    $region8: #{self_attentive_gpt2_forward.1} parent=1 // pred_region
      _
    $region9: #{self_attentive_gpt2_forward.1} parent=1 // pred_fallthru
      _
    // Predicated region
    $region10: #{self_attentive_gpt2_forward.1} parent=1 // pred_check
      _
    $region11: #{self_attentive_gpt2_forward.1} parent=1 // pred_check_branch
      %18 = sbr.rel (0) target = $region13
    $region12: #{self_attentive_gpt2_forward.1} parent=1 // pred_region
      %s20 = ssub.s32 13056, 13056
      %21 = vsyncadd [#allocation3], %s20
      %s22 = sshll.u32 [#allocation2], 4
      %s23 = int_to_ptr.vmem [resolvable:$true] %s22
      %28 = dma.hbm_to_vmem [thread:$0]  %s2, 13056, %s23, [#allocation3], 128, 128, 8
    $region13: #{self_attentive_gpt2_forward.1} parent=1 // pred_fallthru
      _
    // Predicated region
    $region14: #{self_attentive_gpt2_forward.1} parent=1 // pred_check
      _
    $region15: #{self_attentive_gpt2_forward.1} parent=1 // pred_check_branch
      %30 = sbr.rel (0) target = $region17
    $region16: #{self_attentive_gpt2_forward.1} parent=1 // pred_region
      %31 = dma.done [#allocation3], 13056
    $region17: #{self_attentive_gpt2_forward.1} parent=1 // pred_fallthru
      _
    %v32 = vld [vmem:[%s0] sm:$0xff]
    %v33 = vld [vmem:[%s0 + $0x8] sm:$0xff]
    %v34 = vld [vmem:[%s1] sm:$0x3]
    %v35 = vlaneseq
    %v36 = vshrl.u32 %v35, 7
    %v37 = vadd.s32 %v36, 8
    %v38 = vlaneseq
    %v39 = vand.u32 %v38, 127
    %v40 = vshra.s32 %v36, 3
    %v41 = vshra.s32 %v37, 3
    %v42 = vshra.s32 %v39, 3
    %vm43 = vcmp.eq.s32.totalorder %v40, %v42
    %vm44 = vcmp.eq.s32.totalorder %v41, %v42
    %vm45 = vcmp.le.s32.totalorder %v39, %v36
    %vm46 = vcmp.le.s32.totalorder %v39, %v37
    %vm47 = vmand %vm45, %vm43
    %vm48 = vmand %vm46, %vm44
    %v49 = vsel %vm47, 0.0, -1e+09
    %v50 = vsel %vm48, 0.0, -1e+09
    %v51 = vld [vmem:[#allocation2] sm:$0x1]
    %v52 = vld [vmem:[#allocation2 + $0x8] sm:$0x1]
    %vm53 = vcmask 261120
    %v54 = vsel %vm53, %v32, 0.0
    %55 = vadd.xlane.f32.xlu0 %v54
    %v56 = vpop.xlane.xlu0 %55
    %v57 = vsel %vm53, %v33, 0.0
    %58 = vadd.xlane.f32.xlu0 %v57
    %v59 = vpop.xlane.xlu0 %58
    %v60 = vrcp.pop 32.0
    %v61 = vmul.f32 %v56, %v60
    %v62 = vmul.f32 %v59, %v60
    %v63 = vsub.f32 %v32, %v61
    %v64 = vsub.f32 %v33, %v62
    %v65 = vmul.f32 %v63, %v63
    %v66 = vmul.f32 %v64, %v64
    %v67 = vsel %vm53, %v65, 0.0
    %68 = vadd.xlane.f32.xlu0 %v67
    %v69 = vpop.xlane.xlu0 %68
    %v70 = vsel %vm53, %v66, 0.0
    %71 = vadd.xlane.f32.xlu0 %v70
    %v72 = vpop.xlane.xlu0 %71
    %v73 = vmul.f32 %v69, %v60
    %v74 = vmul.f32 %v72, %v60
    %v75 = vadd.f32 %v73, 1e-05
    %v76 = vadd.f32 %v74, 1e-05
    %v77 = vrsqrt.pop %v75
    %v78 = vrsqrt.pop %v76
    %v79 = vmul.f32 %v63, %v77
    %v80 = vmul.f32 %v64, %v78
    %v81 = vlaneseq
    %v82 = vshrl.u32 %v81, 7
    %v83 = vsub.s32 0, %v82
    %v84 = vrot.slane %v51, %v83
    %v85 = vmul.f32 %v79, %v84
    %v86 = vmul.f32 %v80, %v84
    %v87 = vlaneseq
    %v88 = vshrl.u32 %v87, 7
    %v89 = vsub.s32 0, %v88
    %v90 = vrot.slane %v52, %v89
    %v91 = vadd.f32 %v85, %v90
    %v92 = vadd.f32 %v86, %v90
    %v93 = vld [vmem:[#allocation2 + $0x10] sm:$0xff]
    %v94 = vld [vmem:[#allocation2 + $0x18] sm:$0xff]
    %v95 = vld [vmem:[#allocation2 + $0x20] sm:$0xff]
    %v96 = vld [vmem:[#allocation2 + $0x28] sm:$0xff]
    %v97 = vld [vmem:[#allocation2 + $0x30] sm:$0x1]
    %v98 = vlaneseq
    %v99 = vshrl.u32 %v98, 7
    %v100 = vsub.s32 0, %v99
    %v101 = vrot.slane %v97, %v100
    %v103 = vsel %vm53, %v91, 0
    %v106 = vsel %vm53, %v92, 0
    %108 = vmatprep.subr.mxu0 0.0
    %109 = vmatpush1.msra.mxu0 %v93
    %110 = vmatprep.subr.mxu0 0.0
    %111 = vmatpush1.msra.mxu0 %v94
    %112 = vmatprep.subr.mxu0 0.0
    %113 = vmatpush1.msra.mxu0 %v95
    %114 = vmatprep.subr.mxu0 0.0
    %115 = vmatpush1.msra.mxu0 %v96
    %116 = vmatprep.subr.mxu0 0.0
    %117 = vmatpush1.msra.mxu0 0.0
    %118 = vmatprep.subr.mxu0 0.0
    %119 = vmatpush1.msra.mxu0 0.0
    %120 = vmatprep.subr.mxu0 0.0
    %121 = vmatpush1.msra.mxu0 0.0
    %122 = vmatprep.subr.mxu0 0.0
    %123 = vmatpush1.msra.mxu0 0.0
    %124 = vmatprep.subr.mxu0 0.0
    %125 = vmatpush1.msra.mxu0 0.0
    %126 = vmatprep.subr.mxu0 0.0
    %127 = vmatpush1.msra.mxu0 0.0
    %128 = vmatprep.subr.mxu0 0.0
    %129 = vmatpush1.msra.mxu0 0.0
    %130 = vmatprep.subr.mxu0 0.0
    %131 = vmatpush1.msra.mxu0 0.0
    %132 = vmatprep.subr.mxu0 0.0
    %133 = vmatpush1.msra.mxu0 0.0
    %134 = vmatprep.subr.mxu0 0.0
    %135 = vmatpush1.msra.mxu0 0.0
    %136 = vmatprep.subr.mxu0 0.0
    %137 = vmatpush1.msra.mxu0 0.0
    %138 = vmatprep.subr.mxu0 0.0
    %139 = vmatpush1.msra.mxu0 0.0
    %140 = vmatprep.subr.mxu0 0.0
    %141 = vmatpush1.msra.mxu0 0.0
    %142 = vmatprep.subr.mxu0 0.0
    %143 = vmatpush1.msra.mxu0 0.0
    %144 = vmatprep.subr.mxu0 0.0
    %145 = vmatpush1.msra.mxu0 0.0
    %146 = vmatprep.subr.mxu0 0.0
    %147 = vmatpush1.msra.mxu0 0.0
    %148 = vmatprep.subr.mxu0 0.0
    %149 = vmatpush1.msra.mxu0 0.0
    %150 = vmatprep.subr.mxu0 0.0
    %151 = vmatpush1.msra.mxu0 0.0
    %152 = vmatprep.subr.mxu0 0.0
    %153 = vmatpush1.msra.mxu0 0.0
    %154 = vmatprep.subr.mxu0 0.0
    %155 = vmatpush1.msra.mxu0 0.0
    %156 = vmatprep.subr.mxu0 0.0
    %157 = vmatpush1.msra.mxu0 0.0
    %158 = vmatprep.subr.mxu0 0.0
    %159 = vmatpush1.msra.mxu0 0.0
    %160 = vmatprep.subr.mxu0 0.0
    %161 = vmatpush1.msra.mxu0 0.0
    %162 = vmatprep.subr.mxu0 0.0
    %163 = vmatpush1.msra.mxu0 0.0
    %164 = vmatprep.subr.mxu0 0.0
    %165 = vmatpush1.msra.mxu0 0.0
    %166 = vmatprep.subr.mxu0 0.0
    %167 = vmatpush1.msra.mxu0 0.0
    %168 = vmatprep.subr.mxu0 0.0
    %169 = vmatpush1.msra.mxu0 0.0
    %170 = vmatprep.subr.mxu0 0.0
    %171 = vmatpush1.msra.mxu0 0.0
    %172 = vmatprep.mubr.f32.mxu0 0.0
    %173 = vmatmul.mubr.f32.gmra.mrb[0].mxu0 %v103
    %v174 = vpop.f32.mrb[0].mxu0
    %v175 = vadd.f32 %v101, %v174
    %v176 = vpop.f32.mrb[0].mxu0
    %177 = vmatprep.mubr.f32.mxu0 0.0
    %178 = vmatmul.mubr.f32.gmra.mrb[0].mxu0 %v106
    %v179 = vpop.f32.mrb[0].mxu0
    %v180 = vadd.f32 %v101, %v179
    %v181 = vpop.f32.mrb[0].mxu0
    %182 = vdwg.mxu0
    %185 = vrot.lane.b32.xlu0 %v175, 96
    %v186 = vpop.permute.xlu0 %185
    %187 = vrot.lane.b32.xlu0 %v180, 96
    %v188 = vpop.permute.xlu0 %187
    %vm189 = vcmask 130048
    %v190 = vsel %vm189, %v175, 0
    %v192 = vsel %vm189, %v180, 0
    %v194 = vsel %vm189, %v186, 0
    %v196 = vsel %vm189, %v188, 0
    %198 = vmatprep.subr.mxu0 0.0
    %199 = vmatpush1.xpose.msra.mxu0 %v194
    %200 = vmatprep.subr.mxu0 0.0
    %201 = vmatpush1.xpose.msra.mxu0 %v196
    %202 = vmatprep.subr.mxu0 0.0
    %203 = vmatpush1.xpose.msra.mxu0 0.0
    %204 = vmatprep.subr.mxu0 0.0
    %205 = vmatpush1.xpose.msra.mxu0 0.0
    %206 = vmatprep.subr.mxu0 0.0
    %207 = vmatpush1.xpose.msra.mxu0 0.0
    %208 = vmatprep.subr.mxu0 0.0
    %209 = vmatpush1.xpose.msra.mxu0 0.0
    %210 = vmatprep.subr.mxu0 0.0
    %211 = vmatpush1.xpose.msra.mxu0 0.0
    %212 = vmatprep.subr.mxu0 0.0
    %213 = vmatpush1.xpose.msra.mxu0 0.0
    %214 = vmatprep.subr.mxu0 0.0
    %215 = vmatpush1.xpose.msra.mxu0 0.0
    %216 = vmatprep.subr.mxu0 0.0
    %217 = vmatpush1.xpose.msra.mxu0 0.0
    %218 = vmatprep.subr.mxu0 0.0
    %219 = vmatpush1.xpose.msra.mxu0 0.0
    %220 = vmatprep.subr.mxu0 0.0
    %221 = vmatpush1.xpose.msra.mxu0 0.0
    %222 = vmatprep.subr.mxu0 0.0
    %223 = vmatpush1.xpose.msra.mxu0 0.0
    %224 = vmatprep.subr.mxu0 0.0
    %225 = vmatpush1.xpose.msra.mxu0 0.0
    %226 = vmatprep.subr.mxu0 0.0
    %227 = vmatpush1.xpose.msra.mxu0 0.0
    %228 = vmatprep.subr.mxu0 0.0
    %229 = vmatpush1.xpose.msra.mxu0 0.0
    %230 = vmatprep.subr.mxu0 0.0
    %231 = vmatpush1.xpose.msra.mxu0 0.0
    %232 = vmatprep.subr.mxu0 0.0
    %233 = vmatpush1.xpose.msra.mxu0 0.0
    %234 = vmatprep.subr.mxu0 0.0
    %235 = vmatpush1.xpose.msra.mxu0 0.0
    %236 = vmatprep.subr.mxu0 0.0
    %237 = vmatpush1.xpose.msra.mxu0 0.0
    %238 = vmatprep.subr.mxu0 0.0
    %239 = vmatpush1.xpose.msra.mxu0 0.0
    %240 = vmatprep.subr.mxu0 0.0
    %241 = vmatpush1.xpose.msra.mxu0 0.0
    %242 = vmatprep.subr.mxu0 0.0
    %243 = vmatpush1.xpose.msra.mxu0 0.0
    %244 = vmatprep.subr.mxu0 0.0
    %245 = vmatpush1.xpose.msra.mxu0 0.0
    %246 = vmatprep.subr.mxu0 0.0
    %247 = vmatpush1.xpose.msra.mxu0 0.0
    %248 = vmatprep.subr.mxu0 0.0
    %249 = vmatpush1.xpose.msra.mxu0 0.0
    %250 = vmatprep.subr.mxu0 0.0
    %251 = vmatpush1.xpose.msra.mxu0 0.0
    %252 = vmatprep.subr.mxu0 0.0
    %253 = vmatpush1.xpose.msra.mxu0 0.0
    %254 = vmatprep.subr.mxu0 0.0
    %255 = vmatpush1.xpose.msra.mxu0 0.0
    %256 = vmatprep.subr.mxu0 0.0
    %257 = vmatpush1.xpose.msra.mxu0 0.0
    %258 = vmatprep.subr.mxu0 0.0
    %259 = vmatpush1.xpose.msra.mxu0 0.0
    %260 = vmatprep.subr.mxu0 0.0
    %261 = vmatpush1.xpose.msra.mxu0 0.0
    %262 = vmatprep.mubr.f32.mxu0 0.0
    %263 = vmatmul.mubr.f32.gmra.mrb[0].mxu0 %v190
    %v264 = vpop.f32.mrb[0].mxu0
    %v265 = vadd.f32 0.0, %v264
    %v266 = vpop.f32.mrb[0].mxu0
    %267 = vmatprep.mubr.f32.mxu0 0.0
    %268 = vmatmul.mubr.f32.gmra.mrb[0].mxu0 %v192
    %v269 = vpop.f32.mrb[0].mxu0
    %v270 = vadd.f32 0.0, %v269
    %v271 = vpop.f32.mrb[0].mxu0
    %272 = vdwg.mxu0
    %v273 = vmul.f32 %v265, 0.25
    %v274 = vmul.f32 %v270, 0.25
    %v275 = vadd.f32 %v273, %v49
    %v276 = vadd.f32 %v274, %v50
    %v277 = vsel %vm189, %v275, -inf
    %278 = vmax.xlane.f32.xlu0 %v277
    %v279 = vpop.xlane.xlu0 %278
    %v280 = vsel %vm189, %v276, -inf
    %281 = vmax.xlane.f32.xlu0 %v280
    %v282 = vpop.xlane.xlu0 %281
    %v283 = vsub.f32 %v275, %v279
    %v284 = vsub.f32 %v276, %v282
    %v285 = vmul.f32 %v283, 1.442695
    %v286 = vpow.pop %v285
    %v287 = vmul.f32 %v284, 1.442695
    %v288 = vpow.pop %v287
    %v289 = vsel %vm189, %v286, 0.0
    %290 = vadd.xlane.f32.xlu0 %v289
    %v291 = vpop.xlane.xlu0 %290
    %v292 = vsel %vm189, %v288, 0.0
    %293 = vadd.xlane.f32.xlu0 %v292
    %v294 = vpop.xlane.xlu0 %293
    %v295 = vrcp.pop %v291
    %v296 = vrcp.pop %v294
    %v297 = vmul.f32 %v286, %v295
    %v298 = vmul.f32 %v288, %v296
    %299 = vrot.lane.b32.xlu0 %v175, 64
    %v300 = vpop.permute.xlu0 %299
    %301 = vrot.lane.b32.xlu0 %v180, 64
    %v302 = vpop.permute.xlu0 %301
    %v306 = vsel %vm189, %v297, 0
    %v309 = vsel %vm189, %v298, 0
    %311 = vmatprep.subr.mxu0 0.0
    %312 = vmatpush1.msra.mxu0 %v300
    %313 = vmatprep.subr.mxu0 0.0
    %314 = vmatpush1.msra.mxu0 %v302
    %315 = vmatprep.subr.mxu0 0.0
    %316 = vmatpush1.msra.mxu0 0.0
    %317 = vmatprep.subr.mxu0 0.0
    %318 = vmatpush1.msra.mxu0 0.0
    %319 = vmatprep.subr.mxu0 0.0
    %320 = vmatpush1.msra.mxu0 0.0
    %321 = vmatprep.subr.mxu0 0.0
    %322 = vmatpush1.msra.mxu0 0.0
    %323 = vmatprep.subr.mxu0 0.0
    %324 = vmatpush1.msra.mxu0 0.0
    %325 = vmatprep.subr.mxu0 0.0
    %326 = vmatpush1.msra.mxu0 0.0
    %327 = vmatprep.subr.mxu0 0.0
    %328 = vmatpush1.msra.mxu0 0.0
    %329 = vmatprep.subr.mxu0 0.0
    %330 = vmatpush1.msra.mxu0 0.0
    %331 = vmatprep.subr.mxu0 0.0
    %332 = vmatpush1.msra.mxu0 0.0
    %333 = vmatprep.subr.mxu0 0.0
    %334 = vmatpush1.msra.mxu0 0.0
    %335 = vmatprep.subr.mxu0 0.0
    %336 = vmatpush1.msra.mxu0 0.0
    %337 = vmatprep.subr.mxu0 0.0
    %338 = vmatpush1.msra.mxu0 0.0
    %339 = vmatprep.subr.mxu0 0.0
    %340 = vmatpush1.msra.mxu0 0.0
    %341 = vmatprep.subr.mxu0 0.0
    %342 = vmatpush1.msra.mxu0 0.0
    %343 = vmatprep.subr.mxu0 0.0
    %344 = vmatpush1.msra.mxu0 0.0
    %345 = vmatprep.subr.mxu0 0.0
    %346 = vmatpush1.msra.mxu0 0.0
    %347 = vmatprep.subr.mxu0 0.0
    %348 = vmatpush1.msra.mxu0 0.0
    %349 = vmatprep.subr.mxu0 0.0
    %350 = vmatpush1.msra.mxu0 0.0
    %351 = vmatprep.subr.mxu0 0.0
    %352 = vmatpush1.msra.mxu0 0.0
    %353 = vmatprep.subr.mxu0 0.0
    %354 = vmatpush1.msra.mxu0 0.0
    %355 = vmatprep.subr.mxu0 0.0
    %356 = vmatpush1.msra.mxu0 0.0
    %357 = vmatprep.subr.mxu0 0.0
    %358 = vmatpush1.msra.mxu0 0.0
    %359 = vmatprep.subr.mxu0 0.0
    %360 = vmatpush1.msra.mxu0 0.0
    %361 = vmatprep.subr.mxu0 0.0
    %362 = vmatpush1.msra.mxu0 0.0
    %363 = vmatprep.subr.mxu0 0.0
    %364 = vmatpush1.msra.mxu0 0.0
    %365 = vmatprep.subr.mxu0 0.0
    %366 = vmatpush1.msra.mxu0 0.0
    %367 = vmatprep.subr.mxu0 0.0
    %368 = vmatpush1.msra.mxu0 0.0
    %369 = vmatprep.subr.mxu0 0.0
    %370 = vmatpush1.msra.mxu0 0.0
    %371 = vmatprep.subr.mxu0 0.0
    %372 = vmatpush1.msra.mxu0 0.0
    %373 = vmatprep.subr.mxu0 0.0
    %374 = vmatpush1.msra.mxu0 0.0
    %375 = vmatprep.mubr.f32.mxu0 0.0
    %376 = vmatmul.mubr.f32.gmra.mrb[0].mxu0 %v306
    %v377 = vpop.f32.mrb[0].mxu0
    %v378 = vadd.f32 0.0, %v377
    %v379 = vpop.f32.mrb[0].mxu0
    %380 = vmatprep.mubr.f32.mxu0 0.0
    %381 = vmatmul.mubr.f32.gmra.mrb[0].mxu0 %v309
    %v382 = vpop.f32.mrb[0].mxu0
    %v383 = vadd.f32 0.0, %v382
    %v384 = vpop.f32.mrb[0].mxu0
    %385 = vdwg.mxu0
    %386 = vrot.lane.b32.xlu0 %v175, 112
    %v387 = vpop.permute.xlu0 %386
    %388 = vrot.lane.b32.xlu0 %v180, 112
    %v389 = vpop.permute.xlu0 %388
    %390 = vrot.lane.b32.xlu0 %v175, 80
    %v391 = vpop.permute.xlu0 %390
    %392 = vrot.lane.b32.xlu0 %v180, 80
    %v393 = vpop.permute.xlu0 %392
    %v394 = vsel %vm189, %v387, 0
    %v396 = vsel %vm189, %v389, 0
    %v398 = vsel %vm189, %v391, 0
    %v400 = vsel %vm189, %v393, 0
    %402 = vmatprep.subr.mxu0 0.0
    %403 = vmatpush1.xpose.msra.mxu0 %v398
    %404 = vmatprep.subr.mxu0 0.0
    %405 = vmatpush1.xpose.msra.mxu0 %v400
    %406 = vmatprep.subr.mxu0 0.0
    %407 = vmatpush1.xpose.msra.mxu0 0.0
    %408 = vmatprep.subr.mxu0 0.0
    %409 = vmatpush1.xpose.msra.mxu0 0.0
    %410 = vmatprep.subr.mxu0 0.0
    %411 = vmatpush1.xpose.msra.mxu0 0.0
    %412 = vmatprep.subr.mxu0 0.0
    %413 = vmatpush1.xpose.msra.mxu0 0.0
    %414 = vmatprep.subr.mxu0 0.0
    %415 = vmatpush1.xpose.msra.mxu0 0.0
    %416 = vmatprep.subr.mxu0 0.0
    %417 = vmatpush1.xpose.msra.mxu0 0.0
    %418 = vmatprep.subr.mxu0 0.0
    %419 = vmatpush1.xpose.msra.mxu0 0.0
    %420 = vmatprep.subr.mxu0 0.0
    %421 = vmatpush1.xpose.msra.mxu0 0.0
    %422 = vmatprep.subr.mxu0 0.0
    %423 = vmatpush1.xpose.msra.mxu0 0.0
    %424 = vmatprep.subr.mxu0 0.0
    %425 = vmatpush1.xpose.msra.mxu0 0.0
    %426 = vmatprep.subr.mxu0 0.0
    %427 = vmatpush1.xpose.msra.mxu0 0.0
    %428 = vmatprep.subr.mxu0 0.0
    %429 = vmatpush1.xpose.msra.mxu0 0.0
    %430 = vmatprep.subr.mxu0 0.0
    %431 = vmatpush1.xpose.msra.mxu0 0.0
    %432 = vmatprep.subr.mxu0 0.0
    %433 = vmatpush1.xpose.msra.mxu0 0.0
    %434 = vmatprep.subr.mxu0 0.0
    %435 = vmatpush1.xpose.msra.mxu0 0.0
    %436 = vmatprep.subr.mxu0 0.0
    %437 = vmatpush1.xpose.msra.mxu0 0.0
    %438 = vmatprep.subr.mxu0 0.0
    %439 = vmatpush1.xpose.msra.mxu0 0.0
    %440 = vmatprep.subr.mxu0 0.0
    %441 = vmatpush1.xpose.msra.mxu0 0.0
    %442 = vmatprep.subr.mxu0 0.0
    %443 = vmatpush1.xpose.msra.mxu0 0.0
    %444 = vmatprep.subr.mxu0 0.0
    %445 = vmatpush1.xpose.msra.mxu0 0.0
    %446 = vmatprep.subr.mxu0 0.0
    %447 = vmatpush1.xpose.msra.mxu0 0.0
    %448 = vmatprep.subr.mxu0 0.0
    %449 = vmatpush1.xpose.msra.mxu0 0.0
    %450 = vmatprep.subr.mxu0 0.0
    %451 = vmatpush1.xpose.msra.mxu0 0.0
    %452 = vmatprep.subr.mxu0 0.0
    %453 = vmatpush1.xpose.msra.mxu0 0.0
    %454 = vmatprep.subr.mxu0 0.0
    %455 = vmatpush1.xpose.msra.mxu0 0.0
    %456 = vmatprep.subr.mxu0 0.0
    %457 = vmatpush1.xpose.msra.mxu0 0.0
    %458 = vmatprep.subr.mxu0 0.0
    %459 = vmatpush1.xpose.msra.mxu0 0.0
    %460 = vmatprep.subr.mxu0 0.0
    %461 = vmatpush1.xpose.msra.mxu0 0.0
    %462 = vmatprep.subr.mxu0 0.0
    %463 = vmatpush1.xpose.msra.mxu0 0.0
    %464 = vmatprep.subr.mxu0 0.0
    %465 = vmatpush1.xpose.msra.mxu0 0.0
    %466 = vmatprep.mubr.f32.mxu0 0.0
    %467 = vmatmul.mubr.f32.gmra.mrb[0].mxu0 %v394
    %v468 = vpop.f32.mrb[0].mxu0
    %v469 = vadd.f32 0.0, %v468
    %v470 = vpop.f32.mrb[0].mxu0
    %471 = vmatprep.mubr.f32.mxu0 0.0
    %472 = vmatmul.mubr.f32.gmra.mrb[0].mxu0 %v396
    %v473 = vpop.f32.mrb[0].mxu0
    %v474 = vadd.f32 0.0, %v473
    %v475 = vpop.f32.mrb[0].mxu0
    %476 = vdwg.mxu0
    %v477 = vmul.f32 %v469, 0.25
    %v478 = vmul.f32 %v474, 0.25
    %v479 = vadd.f32 %v477, %v49
    %v480 = vadd.f32 %v478, %v50
    %v481 = vsel %vm189, %v479, -inf
    %482 = vmax.xlane.f32.xlu0 %v481
    %v483 = vpop.xlane.xlu0 %482
    %v484 = vsel %vm189, %v480, -inf
    %485 = vmax.xlane.f32.xlu0 %v484
    %v486 = vpop.xlane.xlu0 %485
    %v487 = vsub.f32 %v479, %v483
    %v488 = vsub.f32 %v480, %v486
    %v489 = vmul.f32 %v487, 1.442695
    %v490 = vpow.pop %v489
    %v491 = vmul.f32 %v488, 1.442695
    %v492 = vpow.pop %v491
    %v493 = vsel %vm189, %v490, 0.0
    %494 = vadd.xlane.f32.xlu0 %v493
    %v495 = vpop.xlane.xlu0 %494
    %v496 = vsel %vm189, %v492, 0.0
    %497 = vadd.xlane.f32.xlu0 %v496
    %v498 = vpop.xlane.xlu0 %497
    %v499 = vrcp.pop %v495
    %v500 = vrcp.pop %v498
    %v501 = vmul.f32 %v490, %v499
    %v502 = vmul.f32 %v492, %v500
    %503 = vrot.lane.b32.xlu0 %v175, 48
    %v504 = vpop.permute.xlu0 %503
    %505 = vrot.lane.b32.xlu0 %v180, 48
    %v506 = vpop.permute.xlu0 %505
    %v510 = vsel %vm189, %v501, 0
    %v513 = vsel %vm189, %v502, 0
    %515 = vmatprep.subr.mxu0 0.0
    %516 = vmatpush1.msra.mxu0 %v504
    %517 = vmatprep.subr.mxu0 0.0
    %518 = vmatpush1.msra.mxu0 %v506
    %519 = vmatprep.subr.mxu0 0.0
    %520 = vmatpush1.msra.mxu0 0.0
    %521 = vmatprep.subr.mxu0 0.0
    %522 = vmatpush1.msra.mxu0 0.0
    %523 = vmatprep.subr.mxu0 0.0
    %524 = vmatpush1.msra.mxu0 0.0
    %525 = vmatprep.subr.mxu0 0.0
    %526 = vmatpush1.msra.mxu0 0.0
    %527 = vmatprep.subr.mxu0 0.0
    %528 = vmatpush1.msra.mxu0 0.0
    %529 = vmatprep.subr.mxu0 0.0
    %530 = vmatpush1.msra.mxu0 0.0
    %531 = vmatprep.subr.mxu0 0.0
    %532 = vmatpush1.msra.mxu0 0.0
    %533 = vmatprep.subr.mxu0 0.0
    %534 = vmatpush1.msra.mxu0 0.0
    %535 = vmatprep.subr.mxu0 0.0
    %536 = vmatpush1.msra.mxu0 0.0
    %537 = vmatprep.subr.mxu0 0.0
    %538 = vmatpush1.msra.mxu0 0.0
    %539 = vmatprep.subr.mxu0 0.0
    %540 = vmatpush1.msra.mxu0 0.0
    %541 = vmatprep.subr.mxu0 0.0
    %542 = vmatpush1.msra.mxu0 0.0
    %543 = vmatprep.subr.mxu0 0.0
    %544 = vmatpush1.msra.mxu0 0.0
    %545 = vmatprep.subr.mxu0 0.0
    %546 = vmatpush1.msra.mxu0 0.0
    %547 = vmatprep.subr.mxu0 0.0
    %548 = vmatpush1.msra.mxu0 0.0
    %549 = vmatprep.subr.mxu0 0.0
    %550 = vmatpush1.msra.mxu0 0.0
    %551 = vmatprep.subr.mxu0 0.0
    %552 = vmatpush1.msra.mxu0 0.0
    %553 = vmatprep.subr.mxu0 0.0
    %554 = vmatpush1.msra.mxu0 0.0
    %555 = vmatprep.subr.mxu0 0.0
    %556 = vmatpush1.msra.mxu0 0.0
    %557 = vmatprep.subr.mxu0 0.0
    %558 = vmatpush1.msra.mxu0 0.0
    %559 = vmatprep.subr.mxu0 0.0
    %560 = vmatpush1.msra.mxu0 0.0
    %561 = vmatprep.subr.mxu0 0.0
    %562 = vmatpush1.msra.mxu0 0.0
    %563 = vmatprep.subr.mxu0 0.0
    %564 = vmatpush1.msra.mxu0 0.0
    %565 = vmatprep.subr.mxu0 0.0
    %566 = vmatpush1.msra.mxu0 0.0
    %567 = vmatprep.subr.mxu0 0.0
    %568 = vmatpush1.msra.mxu0 0.0
    %569 = vmatprep.subr.mxu0 0.0
    %570 = vmatpush1.msra.mxu0 0.0
    %571 = vmatprep.subr.mxu0 0.0
    %572 = vmatpush1.msra.mxu0 0.0
    %573 = vmatprep.subr.mxu0 0.0
    %574 = vmatpush1.msra.mxu0 0.0
    %575 = vmatprep.subr.mxu0 0.0
    %576 = vmatpush1.msra.mxu0 0.0
    %577 = vmatprep.subr.mxu0 0.0
    %578 = vmatpush1.msra.mxu0 0.0
    %579 = vmatprep.mubr.f32.mxu0 0.0
    %580 = vmatmul.mubr.f32.gmra.mrb[0].mxu0 %v510
    %v581 = vpop.f32.mrb[0].mxu0
    %v582 = vadd.f32 0.0, %v581
    %v583 = vpop.f32.mrb[0].mxu0
    %584 = vmatprep.mubr.f32.mxu0 0.0
    %585 = vmatmul.mubr.f32.gmra.mrb[0].mxu0 %v513
    %v586 = vpop.f32.mrb[0].mxu0
    %v587 = vadd.f32 0.0, %v586
    %v588 = vpop.f32.mrb[0].mxu0
    %589 = vdwg.mxu0
    %592 = vrot.lane.b32.xlu0 %v582, 16
    %v593 = vpop.permute.xlu0 %592
    %594 = vrot.lane.b32.xlu0 %v587, 16
    %v595 = vpop.permute.xlu0 %594
    %v598 = vsel %vm189, %v378, %v593
    %v599 = vsel %vm189, %v383, %v595
    %v600 = vld [vmem:[#allocation2 + $0x38] sm:$0xff]
    %v601 = vld [vmem:[#allocation2 + $0x40] sm:$0xff]
    %v602 = vld [vmem:[#allocation2 + $0x48] sm:$0xff]
    %v603 = vld [vmem:[#allocation2 + $0x50] sm:$0xff]
    %v605 = vsel %vm53, %v598, 0
    %v608 = vsel %vm53, %v599, 0
    %610 = vmatprep.subr.mxu0 0.0
    %611 = vmatpush1.msra.mxu0 %v600
    %612 = vmatprep.subr.mxu0 0.0
    %613 = vmatpush1.msra.mxu0 %v601
    %614 = vmatprep.subr.mxu0 0.0
    %615 = vmatpush1.msra.mxu0 %v602
    %616 = vmatprep.subr.mxu0 0.0
    %617 = vmatpush1.msra.mxu0 %v603
    %618 = vmatprep.subr.mxu0 0.0
    %619 = vmatpush1.msra.mxu0 0.0
    %620 = vmatprep.subr.mxu0 0.0
    %621 = vmatpush1.msra.mxu0 0.0
    %622 = vmatprep.subr.mxu0 0.0
    %623 = vmatpush1.msra.mxu0 0.0
    %624 = vmatprep.subr.mxu0 0.0
    %625 = vmatpush1.msra.mxu0 0.0
    %626 = vmatprep.subr.mxu0 0.0
    %627 = vmatpush1.msra.mxu0 0.0
    %628 = vmatprep.subr.mxu0 0.0
    %629 = vmatpush1.msra.mxu0 0.0
    %630 = vmatprep.subr.mxu0 0.0
    %631 = vmatpush1.msra.mxu0 0.0
    %632 = vmatprep.subr.mxu0 0.0
    %633 = vmatpush1.msra.mxu0 0.0
    %634 = vmatprep.subr.mxu0 0.0
    %635 = vmatpush1.msra.mxu0 0.0
    %636 = vmatprep.subr.mxu0 0.0
    %637 = vmatpush1.msra.mxu0 0.0
    %638 = vmatprep.subr.mxu0 0.0
    %639 = vmatpush1.msra.mxu0 0.0
    %640 = vmatprep.subr.mxu0 0.0
    %641 = vmatpush1.msra.mxu0 0.0
    %642 = vmatprep.subr.mxu0 0.0
    %643 = vmatpush1.msra.mxu0 0.0
    %644 = vmatprep.subr.mxu0 0.0
    %645 = vmatpush1.msra.mxu0 0.0
    %646 = vmatprep.subr.mxu0 0.0
    %647 = vmatpush1.msra.mxu0 0.0
    %648 = vmatprep.subr.mxu0 0.0
    %649 = vmatpush1.msra.mxu0 0.0
    %650 = vmatprep.subr.mxu0 0.0
    %651 = vmatpush1.msra.mxu0 0.0
    %652 = vmatprep.subr.mxu0 0.0
    %653 = vmatpush1.msra.mxu0 0.0
    %654 = vmatprep.subr.mxu0 0.0
    %655 = vmatpush1.msra.mxu0 0.0
    %656 = vmatprep.subr.mxu0 0.0
    %657 = vmatpush1.msra.mxu0 0.0
    %658 = vmatprep.subr.mxu0 0.0
    %659 = vmatpush1.msra.mxu0 0.0
    %660 = vmatprep.subr.mxu0 0.0
    %661 = vmatpush1.msra.mxu0 0.0
    %662 = vmatprep.subr.mxu0 0.0
    %663 = vmatpush1.msra.mxu0 0.0
    %664 = vmatprep.subr.mxu0 0.0
    %665 = vmatpush1.msra.mxu0 0.0
    %666 = vmatprep.subr.mxu0 0.0
    %667 = vmatpush1.msra.mxu0 0.0
    %668 = vmatprep.subr.mxu0 0.0
    %669 = vmatpush1.msra.mxu0 0.0
    %670 = vmatprep.subr.mxu0 0.0
    %671 = vmatpush1.msra.mxu0 0.0
    %672 = vmatprep.subr.mxu0 0.0
    %673 = vmatpush1.msra.mxu0 0.0
    %674 = vmatprep.mubr.f32.mxu0 0.0
    %675 = vmatmul.mubr.f32.gmra.mrb[0].mxu0 %v605
    %v676 = vpop.f32.mrb[0].mxu0
    %v677 = vadd.f32 0.0, %v676
    %v678 = vpop.f32.mrb[0].mxu0
    %679 = vmatprep.mubr.f32.mxu0 0.0
    %680 = vmatmul.mubr.f32.gmra.mrb[0].mxu0 %v608
    %v681 = vpop.f32.mrb[0].mxu0
    %v682 = vadd.f32 0.0, %v681
    %v683 = vpop.f32.mrb[0].mxu0
    %684 = vdwg.mxu0
    %v685 = vadd.f32 %v32, %v677
    %v686 = vadd.f32 %v33, %v682
    %v687 = vld [vmem:[#allocation2 + $0x58] sm:$0x1]
    %v688 = vlaneseq
    %v689 = vshrl.u32 %v688, 7
    %v690 = vsub.s32 0, %v689
    %v691 = vrot.slane %v687, %v690
    %v692 = vadd.f32 %v685, %v691
    %v693 = vadd.f32 %v686, %v691
    %v694 = vld [vmem:[#allocation2 + $0x60] sm:$0x1]
    %v695 = vld [vmem:[#allocation2 + $0x68] sm:$0x1]
    %v696 = vsel %vm53, %v692, 0.0
    %697 = vadd.xlane.f32.xlu0 %v696
    %v698 = vpop.xlane.xlu0 %697
    %v699 = vsel %vm53, %v693, 0.0
    %700 = vadd.xlane.f32.xlu0 %v699
    %v701 = vpop.xlane.xlu0 %700
    %v702 = vmul.f32 %v698, %v60
    %v703 = vmul.f32 %v701, %v60
    %v704 = vsub.f32 %v692, %v702
    %v705 = vsub.f32 %v693, %v703
    %v706 = vmul.f32 %v704, %v704
    %v707 = vmul.f32 %v705, %v705
    %v708 = vsel %vm53, %v706, 0.0
    %709 = vadd.xlane.f32.xlu0 %v708
    %v710 = vpop.xlane.xlu0 %709
    %v711 = vsel %vm53, %v707, 0.0
    %712 = vadd.xlane.f32.xlu0 %v711
    %v713 = vpop.xlane.xlu0 %712
    %v714 = vmul.f32 %v710, %v60
    %v715 = vmul.f32 %v713, %v60
    %v716 = vadd.f32 %v714, 1e-05
    %v717 = vadd.f32 %v715, 1e-05
    %v718 = vrsqrt.pop %v716
    %v719 = vrsqrt.pop %v717
    %v720 = vmul.f32 %v704, %v718
    %v721 = vmul.f32 %v705, %v719
    %v722 = vlaneseq
    %v723 = vshrl.u32 %v722, 7
    %v724 = vsub.s32 0, %v723
    %v725 = vrot.slane %v694, %v724
    %v726 = vmul.f32 %v720, %v725
    %v727 = vmul.f32 %v721, %v725
    %v728 = vlaneseq
    %v729 = vshrl.u32 %v728, 7
    %v730 = vsub.s32 0, %v729
    %v731 = vrot.slane %v695, %v730
    %v732 = vadd.f32 %v726, %v731
    %v733 = vadd.f32 %v727, %v731
    %v734 = vld [vmem:[#allocation2 + $0x70] sm:$0xff]
    %v735 = vld [vmem:[#allocation2 + $0x78] sm:$0xff]
    %v736 = vld [vmem:[#allocation2 + $0x80] sm:$0xff]
    %v737 = vld [vmem:[#allocation2 + $0x88] sm:$0xff]
    %v738 = vld [vmem:[#allocation2 + $0x90] sm:$0x1]
    %v739 = vlaneseq
    %v740 = vshrl.u32 %v739, 7
    %v741 = vsub.s32 0, %v740
    %v742 = vrot.slane %v738, %v741
    %v744 = vsel %vm53, %v732, 0
    %v747 = vsel %vm53, %v733, 0
    %749 = vmatprep.subr.mxu0 0.0
    %750 = vmatpush1.msra.mxu0 %v734
    %751 = vmatprep.subr.mxu0 0.0
    %752 = vmatpush1.msra.mxu0 %v735
    %753 = vmatprep.subr.mxu0 0.0
    %754 = vmatpush1.msra.mxu0 %v736
    %755 = vmatprep.subr.mxu0 0.0
    %756 = vmatpush1.msra.mxu0 %v737
    %757 = vmatprep.subr.mxu0 0.0
    %758 = vmatpush1.msra.mxu0 0.0
    %759 = vmatprep.subr.mxu0 0.0
    %760 = vmatpush1.msra.mxu0 0.0
    %761 = vmatprep.subr.mxu0 0.0
    %762 = vmatpush1.msra.mxu0 0.0
    %763 = vmatprep.subr.mxu0 0.0
    %764 = vmatpush1.msra.mxu0 0.0
    %765 = vmatprep.subr.mxu0 0.0
    %766 = vmatpush1.msra.mxu0 0.0
    %767 = vmatprep.subr.mxu0 0.0
    %768 = vmatpush1.msra.mxu0 0.0
    %769 = vmatprep.subr.mxu0 0.0
    %770 = vmatpush1.msra.mxu0 0.0
    %771 = vmatprep.subr.mxu0 0.0
    %772 = vmatpush1.msra.mxu0 0.0
    %773 = vmatprep.subr.mxu0 0.0
    %774 = vmatpush1.msra.mxu0 0.0
    %775 = vmatprep.subr.mxu0 0.0
    %776 = vmatpush1.msra.mxu0 0.0
    %777 = vmatprep.subr.mxu0 0.0
    %778 = vmatpush1.msra.mxu0 0.0
    %779 = vmatprep.subr.mxu0 0.0
    %780 = vmatpush1.msra.mxu0 0.0
    %781 = vmatprep.subr.mxu0 0.0
    %782 = vmatpush1.msra.mxu0 0.0
    %783 = vmatprep.subr.mxu0 0.0
    %784 = vmatpush1.msra.mxu0 0.0
    %785 = vmatprep.subr.mxu0 0.0
    %786 = vmatpush1.msra.mxu0 0.0
    %787 = vmatprep.subr.mxu0 0.0
    %788 = vmatpush1.msra.mxu0 0.0
    %789 = vmatprep.subr.mxu0 0.0
    %790 = vmatpush1.msra.mxu0 0.0
    %791 = vmatprep.subr.mxu0 0.0
    %792 = vmatpush1.msra.mxu0 0.0
    %793 = vmatprep.subr.mxu0 0.0
    %794 = vmatpush1.msra.mxu0 0.0
    %795 = vmatprep.subr.mxu0 0.0
    %796 = vmatpush1.msra.mxu0 0.0
    %797 = vmatprep.subr.mxu0 0.0
    %798 = vmatpush1.msra.mxu0 0.0
    %799 = vmatprep.subr.mxu0 0.0
    %800 = vmatpush1.msra.mxu0 0.0
    %801 = vmatprep.subr.mxu0 0.0
    %802 = vmatpush1.msra.mxu0 0.0
    %803 = vmatprep.subr.mxu0 0.0
    %804 = vmatpush1.msra.mxu0 0.0
    %805 = vmatprep.subr.mxu0 0.0
    %806 = vmatpush1.msra.mxu0 0.0
    %807 = vmatprep.subr.mxu0 0.0
    %808 = vmatpush1.msra.mxu0 0.0
    %809 = vmatprep.subr.mxu0 0.0
    %810 = vmatpush1.msra.mxu0 0.0
    %811 = vmatprep.subr.mxu0 0.0
    %812 = vmatpush1.msra.mxu0 0.0
    %813 = vmatprep.mubr.f32.mxu0 0.0
    %814 = vmatmul.mubr.f32.gmra.mrb[0].mxu0 %v744
    %v815 = vpop.f32.mrb[0].mxu0
    %v816 = vadd.f32 %v742, %v815
    %v817 = vpop.f32.mrb[0].mxu0
    %818 = vmatprep.mubr.f32.mxu0 0.0
    %819 = vmatmul.mubr.f32.gmra.mrb[0].mxu0 %v747
    %v820 = vpop.f32.mrb[0].mxu0
    %v821 = vadd.f32 %v742, %v820
    %v822 = vpop.f32.mrb[0].mxu0
    %823 = vdwg.mxu0
    %v824 = vmul.f32 %v816, 0.5
    %v825 = vmul.f32 %v821, 0.5
    %v826 = vmul.f32 %v816, 0.044715
    %v827 = vmul.f32 %v821, 0.044715
    %v828 = vmul.f32 %v826, %v816
    %v829 = vmul.f32 %v827, %v821
    %v830 = vmul.f32 %v828, %v816
    %v831 = vmul.f32 %v829, %v821
    %v832 = vadd.f32 %v816, %v830
    %v833 = vadd.f32 %v821, %v831
    %v834 = vmul.f32 %v832, 0.7978846
    %v835 = vmul.f32 %v833, 0.7978846
    %v836 = vtanh.pop %v834
    %v837 = vtanh.pop %v835
    %v838 = vadd.f32 %v836, 1.0
    %v839 = vadd.f32 %v837, 1.0
    %v840 = vmul.f32 %v824, %v838
    %v841 = vmul.f32 %v825, %v839
    %v842 = vld [vmem:[#allocation2 + $0x98] sm:$0xff]
    %v843 = vld [vmem:[#allocation2 + $0xa0] sm:$0xff]
    %v844 = vld [vmem:[#allocation2 + $0xa8] sm:$0xff]
    %v845 = vld [vmem:[#allocation2 + $0xb0] sm:$0xff]
    %v846 = vld [vmem:[#allocation2 + $0xb8] sm:$0xff]
    %v847 = vld [vmem:[#allocation2 + $0xc0] sm:$0xff]
    %v848 = vld [vmem:[#allocation2 + $0xc8] sm:$0xff]
    %v849 = vld [vmem:[#allocation2 + $0xd0] sm:$0xff]
    %v850 = vld [vmem:[#allocation2 + $0xd8] sm:$0xff]
    %v851 = vld [vmem:[#allocation2 + $0xe0] sm:$0xff]
    %v852 = vld [vmem:[#allocation2 + $0xe8] sm:$0xff]
    %v853 = vld [vmem:[#allocation2 + $0xf0] sm:$0xff]
    %v854 = vld [vmem:[#allocation2 + $0xf8] sm:$0xff]
    %v855 = vld [vmem:[#allocation2 + $0x100] sm:$0xff]
    %v856 = vld [vmem:[#allocation2 + $0x108] sm:$0xff]
    %v857 = vld [vmem:[#allocation2 + $0x110] sm:$0xff]
    %858 = vmatprep.subr.mxu0 0.0
    %859 = vmatpush1.msra.mxu0 %v842
    %860 = vmatprep.subr.mxu0 0.0
    %861 = vmatpush1.msra.mxu0 %v843
    %862 = vmatprep.subr.mxu0 0.0
    %863 = vmatpush1.msra.mxu0 %v844
    %864 = vmatprep.subr.mxu0 0.0
    %865 = vmatpush1.msra.mxu0 %v845
    %866 = vmatprep.subr.mxu0 0.0
    %867 = vmatpush1.msra.mxu0 %v846
    %868 = vmatprep.subr.mxu0 0.0
    %869 = vmatpush1.msra.mxu0 %v847
    %870 = vmatprep.subr.mxu0 0.0
    %871 = vmatpush1.msra.mxu0 %v848
    %872 = vmatprep.subr.mxu0 0.0
    %873 = vmatpush1.msra.mxu0 %v849
    %874 = vmatprep.subr.mxu0 0.0
    %875 = vmatpush1.msra.mxu0 %v850
    %876 = vmatprep.subr.mxu0 0.0
    %877 = vmatpush1.msra.mxu0 %v851
    %878 = vmatprep.subr.mxu0 0.0
    %879 = vmatpush1.msra.mxu0 %v852
    %880 = vmatprep.subr.mxu0 0.0
    %881 = vmatpush1.msra.mxu0 %v853
    %882 = vmatprep.subr.mxu0 0.0
    %883 = vmatpush1.msra.mxu0 %v854
    %884 = vmatprep.subr.mxu0 0.0
    %885 = vmatpush1.msra.mxu0 %v855
    %886 = vmatprep.subr.mxu0 0.0
    %887 = vmatpush1.msra.mxu0 %v856
    %888 = vmatprep.subr.mxu0 0.0
    %889 = vmatpush1.msra.mxu0 %v857
    %890 = vmatprep.subr.mxu0 0.0
    %891 = vmatpush1.msra.mxu0 0.0
    %892 = vmatprep.subr.mxu0 0.0
    %893 = vmatpush1.msra.mxu0 0.0
    %894 = vmatprep.subr.mxu0 0.0
    %895 = vmatpush1.msra.mxu0 0.0
    %896 = vmatprep.subr.mxu0 0.0
    %897 = vmatpush1.msra.mxu0 0.0
    %898 = vmatprep.subr.mxu0 0.0
    %899 = vmatpush1.msra.mxu0 0.0
    %900 = vmatprep.subr.mxu0 0.0
    %901 = vmatpush1.msra.mxu0 0.0
    %902 = vmatprep.subr.mxu0 0.0
    %903 = vmatpush1.msra.mxu0 0.0
    %904 = vmatprep.subr.mxu0 0.0
    %905 = vmatpush1.msra.mxu0 0.0
    %906 = vmatprep.subr.mxu0 0.0
    %907 = vmatpush1.msra.mxu0 0.0
    %908 = vmatprep.subr.mxu0 0.0
    %909 = vmatpush1.msra.mxu0 0.0
    %910 = vmatprep.subr.mxu0 0.0
    %911 = vmatpush1.msra.mxu0 0.0
    %912 = vmatprep.subr.mxu0 0.0
    %913 = vmatpush1.msra.mxu0 0.0
    %914 = vmatprep.subr.mxu0 0.0
    %915 = vmatpush1.msra.mxu0 0.0
    %916 = vmatprep.subr.mxu0 0.0
    %917 = vmatpush1.msra.mxu0 0.0
    %918 = vmatprep.subr.mxu0 0.0
    %919 = vmatpush1.msra.mxu0 0.0
    %920 = vmatprep.subr.mxu0 0.0
    %921 = vmatpush1.msra.mxu0 0.0
    %922 = vmatprep.mubr.f32.mxu0 0.0
    %923 = vmatmul.mubr.f32.gmra.mrb[0].mxu0 %v840
    %v924 = vpop.f32.mrb[0].mxu0
    %v925 = vadd.f32 0.0, %v924
    %v926 = vpop.f32.mrb[0].mxu0
    %927 = vmatprep.mubr.f32.mxu0 0.0
    %928 = vmatmul.mubr.f32.gmra.mrb[0].mxu0 %v841
    %v929 = vpop.f32.mrb[0].mxu0
    %v930 = vadd.f32 0.0, %v929
    %v931 = vpop.f32.mrb[0].mxu0
    %932 = vdwg.mxu0
    %v933 = vadd.f32 %v692, %v925
    %v934 = vadd.f32 %v693, %v930
    %v935 = vld [vmem:[#allocation2 + $0x118] sm:$0x1]
    %v936 = vlaneseq
    %v937 = vshrl.u32 %v936, 7
    %v938 = vsub.s32 0, %v937
    %v939 = vrot.slane %v935, %v938
    %v940 = vadd.f32 %v933, %v939
    %v941 = vadd.f32 %v934, %v939
    %v942 = vld [vmem:[#allocation2 + $0x120] sm:$0x1]
    %v943 = vld [vmem:[#allocation2 + $0x128] sm:$0x1]
    %v944 = vsel %vm53, %v940, 0.0
    %945 = vadd.xlane.f32.xlu0 %v944
    %v946 = vpop.xlane.xlu0 %945
    %v947 = vsel %vm53, %v941, 0.0
    %948 = vadd.xlane.f32.xlu0 %v947
    %v949 = vpop.xlane.xlu0 %948
    %v950 = vmul.f32 %v946, %v60
    %v951 = vmul.f32 %v949, %v60
    %v952 = vsub.f32 %v940, %v950
    %v953 = vsub.f32 %v941, %v951
    %v954 = vmul.f32 %v952, %v952
    %v955 = vmul.f32 %v953, %v953
    %v956 = vsel %vm53, %v954, 0.0
    %957 = vadd.xlane.f32.xlu0 %v956
    %v958 = vpop.xlane.xlu0 %957
    %v959 = vsel %vm53, %v955, 0.0
    %960 = vadd.xlane.f32.xlu0 %v959
    %v961 = vpop.xlane.xlu0 %960
    %v962 = vmul.f32 %v958, %v60
    %v963 = vmul.f32 %v961, %v60
    %v964 = vadd.f32 %v962, 1e-05
    %v965 = vadd.f32 %v963, 1e-05
    %v966 = vrsqrt.pop %v964
    %v967 = vrsqrt.pop %v965
    %v968 = vmul.f32 %v952, %v966
    %v969 = vmul.f32 %v953, %v967
    %v970 = vlaneseq
    %v971 = vshrl.u32 %v970, 7
    %v972 = vsub.s32 0, %v971
    %v973 = vrot.slane %v942, %v972
    %v974 = vmul.f32 %v968, %v973
    %v975 = vmul.f32 %v969, %v973
    %v976 = vlaneseq
    %v977 = vshrl.u32 %v976, 7
    %v978 = vsub.s32 0, %v977
    %v979 = vrot.slane %v943, %v978
    %v980 = vadd.f32 %v974, %v979
    %v981 = vadd.f32 %v975, %v979
    %v982 = vld [vmem:[#allocation2 + $0x130] sm:$0xff]
    %v983 = vld [vmem:[#allocation2 + $0x138] sm:$0xff]
    %v984 = vld [vmem:[#allocation2 + $0x140] sm:$0xff]
    %v985 = vld [vmem:[#allocation2 + $0x148] sm:$0xff]
    %v986 = vld [vmem:[#allocation2 + $0x150] sm:$0x1]
    %v987 = vlaneseq
    %v988 = vshrl.u32 %v987, 7
    %v989 = vsub.s32 0, %v988
    %v990 = vrot.slane %v986, %v989
    %v992 = vsel %vm53, %v980, 0
    %v995 = vsel %vm53, %v981, 0
    %997 = vmatprep.subr.mxu0 0.0
    %998 = vmatpush1.msra.mxu0 %v982
    %999 = vmatprep.subr.mxu0 0.0
    %1000 = vmatpush1.msra.mxu0 %v983
    %1001 = vmatprep.subr.mxu0 0.0
    %1002 = vmatpush1.msra.mxu0 %v984
    %1003 = vmatprep.subr.mxu0 0.0
    %1004 = vmatpush1.msra.mxu0 %v985
    %1005 = vmatprep.subr.mxu0 0.0
    %1006 = vmatpush1.msra.mxu0 0.0
    %1007 = vmatprep.subr.mxu0 0.0
    %1008 = vmatpush1.msra.mxu0 0.0
    %1009 = vmatprep.subr.mxu0 0.0
    %1010 = vmatpush1.msra.mxu0 0.0
    %1011 = vmatprep.subr.mxu0 0.0
    %1012 = vmatpush1.msra.mxu0 0.0
    %1013 = vmatprep.subr.mxu0 0.0
    %1014 = vmatpush1.msra.mxu0 0.0
    %1015 = vmatprep.subr.mxu0 0.0
    %1016 = vmatpush1.msra.mxu0 0.0
    %1017 = vmatprep.subr.mxu0 0.0
    %1018 = vmatpush1.msra.mxu0 0.0
    %1019 = vmatprep.subr.mxu0 0.0
    %1020 = vmatpush1.msra.mxu0 0.0
    %1021 = vmatprep.subr.mxu0 0.0
    %1022 = vmatpush1.msra.mxu0 0.0
    %1023 = vmatprep.subr.mxu0 0.0
    %1024 = vmatpush1.msra.mxu0 0.0
    %1025 = vmatprep.subr.mxu0 0.0
    %1026 = vmatpush1.msra.mxu0 0.0
    %1027 = vmatprep.subr.mxu0 0.0
    %1028 = vmatpush1.msra.mxu0 0.0
    %1029 = vmatprep.subr.mxu0 0.0
    %1030 = vmatpush1.msra.mxu0 0.0
    %1031 = vmatprep.subr.mxu0 0.0
    %1032 = vmatpush1.msra.mxu0 0.0
    %1033 = vmatprep.subr.mxu0 0.0
    %1034 = vmatpush1.msra.mxu0 0.0
    %1035 = vmatprep.subr.mxu0 0.0
    %1036 = vmatpush1.msra.mxu0 0.0
    %1037 = vmatprep.subr.mxu0 0.0
    %1038 = vmatpush1.msra.mxu0 0.0
    %1039 = vmatprep.subr.mxu0 0.0
    %1040 = vmatpush1.msra.mxu0 0.0
    %1041 = vmatprep.subr.mxu0 0.0
    %1042 = vmatpush1.msra.mxu0 0.0
    %1043 = vmatprep.subr.mxu0 0.0
    %1044 = vmatpush1.msra.mxu0 0.0
    %1045 = vmatprep.subr.mxu0 0.0
    %1046 = vmatpush1.msra.mxu0 0.0
    %1047 = vmatprep.subr.mxu0 0.0
    %1048 = vmatpush1.msra.mxu0 0.0
    %1049 = vmatprep.subr.mxu0 0.0
    %1050 = vmatpush1.msra.mxu0 0.0
    %1051 = vmatprep.subr.mxu0 0.0
    %1052 = vmatpush1.msra.mxu0 0.0
    %1053 = vmatprep.subr.mxu0 0.0
    %1054 = vmatpush1.msra.mxu0 0.0
    %1055 = vmatprep.subr.mxu0 0.0
    %1056 = vmatpush1.msra.mxu0 0.0
    %1057 = vmatprep.subr.mxu0 0.0
    %1058 = vmatpush1.msra.mxu0 0.0
    %1059 = vmatprep.subr.mxu0 0.0
    %1060 = vmatpush1.msra.mxu0 0.0
    %1061 = vmatprep.mubr.f32.mxu0 0.0
    %1062 = vmatmul.mubr.f32.gmra.mrb[0].mxu0 %v992
    %v1063 = vpop.f32.mrb[0].mxu0
    %v1064 = vadd.f32 %v990, %v1063
    %v1065 = vpop.f32.mrb[0].mxu0
    %1066 = vmatprep.mubr.f32.mxu0 0.0
    %1067 = vmatmul.mubr.f32.gmra.mrb[0].mxu0 %v995
    %v1068 = vpop.f32.mrb[0].mxu0
    %v1069 = vadd.f32 %v990, %v1068
    %v1070 = vpop.f32.mrb[0].mxu0
    %1071 = vdwg.mxu0
    %1074 = vrot.lane.b32.xlu0 %v1064, 96
    %v1075 = vpop.permute.xlu0 %1074
    %1076 = vrot.lane.b32.xlu0 %v1069, 96
    %v1077 = vpop.permute.xlu0 %1076
    %v1078 = vsel %vm189, %v1064, 0
    %v1080 = vsel %vm189, %v1069, 0
    %v1082 = vsel %vm189, %v1075, 0
    %v1084 = vsel %vm189, %v1077, 0
    %1086 = vmatprep.subr.mxu0 0.0
    %1087 = vmatpush1.xpose.msra.mxu0 %v1082
    %1088 = vmatprep.subr.mxu0 0.0
    %1089 = vmatpush1.xpose.msra.mxu0 %v1084
    %1090 = vmatprep.subr.mxu0 0.0
    %1091 = vmatpush1.xpose.msra.mxu0 0.0
    %1092 = vmatprep.subr.mxu0 0.0
    %1093 = vmatpush1.xpose.msra.mxu0 0.0
    %1094 = vmatprep.subr.mxu0 0.0
    %1095 = vmatpush1.xpose.msra.mxu0 0.0
    %1096 = vmatprep.subr.mxu0 0.0
    %1097 = vmatpush1.xpose.msra.mxu0 0.0
    %1098 = vmatprep.subr.mxu0 0.0
    %1099 = vmatpush1.xpose.msra.mxu0 0.0
    %1100 = vmatprep.subr.mxu0 0.0
    %1101 = vmatpush1.xpose.msra.mxu0 0.0
    %1102 = vmatprep.subr.mxu0 0.0
    %1103 = vmatpush1.xpose.msra.mxu0 0.0
    %1104 = vmatprep.subr.mxu0 0.0
    %1105 = vmatpush1.xpose.msra.mxu0 0.0
    %1106 = vmatprep.subr.mxu0 0.0
    %1107 = vmatpush1.xpose.msra.mxu0 0.0
    %1108 = vmatprep.subr.mxu0 0.0
    %1109 = vmatpush1.xpose.msra.mxu0 0.0
    %1110 = vmatprep.subr.mxu0 0.0
    %1111 = vmatpush1.xpose.msra.mxu0 0.0
    %1112 = vmatprep.subr.mxu0 0.0
    %1113 = vmatpush1.xpose.msra.mxu0 0.0
    %1114 = vmatprep.subr.mxu0 0.0
    %1115 = vmatpush1.xpose.msra.mxu0 0.0
    %1116 = vmatprep.subr.mxu0 0.0
    %1117 = vmatpush1.xpose.msra.mxu0 0.0
    %1118 = vmatprep.subr.mxu0 0.0
    %1119 = vmatpush1.xpose.msra.mxu0 0.0
    %1120 = vmatprep.subr.mxu0 0.0
    %1121 = vmatpush1.xpose.msra.mxu0 0.0
    %1122 = vmatprep.subr.mxu0 0.0
    %1123 = vmatpush1.xpose.msra.mxu0 0.0
    %1124 = vmatprep.subr.mxu0 0.0
    %1125 = vmatpush1.xpose.msra.mxu0 0.0
    %1126 = vmatprep.subr.mxu0 0.0
    %1127 = vmatpush1.xpose.msra.mxu0 0.0
    %1128 = vmatprep.subr.mxu0 0.0
    %1129 = vmatpush1.xpose.msra.mxu0 0.0
    %1130 = vmatprep.subr.mxu0 0.0
    %1131 = vmatpush1.xpose.msra.mxu0 0.0
    %1132 = vmatprep.subr.mxu0 0.0
    %1133 = vmatpush1.xpose.msra.mxu0 0.0
    %1134 = vmatprep.subr.mxu0 0.0
    %1135 = vmatpush1.xpose.msra.mxu0 0.0
    %1136 = vmatprep.subr.mxu0 0.0
    %1137 = vmatpush1.xpose.msra.mxu0 0.0
    %1138 = vmatprep.subr.mxu0 0.0
    %1139 = vmatpush1.xpose.msra.mxu0 0.0
    %1140 = vmatprep.subr.mxu0 0.0
    %1141 = vmatpush1.xpose.msra.mxu0 0.0
    %1142 = vmatprep.subr.mxu0 0.0
    %1143 = vmatpush1.xpose.msra.mxu0 0.0
    %1144 = vmatprep.subr.mxu0 0.0
    %1145 = vmatpush1.xpose.msra.mxu0 0.0
    %1146 = vmatprep.subr.mxu0 0.0
    %1147 = vmatpush1.xpose.msra.mxu0 0.0
    %1148 = vmatprep.subr.mxu0 0.0
    %1149 = vmatpush1.xpose.msra.mxu0 0.0
    %1150 = vmatprep.mubr.f32.mxu0 0.0
    %1151 = vmatmul.mubr.f32.gmra.mrb[0].mxu0 %v1078
    %v1152 = vpop.f32.mrb[0].mxu0
    %v1153 = vadd.f32 0.0, %v1152
    %v1154 = vpop.f32.mrb[0].mxu0
    %1155 = vmatprep.mubr.f32.mxu0 0.0
    %1156 = vmatmul.mubr.f32.gmra.mrb[0].mxu0 %v1080
    %v1157 = vpop.f32.mrb[0].mxu0
    %v1158 = vadd.f32 0.0, %v1157
    %v1159 = vpop.f32.mrb[0].mxu0
    %1160 = vdwg.mxu0
    %v1161 = vmul.f32 %v1153, 0.25
    %v1162 = vmul.f32 %v1158, 0.25
    %v1163 = vadd.f32 %v1161, %v49
    %v1164 = vadd.f32 %v1162, %v50
    %v1165 = vsel %vm189, %v1163, -inf
    %1166 = vmax.xlane.f32.xlu0 %v1165
    %v1167 = vpop.xlane.xlu0 %1166
    %v1168 = vsel %vm189, %v1164, -inf
    %1169 = vmax.xlane.f32.xlu0 %v1168
    %v1170 = vpop.xlane.xlu0 %1169
    %v1171 = vsub.f32 %v1163, %v1167
    %v1172 = vsub.f32 %v1164, %v1170
    %v1173 = vmul.f32 %v1171, 1.442695
    %v1174 = vpow.pop %v1173
    %v1175 = vmul.f32 %v1172, 1.442695
    %v1176 = vpow.pop %v1175
    %v1177 = vsel %vm189, %v1174, 0.0
    %1178 = vadd.xlane.f32.xlu0 %v1177
    %v1179 = vpop.xlane.xlu0 %1178
    %v1180 = vsel %vm189, %v1176, 0.0
    %1181 = vadd.xlane.f32.xlu0 %v1180
    %v1182 = vpop.xlane.xlu0 %1181
    %v1183 = vrcp.pop %v1179
    %v1184 = vrcp.pop %v1182
    %v1185 = vmul.f32 %v1174, %v1183
    %v1186 = vmul.f32 %v1176, %v1184
    %1187 = vrot.lane.b32.xlu0 %v1064, 64
    %v1188 = vpop.permute.xlu0 %1187
    %1189 = vrot.lane.b32.xlu0 %v1069, 64
    %v1190 = vpop.permute.xlu0 %1189
    %v1194 = vsel %vm189, %v1185, 0
    %v1197 = vsel %vm189, %v1186, 0
    %1199 = vmatprep.subr.mxu0 0.0
    %1200 = vmatpush1.msra.mxu0 %v1188
    %1201 = vmatprep.subr.mxu0 0.0
    %1202 = vmatpush1.msra.mxu0 %v1190
    %1203 = vmatprep.subr.mxu0 0.0
    %1204 = vmatpush1.msra.mxu0 0.0
    %1205 = vmatprep.subr.mxu0 0.0
    %1206 = vmatpush1.msra.mxu0 0.0
    %1207 = vmatprep.subr.mxu0 0.0
    %1208 = vmatpush1.msra.mxu0 0.0
    %1209 = vmatprep.subr.mxu0 0.0
    %1210 = vmatpush1.msra.mxu0 0.0
    %1211 = vmatprep.subr.mxu0 0.0
    %1212 = vmatpush1.msra.mxu0 0.0
    %1213 = vmatprep.subr.mxu0 0.0
    %1214 = vmatpush1.msra.mxu0 0.0
    %1215 = vmatprep.subr.mxu0 0.0
    %1216 = vmatpush1.msra.mxu0 0.0
    %1217 = vmatprep.subr.mxu0 0.0
    %1218 = vmatpush1.msra.mxu0 0.0
    %1219 = vmatprep.subr.mxu0 0.0
    %1220 = vmatpush1.msra.mxu0 0.0
    %1221 = vmatprep.subr.mxu0 0.0
    %1222 = vmatpush1.msra.mxu0 0.0
    %1223 = vmatprep.subr.mxu0 0.0
    %1224 = vmatpush1.msra.mxu0 0.0
    %1225 = vmatprep.subr.mxu0 0.0
    %1226 = vmatpush1.msra.mxu0 0.0
    %1227 = vmatprep.subr.mxu0 0.0
    %1228 = vmatpush1.msra.mxu0 0.0
    %1229 = vmatprep.subr.mxu0 0.0
    %1230 = vmatpush1.msra.mxu0 0.0
    %1231 = vmatprep.subr.mxu0 0.0
    %1232 = vmatpush1.msra.mxu0 0.0
    %1233 = vmatprep.subr.mxu0 0.0
    %1234 = vmatpush1.msra.mxu0 0.0
    %1235 = vmatprep.subr.mxu0 0.0
    %1236 = vmatpush1.msra.mxu0 0.0
    %1237 = vmatprep.subr.mxu0 0.0
    %1238 = vmatpush1.msra.mxu0 0.0
    %1239 = vmatprep.subr.mxu0 0.0
    %1240 = vmatpush1.msra.mxu0 0.0
    %1241 = vmatprep.subr.mxu0 0.0
    %1242 = vmatpush1.msra.mxu0 0.0
    %1243 = vmatprep.subr.mxu0 0.0
    %1244 = vmatpush1.msra.mxu0 0.0
    %1245 = vmatprep.subr.mxu0 0.0
    %1246 = vmatpush1.msra.mxu0 0.0
    %1247 = vmatprep.subr.mxu0 0.0
    %1248 = vmatpush1.msra.mxu0 0.0
    %1249 = vmatprep.subr.mxu0 0.0
    %1250 = vmatpush1.msra.mxu0 0.0
    %1251 = vmatprep.subr.mxu0 0.0
    %1252 = vmatpush1.msra.mxu0 0.0
    %1253 = vmatprep.subr.mxu0 0.0
    %1254 = vmatpush1.msra.mxu0 0.0
    %1255 = vmatprep.subr.mxu0 0.0
    %1256 = vmatpush1.msra.mxu0 0.0
    %1257 = vmatprep.subr.mxu0 0.0
    %1258 = vmatpush1.msra.mxu0 0.0
    %1259 = vmatprep.subr.mxu0 0.0
    %1260 = vmatpush1.msra.mxu0 0.0
    %1261 = vmatprep.subr.mxu0 0.0
    %1262 = vmatpush1.msra.mxu0 0.0
    %1263 = vmatprep.mubr.f32.mxu0 0.0
    %1264 = vmatmul.mubr.f32.gmra.mrb[0].mxu0 %v1194
    %v1265 = vpop.f32.mrb[0].mxu0
    %v1266 = vadd.f32 0.0, %v1265
    %v1267 = vpop.f32.mrb[0].mxu0
    %1268 = vmatprep.mubr.f32.mxu0 0.0
    %1269 = vmatmul.mubr.f32.gmra.mrb[0].mxu0 %v1197
    %v1270 = vpop.f32.mrb[0].mxu0
    %v1271 = vadd.f32 0.0, %v1270
    %v1272 = vpop.f32.mrb[0].mxu0
    %1273 = vdwg.mxu0
    %1274 = vrot.lane.b32.xlu0 %v1064, 112
    %v1275 = vpop.permute.xlu0 %1274
    %1276 = vrot.lane.b32.xlu0 %v1069, 112
    %v1277 = vpop.permute.xlu0 %1276
    %1278 = vrot.lane.b32.xlu0 %v1064, 80
    %v1279 = vpop.permute.xlu0 %1278
    %1280 = vrot.lane.b32.xlu0 %v1069, 80
    %v1281 = vpop.permute.xlu0 %1280
    %v1282 = vsel %vm189, %v1275, 0
    %v1284 = vsel %vm189, %v1277, 0
    %v1286 = vsel %vm189, %v1279, 0
    %v1288 = vsel %vm189, %v1281, 0
    %1290 = vmatprep.subr.mxu0 0.0
    %1291 = vmatpush1.xpose.msra.mxu0 %v1286
    %1292 = vmatprep.subr.mxu0 0.0
    %1293 = vmatpush1.xpose.msra.mxu0 %v1288
    %1294 = vmatprep.subr.mxu0 0.0
    %1295 = vmatpush1.xpose.msra.mxu0 0.0
    %1296 = vmatprep.subr.mxu0 0.0
    %1297 = vmatpush1.xpose.msra.mxu0 0.0
    %1298 = vmatprep.subr.mxu0 0.0
    %1299 = vmatpush1.xpose.msra.mxu0 0.0
    %1300 = vmatprep.subr.mxu0 0.0
    %1301 = vmatpush1.xpose.msra.mxu0 0.0
    %1302 = vmatprep.subr.mxu0 0.0
    %1303 = vmatpush1.xpose.msra.mxu0 0.0
    %1304 = vmatprep.subr.mxu0 0.0
    %1305 = vmatpush1.xpose.msra.mxu0 0.0
    %1306 = vmatprep.subr.mxu0 0.0
    %1307 = vmatpush1.xpose.msra.mxu0 0.0
    %1308 = vmatprep.subr.mxu0 0.0
    %1309 = vmatpush1.xpose.msra.mxu0 0.0
    %1310 = vmatprep.subr.mxu0 0.0
    %1311 = vmatpush1.xpose.msra.mxu0 0.0
    %1312 = vmatprep.subr.mxu0 0.0
    %1313 = vmatpush1.xpose.msra.mxu0 0.0
    %1314 = vmatprep.subr.mxu0 0.0
    %1315 = vmatpush1.xpose.msra.mxu0 0.0
    %1316 = vmatprep.subr.mxu0 0.0
    %1317 = vmatpush1.xpose.msra.mxu0 0.0
    %1318 = vmatprep.subr.mxu0 0.0
    %1319 = vmatpush1.xpose.msra.mxu0 0.0
    %1320 = vmatprep.subr.mxu0 0.0
    %1321 = vmatpush1.xpose.msra.mxu0 0.0
    %1322 = vmatprep.subr.mxu0 0.0
    %1323 = vmatpush1.xpose.msra.mxu0 0.0
    %1324 = vmatprep.subr.mxu0 0.0
    %1325 = vmatpush1.xpose.msra.mxu0 0.0
    %1326 = vmatprep.subr.mxu0 0.0
    %1327 = vmatpush1.xpose.msra.mxu0 0.0
    %1328 = vmatprep.subr.mxu0 0.0
    %1329 = vmatpush1.xpose.msra.mxu0 0.0
    %1330 = vmatprep.subr.mxu0 0.0
    %1331 = vmatpush1.xpose.msra.mxu0 0.0
    %1332 = vmatprep.subr.mxu0 0.0
    %1333 = vmatpush1.xpose.msra.mxu0 0.0
    %1334 = vmatprep.subr.mxu0 0.0
    %1335 = vmatpush1.xpose.msra.mxu0 0.0
    %1336 = vmatprep.subr.mxu0 0.0
    %1337 = vmatpush1.xpose.msra.mxu0 0.0
    %1338 = vmatprep.subr.mxu0 0.0
    %1339 = vmatpush1.xpose.msra.mxu0 0.0
    %1340 = vmatprep.subr.mxu0 0.0
    %1341 = vmatpush1.xpose.msra.mxu0 0.0
    %1342 = vmatprep.subr.mxu0 0.0
    %1343 = vmatpush1.xpose.msra.mxu0 0.0
    %1344 = vmatprep.subr.mxu0 0.0
    %1345 = vmatpush1.xpose.msra.mxu0 0.0
    %1346 = vmatprep.subr.mxu0 0.0
    %1347 = vmatpush1.xpose.msra.mxu0 0.0
    %1348 = vmatprep.subr.mxu0 0.0
    %1349 = vmatpush1.xpose.msra.mxu0 0.0
    %1350 = vmatprep.subr.mxu0 0.0
    %1351 = vmatpush1.xpose.msra.mxu0 0.0
    %1352 = vmatprep.subr.mxu0 0.0
    %1353 = vmatpush1.xpose.msra.mxu0 0.0
    %1354 = vmatprep.mubr.f32.mxu0 0.0
    %1355 = vmatmul.mubr.f32.gmra.mrb[0].mxu0 %v1282
    %v1356 = vpop.f32.mrb[0].mxu0
    %v1357 = vadd.f32 0.0, %v1356
    %v1358 = vpop.f32.mrb[0].mxu0
    %1359 = vmatprep.mubr.f32.mxu0 0.0
    %1360 = vmatmul.mubr.f32.gmra.mrb[0].mxu0 %v1284
    %v1361 = vpop.f32.mrb[0].mxu0
    %v1362 = vadd.f32 0.0, %v1361
    %v1363 = vpop.f32.mrb[0].mxu0
    %1364 = vdwg.mxu0
    %v1365 = vmul.f32 %v1357, 0.25
    %v1366 = vmul.f32 %v1362, 0.25
    %v1367 = vadd.f32 %v1365, %v49
    %v1368 = vadd.f32 %v1366, %v50
    %v1369 = vsel %vm189, %v1367, -inf
    %1370 = vmax.xlane.f32.xlu0 %v1369
    %v1371 = vpop.xlane.xlu0 %1370
    %v1372 = vsel %vm189, %v1368, -inf
    %1373 = vmax.xlane.f32.xlu0 %v1372
    %v1374 = vpop.xlane.xlu0 %1373
    %v1375 = vsub.f32 %v1367, %v1371
    %v1376 = vsub.f32 %v1368, %v1374
    %v1377 = vmul.f32 %v1375, 1.442695
    %v1378 = vpow.pop %v1377
    %v1379 = vmul.f32 %v1376, 1.442695
    %v1380 = vpow.pop %v1379
    %v1381 = vsel %vm189, %v1378, 0.0
    %1382 = vadd.xlane.f32.xlu0 %v1381
    %v1383 = vpop.xlane.xlu0 %1382
    %v1384 = vsel %vm189, %v1380, 0.0
    %1385 = vadd.xlane.f32.xlu0 %v1384
    %v1386 = vpop.xlane.xlu0 %1385
    %v1387 = vrcp.pop %v1383
    %v1388 = vrcp.pop %v1386
    %v1389 = vmul.f32 %v1378, %v1387
    %v1390 = vmul.f32 %v1380, %v1388
    %1391 = vrot.lane.b32.xlu0 %v1064, 48
    %v1392 = vpop.permute.xlu0 %1391
    %1393 = vrot.lane.b32.xlu0 %v1069, 48
    %v1394 = vpop.permute.xlu0 %1393
    %v1398 = vsel %vm189, %v1389, 0
    %v1401 = vsel %vm189, %v1390, 0
    %1403 = vmatprep.subr.mxu0 0.0
    %1404 = vmatpush1.msra.mxu0 %v1392
    %1405 = vmatprep.subr.mxu0 0.0
    %1406 = vmatpush1.msra.mxu0 %v1394
    %1407 = vmatprep.subr.mxu0 0.0
    %1408 = vmatpush1.msra.mxu0 0.0
    %1409 = vmatprep.subr.mxu0 0.0
    %1410 = vmatpush1.msra.mxu0 0.0
    %1411 = vmatprep.subr.mxu0 0.0
    %1412 = vmatpush1.msra.mxu0 0.0
    %1413 = vmatprep.subr.mxu0 0.0
    %1414 = vmatpush1.msra.mxu0 0.0
    %1415 = vmatprep.subr.mxu0 0.0
    %1416 = vmatpush1.msra.mxu0 0.0
    %1417 = vmatprep.subr.mxu0 0.0
    %1418 = vmatpush1.msra.mxu0 0.0
    %1419 = vmatprep.subr.mxu0 0.0
    %1420 = vmatpush1.msra.mxu0 0.0
    %1421 = vmatprep.subr.mxu0 0.0
    %1422 = vmatpush1.msra.mxu0 0.0
    %1423 = vmatprep.subr.mxu0 0.0
    %1424 = vmatpush1.msra.mxu0 0.0
    %1425 = vmatprep.subr.mxu0 0.0
    %1426 = vmatpush1.msra.mxu0 0.0
    %1427 = vmatprep.subr.mxu0 0.0
    %1428 = vmatpush1.msra.mxu0 0.0
    %1429 = vmatprep.subr.mxu0 0.0
    %1430 = vmatpush1.msra.mxu0 0.0
    %1431 = vmatprep.subr.mxu0 0.0
    %1432 = vmatpush1.msra.mxu0 0.0
    %1433 = vmatprep.subr.mxu0 0.0
    %1434 = vmatpush1.msra.mxu0 0.0
    %1435 = vmatprep.subr.mxu0 0.0
    %1436 = vmatpush1.msra.mxu0 0.0
    %1437 = vmatprep.subr.mxu0 0.0
    %1438 = vmatpush1.msra.mxu0 0.0
    %1439 = vmatprep.subr.mxu0 0.0
    %1440 = vmatpush1.msra.mxu0 0.0
    %1441 = vmatprep.subr.mxu0 0.0
    %1442 = vmatpush1.msra.mxu0 0.0
    %1443 = vmatprep.subr.mxu0 0.0
    %1444 = vmatpush1.msra.mxu0 0.0
    %1445 = vmatprep.subr.mxu0 0.0
    %1446 = vmatpush1.msra.mxu0 0.0
    %1447 = vmatprep.subr.mxu0 0.0
    %1448 = vmatpush1.msra.mxu0 0.0
    %1449 = vmatprep.subr.mxu0 0.0
    %1450 = vmatpush1.msra.mxu0 0.0
    %1451 = vmatprep.subr.mxu0 0.0
    %1452 = vmatpush1.msra.mxu0 0.0
    %1453 = vmatprep.subr.mxu0 0.0
    %1454 = vmatpush1.msra.mxu0 0.0
    %1455 = vmatprep.subr.mxu0 0.0
    %1456 = vmatpush1.msra.mxu0 0.0
    %1457 = vmatprep.subr.mxu0 0.0
    %1458 = vmatpush1.msra.mxu0 0.0
    %1459 = vmatprep.subr.mxu0 0.0
    %1460 = vmatpush1.msra.mxu0 0.0
    %1461 = vmatprep.subr.mxu0 0.0
    %1462 = vmatpush1.msra.mxu0 0.0
    %1463 = vmatprep.subr.mxu0 0.0
    %1464 = vmatpush1.msra.mxu0 0.0
    %1465 = vmatprep.subr.mxu0 0.0
    %1466 = vmatpush1.msra.mxu0 0.0
    %1467 = vmatprep.mubr.f32.mxu0 0.0
    %1468 = vmatmul.mubr.f32.gmra.mrb[0].mxu0 %v1398
    %v1469 = vpop.f32.mrb[0].mxu0
    %v1470 = vadd.f32 0.0, %v1469
    %v1471 = vpop.f32.mrb[0].mxu0
    %1472 = vmatprep.mubr.f32.mxu0 0.0
    %1473 = vmatmul.mubr.f32.gmra.mrb[0].mxu0 %v1401
    %v1474 = vpop.f32.mrb[0].mxu0
    %v1475 = vadd.f32 0.0, %v1474
    %v1476 = vpop.f32.mrb[0].mxu0
    %1477 = vdwg.mxu0
    %1480 = vrot.lane.b32.xlu0 %v1470, 16
    %v1481 = vpop.permute.xlu0 %1480
    %1482 = vrot.lane.b32.xlu0 %v1475, 16
    %v1483 = vpop.permute.xlu0 %1482
    %v1486 = vsel %vm189, %v1266, %v1481
    %v1487 = vsel %vm189, %v1271, %v1483
    %v1488 = vld [vmem:[#allocation2 + $0x158] sm:$0xff]
    %v1489 = vld [vmem:[#allocation2 + $0x160] sm:$0xff]
    %v1490 = vld [vmem:[#allocation2 + $0x168] sm:$0xff]
    %v1491 = vld [vmem:[#allocation2 + $0x170] sm:$0xff]
    %v1493 = vsel %vm53, %v1486, 0
    %v1496 = vsel %vm53, %v1487, 0
    %1498 = vmatprep.subr.mxu0 0.0
    %1499 = vmatpush1.msra.mxu0 %v1488
    %1500 = vmatprep.subr.mxu0 0.0
    %1501 = vmatpush1.msra.mxu0 %v1489
    %1502 = vmatprep.subr.mxu0 0.0
    %1503 = vmatpush1.msra.mxu0 %v1490
    %1504 = vmatprep.subr.mxu0 0.0
    %1505 = vmatpush1.msra.mxu0 %v1491
    %1506 = vmatprep.subr.mxu0 0.0
    %1507 = vmatpush1.msra.mxu0 0.0
    %1508 = vmatprep.subr.mxu0 0.0
    %1509 = vmatpush1.msra.mxu0 0.0
    %1510 = vmatprep.subr.mxu0 0.0
    %1511 = vmatpush1.msra.mxu0 0.0
    %1512 = vmatprep.subr.mxu0 0.0
    %1513 = vmatpush1.msra.mxu0 0.0
    %1514 = vmatprep.subr.mxu0 0.0
    %1515 = vmatpush1.msra.mxu0 0.0
    %1516 = vmatprep.subr.mxu0 0.0
    %1517 = vmatpush1.msra.mxu0 0.0
    %1518 = vmatprep.subr.mxu0 0.0
    %1519 = vmatpush1.msra.mxu0 0.0
    %1520 = vmatprep.subr.mxu0 0.0
    %1521 = vmatpush1.msra.mxu0 0.0
    %1522 = vmatprep.subr.mxu0 0.0
    %1523 = vmatpush1.msra.mxu0 0.0
    %1524 = vmatprep.subr.mxu0 0.0
    %1525 = vmatpush1.msra.mxu0 0.0
    %1526 = vmatprep.subr.mxu0 0.0
    %1527 = vmatpush1.msra.mxu0 0.0
    %1528 = vmatprep.subr.mxu0 0.0
    %1529 = vmatpush1.msra.mxu0 0.0
    %1530 = vmatprep.subr.mxu0 0.0
    %1531 = vmatpush1.msra.mxu0 0.0
    %1532 = vmatprep.subr.mxu0 0.0
    %1533 = vmatpush1.msra.mxu0 0.0
    %1534 = vmatprep.subr.mxu0 0.0
    %1535 = vmatpush1.msra.mxu0 0.0
    %1536 = vmatprep.subr.mxu0 0.0
    %1537 = vmatpush1.msra.mxu0 0.0
    %1538 = vmatprep.subr.mxu0 0.0
    %1539 = vmatpush1.msra.mxu0 0.0
    %1540 = vmatprep.subr.mxu0 0.0
    %1541 = vmatpush1.msra.mxu0 0.0
    %1542 = vmatprep.subr.mxu0 0.0
    %1543 = vmatpush1.msra.mxu0 0.0
    %1544 = vmatprep.subr.mxu0 0.0
    %1545 = vmatpush1.msra.mxu0 0.0
    %1546 = vmatprep.subr.mxu0 0.0
    %1547 = vmatpush1.msra.mxu0 0.0
    %1548 = vmatprep.subr.mxu0 0.0
    %1549 = vmatpush1.msra.mxu0 0.0
    %1550 = vmatprep.subr.mxu0 0.0
    %1551 = vmatpush1.msra.mxu0 0.0
    %1552 = vmatprep.subr.mxu0 0.0
    %1553 = vmatpush1.msra.mxu0 0.0
    %1554 = vmatprep.subr.mxu0 0.0
    %1555 = vmatpush1.msra.mxu0 0.0
    %1556 = vmatprep.subr.mxu0 0.0
    %1557 = vmatpush1.msra.mxu0 0.0
    %1558 = vmatprep.subr.mxu0 0.0
    %1559 = vmatpush1.msra.mxu0 0.0
    %1560 = vmatprep.subr.mxu0 0.0
    %1561 = vmatpush1.msra.mxu0 0.0
    %1562 = vmatprep.mubr.f32.mxu0 0.0
    %1563 = vmatmul.mubr.f32.gmra.mrb[0].mxu0 %v1493
    %v1564 = vpop.f32.mrb[0].mxu0
    %v1565 = vadd.f32 0.0, %v1564
    %v1566 = vpop.f32.mrb[0].mxu0
    %1567 = vmatprep.mubr.f32.mxu0 0.0
    %1568 = vmatmul.mubr.f32.gmra.mrb[0].mxu0 %v1496
    %v1569 = vpop.f32.mrb[0].mxu0
    %v1570 = vadd.f32 0.0, %v1569
    %v1571 = vpop.f32.mrb[0].mxu0
    %1572 = vdwg.mxu0
    %v1573 = vadd.f32 %v940, %v1565
    %v1574 = vadd.f32 %v941, %v1570
    %v1575 = vld [vmem:[#allocation2 + $0x178] sm:$0x1]
    %v1576 = vlaneseq
    %v1577 = vshrl.u32 %v1576, 7
    %v1578 = vsub.s32 0, %v1577
    %v1579 = vrot.slane %v1575, %v1578
    %v1580 = vadd.f32 %v1573, %v1579
    %v1581 = vadd.f32 %v1574, %v1579
    %v1582 = vld [vmem:[#allocation2 + $0x180] sm:$0x1]
    %v1583 = vld [vmem:[#allocation2 + $0x188] sm:$0x1]
    %v1584 = vsel %vm53, %v1580, 0.0
    %1585 = vadd.xlane.f32.xlu0 %v1584
    %v1586 = vpop.xlane.xlu0 %1585
    %v1587 = vsel %vm53, %v1581, 0.0
    %1588 = vadd.xlane.f32.xlu0 %v1587
    %v1589 = vpop.xlane.xlu0 %1588
    %v1590 = vmul.f32 %v1586, %v60
    %v1591 = vmul.f32 %v1589, %v60
    %v1592 = vsub.f32 %v1580, %v1590
    %v1593 = vsub.f32 %v1581, %v1591
    %v1594 = vmul.f32 %v1592, %v1592
    %v1595 = vmul.f32 %v1593, %v1593
    %v1596 = vsel %vm53, %v1594, 0.0
    %1597 = vadd.xlane.f32.xlu0 %v1596
    %v1598 = vpop.xlane.xlu0 %1597
    %v1599 = vsel %vm53, %v1595, 0.0
    %1600 = vadd.xlane.f32.xlu0 %v1599
    %v1601 = vpop.xlane.xlu0 %1600
    %v1602 = vmul.f32 %v1598, %v60
    %v1603 = vmul.f32 %v1601, %v60
    %v1604 = vadd.f32 %v1602, 1e-05
    %v1605 = vadd.f32 %v1603, 1e-05
    %v1606 = vrsqrt.pop %v1604
    %v1607 = vrsqrt.pop %v1605
    %v1608 = vmul.f32 %v1592, %v1606
    %v1609 = vmul.f32 %v1593, %v1607
    %v1610 = vlaneseq
    %v1611 = vshrl.u32 %v1610, 7
    %v1612 = vsub.s32 0, %v1611
    %v1613 = vrot.slane %v1582, %v1612
    %v1614 = vmul.f32 %v1608, %v1613
    %v1615 = vmul.f32 %v1609, %v1613
    %v1616 = vlaneseq
    %v1617 = vshrl.u32 %v1616, 7
    %v1618 = vsub.s32 0, %v1617
    %v1619 = vrot.slane %v1583, %v1618
    %v1620 = vadd.f32 %v1614, %v1619
    %v1621 = vadd.f32 %v1615, %v1619
    %v1622 = vld [vmem:[#allocation2 + $0x190] sm:$0xff]
    %v1623 = vld [vmem:[#allocation2 + $0x198] sm:$0xff]
    %v1624 = vld [vmem:[#allocation2 + $0x1a0] sm:$0xff]
    %v1625 = vld [vmem:[#allocation2 + $0x1a8] sm:$0xff]
    %v1626 = vld [vmem:[#allocation2 + $0x1b0] sm:$0x1]
    %v1627 = vlaneseq
    %v1628 = vshrl.u32 %v1627, 7
    %v1629 = vsub.s32 0, %v1628
    %v1630 = vrot.slane %v1626, %v1629
    %v1632 = vsel %vm53, %v1620, 0
    %v1635 = vsel %vm53, %v1621, 0
    %1637 = vmatprep.subr.mxu0 0.0
    %1638 = vmatpush1.msra.mxu0 %v1622
    %1639 = vmatprep.subr.mxu0 0.0
    %1640 = vmatpush1.msra.mxu0 %v1623
    %1641 = vmatprep.subr.mxu0 0.0
    %1642 = vmatpush1.msra.mxu0 %v1624
    %1643 = vmatprep.subr.mxu0 0.0
    %1644 = vmatpush1.msra.mxu0 %v1625
    %1645 = vmatprep.subr.mxu0 0.0
    %1646 = vmatpush1.msra.mxu0 0.0
    %1647 = vmatprep.subr.mxu0 0.0
    %1648 = vmatpush1.msra.mxu0 0.0
    %1649 = vmatprep.subr.mxu0 0.0
    %1650 = vmatpush1.msra.mxu0 0.0
    %1651 = vmatprep.subr.mxu0 0.0
    %1652 = vmatpush1.msra.mxu0 0.0
    %1653 = vmatprep.subr.mxu0 0.0
    %1654 = vmatpush1.msra.mxu0 0.0
    %1655 = vmatprep.subr.mxu0 0.0
    %1656 = vmatpush1.msra.mxu0 0.0
    %1657 = vmatprep.subr.mxu0 0.0
    %1658 = vmatpush1.msra.mxu0 0.0
    %1659 = vmatprep.subr.mxu0 0.0
    %1660 = vmatpush1.msra.mxu0 0.0
    %1661 = vmatprep.subr.mxu0 0.0
    %1662 = vmatpush1.msra.mxu0 0.0
    %1663 = vmatprep.subr.mxu0 0.0
    %1664 = vmatpush1.msra.mxu0 0.0
    %1665 = vmatprep.subr.mxu0 0.0
    %1666 = vmatpush1.msra.mxu0 0.0
    %1667 = vmatprep.subr.mxu0 0.0
    %1668 = vmatpush1.msra.mxu0 0.0
    %1669 = vmatprep.subr.mxu0 0.0
    %1670 = vmatpush1.msra.mxu0 0.0
    %1671 = vmatprep.subr.mxu0 0.0
    %1672 = vmatpush1.msra.mxu0 0.0
    %1673 = vmatprep.subr.mxu0 0.0
    %1674 = vmatpush1.msra.mxu0 0.0
    %1675 = vmatprep.subr.mxu0 0.0
    %1676 = vmatpush1.msra.mxu0 0.0
    %1677 = vmatprep.subr.mxu0 0.0
    %1678 = vmatpush1.msra.mxu0 0.0
    %1679 = vmatprep.subr.mxu0 0.0
    %1680 = vmatpush1.msra.mxu0 0.0
    %1681 = vmatprep.subr.mxu0 0.0
    %1682 = vmatpush1.msra.mxu0 0.0
    %1683 = vmatprep.subr.mxu0 0.0
    %1684 = vmatpush1.msra.mxu0 0.0
    %1685 = vmatprep.subr.mxu0 0.0
    %1686 = vmatpush1.msra.mxu0 0.0
    %1687 = vmatprep.subr.mxu0 0.0
    %1688 = vmatpush1.msra.mxu0 0.0
    %1689 = vmatprep.subr.mxu0 0.0
    %1690 = vmatpush1.msra.mxu0 0.0
    %1691 = vmatprep.subr.mxu0 0.0
    %1692 = vmatpush1.msra.mxu0 0.0
    %1693 = vmatprep.subr.mxu0 0.0
    %1694 = vmatpush1.msra.mxu0 0.0
    %1695 = vmatprep.subr.mxu0 0.0
    %1696 = vmatpush1.msra.mxu0 0.0
    %1697 = vmatprep.subr.mxu0 0.0
    %1698 = vmatpush1.msra.mxu0 0.0
    %1699 = vmatprep.subr.mxu0 0.0
    %1700 = vmatpush1.msra.mxu0 0.0
    %1701 = vmatprep.mubr.f32.mxu0 0.0
    %1702 = vmatmul.mubr.f32.gmra.mrb[0].mxu0 %v1632
    %v1703 = vpop.f32.mrb[0].mxu0
    %v1704 = vadd.f32 %v1630, %v1703
    %v1705 = vpop.f32.mrb[0].mxu0
    %1706 = vmatprep.mubr.f32.mxu0 0.0
    %1707 = vmatmul.mubr.f32.gmra.mrb[0].mxu0 %v1635
    %v1708 = vpop.f32.mrb[0].mxu0
    %v1709 = vadd.f32 %v1630, %v1708
    %v1710 = vpop.f32.mrb[0].mxu0
    %1711 = vdwg.mxu0
    %v1712 = vmul.f32 %v1704, 0.5
    %v1713 = vmul.f32 %v1709, 0.5
    %v1714 = vmul.f32 %v1704, 0.044715
    %v1715 = vmul.f32 %v1709, 0.044715
    %v1716 = vmul.f32 %v1714, %v1704
    %v1717 = vmul.f32 %v1715, %v1709
    %v1718 = vmul.f32 %v1716, %v1704
    %v1719 = vmul.f32 %v1717, %v1709
    %v1720 = vadd.f32 %v1704, %v1718
    %v1721 = vadd.f32 %v1709, %v1719
    %v1722 = vmul.f32 %v1720, 0.7978846
    %v1723 = vmul.f32 %v1721, 0.7978846
    %v1724 = vtanh.pop %v1722
    %v1725 = vtanh.pop %v1723
    %v1726 = vadd.f32 %v1724, 1.0
    %v1727 = vadd.f32 %v1725, 1.0
    %v1728 = vmul.f32 %v1712, %v1726
    %v1729 = vmul.f32 %v1713, %v1727
    %v1730 = vld [vmem:[#allocation2 + $0x1b8] sm:$0xff]
    %v1731 = vld [vmem:[#allocation2 + $0x1c0] sm:$0xff]
    %v1732 = vld [vmem:[#allocation2 + $0x1c8] sm:$0xff]
    %v1733 = vld [vmem:[#allocation2 + $0x1d0] sm:$0xff]
    %v1734 = vld [vmem:[#allocation2 + $0x1d8] sm:$0xff]
    %v1735 = vld [vmem:[#allocation2 + $0x1e0] sm:$0xff]
    %v1736 = vld [vmem:[#allocation2 + $0x1e8] sm:$0xff]
    %v1737 = vld [vmem:[#allocation2 + $0x1f0] sm:$0xff]
    %v1738 = vld [vmem:[#allocation2 + $0x1f8] sm:$0xff]
    %v1739 = vld [vmem:[#allocation2 + $0x200] sm:$0xff]
    %v1740 = vld [vmem:[#allocation2 + $0x208] sm:$0xff]
    %v1741 = vld [vmem:[#allocation2 + $0x210] sm:$0xff]
    %v1742 = vld [vmem:[#allocation2 + $0x218] sm:$0xff]
    %v1743 = vld [vmem:[#allocation2 + $0x220] sm:$0xff]
    %v1744 = vld [vmem:[#allocation2 + $0x228] sm:$0xff]
    %v1745 = vld [vmem:[#allocation2 + $0x230] sm:$0xff]
    %1746 = vmatprep.subr.mxu0 0.0
    %1747 = vmatpush1.msra.mxu0 %v1730
    %1748 = vmatprep.subr.mxu0 0.0
    %1749 = vmatpush1.msra.mxu0 %v1731
    %1750 = vmatprep.subr.mxu0 0.0
    %1751 = vmatpush1.msra.mxu0 %v1732
    %1752 = vmatprep.subr.mxu0 0.0
    %1753 = vmatpush1.msra.mxu0 %v1733
    %1754 = vmatprep.subr.mxu0 0.0
    %1755 = vmatpush1.msra.mxu0 %v1734
    %1756 = vmatprep.subr.mxu0 0.0
    %1757 = vmatpush1.msra.mxu0 %v1735
    %1758 = vmatprep.subr.mxu0 0.0
    %1759 = vmatpush1.msra.mxu0 %v1736
    %1760 = vmatprep.subr.mxu0 0.0
    %1761 = vmatpush1.msra.mxu0 %v1737
    %1762 = vmatprep.subr.mxu0 0.0
    %1763 = vmatpush1.msra.mxu0 %v1738
    %1764 = vmatprep.subr.mxu0 0.0
    %1765 = vmatpush1.msra.mxu0 %v1739
    %1766 = vmatprep.subr.mxu0 0.0
    %1767 = vmatpush1.msra.mxu0 %v1740
    %1768 = vmatprep.subr.mxu0 0.0
    %1769 = vmatpush1.msra.mxu0 %v1741
    %1770 = vmatprep.subr.mxu0 0.0
    %1771 = vmatpush1.msra.mxu0 %v1742
    %1772 = vmatprep.subr.mxu0 0.0
    %1773 = vmatpush1.msra.mxu0 %v1743
    %1774 = vmatprep.subr.mxu0 0.0
    %1775 = vmatpush1.msra.mxu0 %v1744
    %1776 = vmatprep.subr.mxu0 0.0
    %1777 = vmatpush1.msra.mxu0 %v1745
    %1778 = vmatprep.subr.mxu0 0.0
    %1779 = vmatpush1.msra.mxu0 0.0
    %1780 = vmatprep.subr.mxu0 0.0
    %1781 = vmatpush1.msra.mxu0 0.0
    %1782 = vmatprep.subr.mxu0 0.0
    %1783 = vmatpush1.msra.mxu0 0.0
    %1784 = vmatprep.subr.mxu0 0.0
    %1785 = vmatpush1.msra.mxu0 0.0
    %1786 = vmatprep.subr.mxu0 0.0
    %1787 = vmatpush1.msra.mxu0 0.0
    %1788 = vmatprep.subr.mxu0 0.0
    %1789 = vmatpush1.msra.mxu0 0.0
    %1790 = vmatprep.subr.mxu0 0.0
    %1791 = vmatpush1.msra.mxu0 0.0
    %1792 = vmatprep.subr.mxu0 0.0
    %1793 = vmatpush1.msra.mxu0 0.0
    %1794 = vmatprep.subr.mxu0 0.0
    %1795 = vmatpush1.msra.mxu0 0.0
    %1796 = vmatprep.subr.mxu0 0.0
    %1797 = vmatpush1.msra.mxu0 0.0
    %1798 = vmatprep.subr.mxu0 0.0
    %1799 = vmatpush1.msra.mxu0 0.0
    %1800 = vmatprep.subr.mxu0 0.0
    %1801 = vmatpush1.msra.mxu0 0.0
    %1802 = vmatprep.subr.mxu0 0.0
    %1803 = vmatpush1.msra.mxu0 0.0
    %1804 = vmatprep.subr.mxu0 0.0
    %1805 = vmatpush1.msra.mxu0 0.0
    %1806 = vmatprep.subr.mxu0 0.0
    %1807 = vmatpush1.msra.mxu0 0.0
    %1808 = vmatprep.subr.mxu0 0.0
    %1809 = vmatpush1.msra.mxu0 0.0
    %1810 = vmatprep.mubr.f32.mxu0 0.0
    %1811 = vmatmul.mubr.f32.gmra.mrb[0].mxu0 %v1728
    %v1812 = vpop.f32.mrb[0].mxu0
    %v1813 = vadd.f32 0.0, %v1812
    %v1814 = vpop.f32.mrb[0].mxu0
    %1815 = vmatprep.mubr.f32.mxu0 0.0
    %1816 = vmatmul.mubr.f32.gmra.mrb[0].mxu0 %v1729
    %v1817 = vpop.f32.mrb[0].mxu0
    %v1818 = vadd.f32 0.0, %v1817
    %v1819 = vpop.f32.mrb[0].mxu0
    %1820 = vdwg.mxu0
    %v1821 = vadd.f32 %v1580, %v1813
    %v1822 = vadd.f32 %v1581, %v1818
    %v1823 = vld [vmem:[#allocation2 + $0x238] sm:$0x1]
    %v1824 = vlaneseq
    %v1825 = vshrl.u32 %v1824, 7
    %v1826 = vsub.s32 0, %v1825
    %v1827 = vrot.slane %v1823, %v1826
    %v1828 = vadd.f32 %v1821, %v1827
    %v1829 = vadd.f32 %v1822, %v1827
    %v1830 = vld [vmem:[#allocation2 + $0x240] sm:$0x1]
    %v1831 = vld [vmem:[#allocation2 + $0x248] sm:$0x1]
    %v1832 = vsel %vm53, %v1828, 0.0
    %1833 = vadd.xlane.f32.xlu0 %v1832
    %v1834 = vpop.xlane.xlu0 %1833
    %v1835 = vsel %vm53, %v1829, 0.0
    %1836 = vadd.xlane.f32.xlu0 %v1835
    %v1837 = vpop.xlane.xlu0 %1836
    %v1838 = vmul.f32 %v1834, %v60
    %v1839 = vmul.f32 %v1837, %v60
    %v1840 = vsub.f32 %v1828, %v1838
    %v1841 = vsub.f32 %v1829, %v1839
    %v1842 = vmul.f32 %v1840, %v1840
    %v1843 = vmul.f32 %v1841, %v1841
    %v1844 = vsel %vm53, %v1842, 0.0
    %1845 = vadd.xlane.f32.xlu0 %v1844
    %v1846 = vpop.xlane.xlu0 %1845
    %v1847 = vsel %vm53, %v1843, 0.0
    %1848 = vadd.xlane.f32.xlu0 %v1847
    %v1849 = vpop.xlane.xlu0 %1848
    %v1850 = vmul.f32 %v1846, %v60
    %v1851 = vmul.f32 %v1849, %v60
    %v1852 = vadd.f32 %v1850, 1e-05
    %v1853 = vadd.f32 %v1851, 1e-05
    %v1854 = vrsqrt.pop %v1852
    %v1855 = vrsqrt.pop %v1853
    %v1856 = vmul.f32 %v1840, %v1854
    %v1857 = vmul.f32 %v1841, %v1855
    %v1858 = vlaneseq
    %v1859 = vshrl.u32 %v1858, 7
    %v1860 = vsub.s32 0, %v1859
    %v1861 = vrot.slane %v1830, %v1860
    %v1862 = vmul.f32 %v1856, %v1861
    %v1863 = vmul.f32 %v1857, %v1861
    %v1864 = vlaneseq
    %v1865 = vshrl.u32 %v1864, 7
    %v1866 = vsub.s32 0, %v1865
    %v1867 = vrot.slane %v1831, %v1866
    %v1868 = vadd.f32 %v1862, %v1867
    %v1869 = vadd.f32 %v1863, %v1867
    %v1870 = vld [vmem:[#allocation2 + $0x250] sm:$0xff]
    %v1871 = vld [vmem:[#allocation2 + $0x258] sm:$0xff]
    %v1872 = vld [vmem:[#allocation2 + $0x260] sm:$0xff]
    %v1873 = vld [vmem:[#allocation2 + $0x268] sm:$0xff]
    %v1875 = vsel %vm53, %v1868, 0
    %v1878 = vsel %vm53, %v1869, 0
    %1880 = vmatprep.subr.mxu0 0.0
    %1881 = vmatpush1.msra.mxu0 %v1870
    %1882 = vmatprep.subr.mxu0 0.0
    %1883 = vmatpush1.msra.mxu0 %v1871
    %1884 = vmatprep.subr.mxu0 0.0
    %1885 = vmatpush1.msra.mxu0 %v1872
    %1886 = vmatprep.subr.mxu0 0.0
    %1887 = vmatpush1.msra.mxu0 %v1873
    %1888 = vmatprep.subr.mxu0 0.0
    %1889 = vmatpush1.msra.mxu0 0.0
    %1890 = vmatprep.subr.mxu0 0.0
    %1891 = vmatpush1.msra.mxu0 0.0
    %1892 = vmatprep.subr.mxu0 0.0
    %1893 = vmatpush1.msra.mxu0 0.0
    %1894 = vmatprep.subr.mxu0 0.0
    %1895 = vmatpush1.msra.mxu0 0.0
    %1896 = vmatprep.subr.mxu0 0.0
    %1897 = vmatpush1.msra.mxu0 0.0
    %1898 = vmatprep.subr.mxu0 0.0
    %1899 = vmatpush1.msra.mxu0 0.0
    %1900 = vmatprep.subr.mxu0 0.0
    %1901 = vmatpush1.msra.mxu0 0.0
    %1902 = vmatprep.subr.mxu0 0.0
    %1903 = vmatpush1.msra.mxu0 0.0
    %1904 = vmatprep.subr.mxu0 0.0
    %1905 = vmatpush1.msra.mxu0 0.0
    %1906 = vmatprep.subr.mxu0 0.0
    %1907 = vmatpush1.msra.mxu0 0.0
    %1908 = vmatprep.subr.mxu0 0.0
    %1909 = vmatpush1.msra.mxu0 0.0
    %1910 = vmatprep.subr.mxu0 0.0
    %1911 = vmatpush1.msra.mxu0 0.0
    %1912 = vmatprep.subr.mxu0 0.0
    %1913 = vmatpush1.msra.mxu0 0.0
    %1914 = vmatprep.subr.mxu0 0.0
    %1915 = vmatpush1.msra.mxu0 0.0
    %1916 = vmatprep.subr.mxu0 0.0
    %1917 = vmatpush1.msra.mxu0 0.0
    %1918 = vmatprep.subr.mxu0 0.0
    %1919 = vmatpush1.msra.mxu0 0.0
    %1920 = vmatprep.subr.mxu0 0.0
    %1921 = vmatpush1.msra.mxu0 0.0
    %1922 = vmatprep.subr.mxu0 0.0
    %1923 = vmatpush1.msra.mxu0 0.0
    %1924 = vmatprep.subr.mxu0 0.0
    %1925 = vmatpush1.msra.mxu0 0.0
    %1926 = vmatprep.subr.mxu0 0.0
    %1927 = vmatpush1.msra.mxu0 0.0
    %1928 = vmatprep.subr.mxu0 0.0
    %1929 = vmatpush1.msra.mxu0 0.0
    %1930 = vmatprep.subr.mxu0 0.0
    %1931 = vmatpush1.msra.mxu0 0.0
    %1932 = vmatprep.subr.mxu0 0.0
    %1933 = vmatpush1.msra.mxu0 0.0
    %1934 = vmatprep.subr.mxu0 0.0
    %1935 = vmatpush1.msra.mxu0 0.0
    %1936 = vmatprep.subr.mxu0 0.0
    %1937 = vmatpush1.msra.mxu0 0.0
    %1938 = vmatprep.subr.mxu0 0.0
    %1939 = vmatpush1.msra.mxu0 0.0
    %1940 = vmatprep.subr.mxu0 0.0
    %1941 = vmatpush1.msra.mxu0 0.0
    %1942 = vmatprep.subr.mxu0 0.0
    %1943 = vmatpush1.msra.mxu0 0.0
    %1944 = vmatprep.mubr.f32.mxu0 0.0
    %1945 = vmatmul.mubr.f32.gmra.mrb[0].mxu0 %v1875
    %v1946 = vpop.f32.mrb[0].mxu0
    %v1947 = vadd.f32 0.0, %v1946
    %v1948 = vpop.f32.mrb[0].mxu0
    %1949 = vmatprep.mubr.f32.mxu0 0.0
    %1950 = vmatmul.mubr.f32.gmra.mrb[0].mxu0 %v1878
    %v1951 = vpop.f32.mrb[0].mxu0
    %v1952 = vadd.f32 0.0, %v1951
    %v1953 = vpop.f32.mrb[0].mxu0
    %1954 = vdwg.mxu0
    %v1955 = vtanh.pop %v1947
    %v1956 = vtanh.pop %v1952
    %v1957 = vld [vmem:[#allocation2 + $0x270] sm:$0xff]
    %v1958 = vld [vmem:[#allocation2 + $0x278] sm:$0xff]
    %1959 = vxpose.xlu0.b32.start [1/16] %v1957, 128
    %1960 = vxpose.xlu0.b32.cont [2/16] %v1958, 128
    %1961 = vxpose.xlu0.b32.cont [3/16] 0.0, 128
    %1962 = vxpose.xlu0.b32.cont [4/16] 0.0, 128
    %1963 = vxpose.xlu0.b32.cont [5/16] 0.0, 128
    %1964 = vxpose.xlu0.b32.cont [6/16] 0.0, 128
    %1965 = vxpose.xlu0.b32.cont [7/16] 0.0, 128
    %1966 = vxpose.xlu0.b32.cont [8/16] 0.0, 128
    %1967 = vxpose.xlu0.b32.cont [9/16] 0.0, 128
    %1968 = vxpose.xlu0.b32.cont [10/16] 0.0, 128
    %1969 = vxpose.xlu0.b32.cont [11/16] 0.0, 128
    %1970 = vxpose.xlu0.b32.cont [12/16] 0.0, 128
    %1971 = vxpose.xlu0.b32.cont [13/16] 0.0, 128
    %1972 = vxpose.xlu0.b32.cont [14/16] 0.0, 128
    %1973 = vxpose.xlu0.b32.cont [15/16] 0.0, 128
    %1974 = vxpose.xlu0.b32.end [16/16] 0.0, 128
    %v1975 = vpop.trf.xlu0
    %v1976 = vpop.trf.xlu0
    %v1977 = vpop.trf.xlu0
    %v1978 = vpop.trf.xlu0
    %v1979 = vpop.trf.xlu0
    %v1980 = vpop.trf.xlu0
    %v1981 = vpop.trf.xlu0
    %v1982 = vpop.trf.xlu0
    %v1983 = vpop.trf.xlu0
    %v1984 = vpop.trf.xlu0
    %v1985 = vpop.trf.xlu0
    %v1986 = vpop.trf.xlu0
    %v1987 = vpop.trf.xlu0
    %v1988 = vpop.trf.xlu0
    %v1989 = vpop.trf.xlu0
    %v1990 = vpop.trf.xlu0
    %v1992 = vsel %vm189, %v1975, 0
    %v1995 = vsel %vm189, %v1955, 0
    %v1998 = vsel %vm189, %v1956, 0
    %2000 = vmatprep.subr.mxu0 0.0
    %2001 = vmatpush1.xpose.msra.mxu0 %v1995
    %2002 = vmatprep.subr.mxu0 0.0
    %2003 = vmatpush1.xpose.msra.mxu0 %v1998
    %2004 = vmatprep.subr.mxu0 0.0
    %2005 = vmatpush1.xpose.msra.mxu0 0.0
    %2006 = vmatprep.subr.mxu0 0.0
    %2007 = vmatpush1.xpose.msra.mxu0 0.0
    %2008 = vmatprep.subr.mxu0 0.0
    %2009 = vmatpush1.xpose.msra.mxu0 0.0
    %2010 = vmatprep.subr.mxu0 0.0
    %2011 = vmatpush1.xpose.msra.mxu0 0.0
    %2012 = vmatprep.subr.mxu0 0.0
    %2013 = vmatpush1.xpose.msra.mxu0 0.0
    %2014 = vmatprep.subr.mxu0 0.0
    %2015 = vmatpush1.xpose.msra.mxu0 0.0
    %2016 = vmatprep.subr.mxu0 0.0
    %2017 = vmatpush1.xpose.msra.mxu0 0.0
    %2018 = vmatprep.subr.mxu0 0.0
    %2019 = vmatpush1.xpose.msra.mxu0 0.0
    %2020 = vmatprep.subr.mxu0 0.0
    %2021 = vmatpush1.xpose.msra.mxu0 0.0
    %2022 = vmatprep.subr.mxu0 0.0
    %2023 = vmatpush1.xpose.msra.mxu0 0.0
    %2024 = vmatprep.subr.mxu0 0.0
    %2025 = vmatpush1.xpose.msra.mxu0 0.0
    %2026 = vmatprep.subr.mxu0 0.0
    %2027 = vmatpush1.xpose.msra.mxu0 0.0
    %2028 = vmatprep.subr.mxu0 0.0
    %2029 = vmatpush1.xpose.msra.mxu0 0.0
    %2030 = vmatprep.subr.mxu0 0.0
    %2031 = vmatpush1.xpose.msra.mxu0 0.0
    %2032 = vmatprep.subr.mxu0 0.0
    %2033 = vmatpush1.xpose.msra.mxu0 0.0
    %2034 = vmatprep.subr.mxu0 0.0
    %2035 = vmatpush1.xpose.msra.mxu0 0.0
    %2036 = vmatprep.subr.mxu0 0.0
    %2037 = vmatpush1.xpose.msra.mxu0 0.0
    %2038 = vmatprep.subr.mxu0 0.0
    %2039 = vmatpush1.xpose.msra.mxu0 0.0
    %2040 = vmatprep.subr.mxu0 0.0
    %2041 = vmatpush1.xpose.msra.mxu0 0.0
    %2042 = vmatprep.subr.mxu0 0.0
    %2043 = vmatpush1.xpose.msra.mxu0 0.0
    %2044 = vmatprep.subr.mxu0 0.0
    %2045 = vmatpush1.xpose.msra.mxu0 0.0
    %2046 = vmatprep.subr.mxu0 0.0
    %2047 = vmatpush1.xpose.msra.mxu0 0.0
    %2048 = vmatprep.subr.mxu0 0.0
    %2049 = vmatpush1.xpose.msra.mxu0 0.0
    %2050 = vmatprep.subr.mxu0 0.0
    %2051 = vmatpush1.xpose.msra.mxu0 0.0
    %2052 = vmatprep.subr.mxu0 0.0
    %2053 = vmatpush1.xpose.msra.mxu0 0.0
    %2054 = vmatprep.subr.mxu0 0.0
    %2055 = vmatpush1.xpose.msra.mxu0 0.0
    %2056 = vmatprep.subr.mxu0 0.0
    %2057 = vmatpush1.xpose.msra.mxu0 0.0
    %2058 = vmatprep.subr.mxu0 0.0
    %2059 = vmatpush1.xpose.msra.mxu0 0.0
    %2060 = vmatprep.subr.mxu0 0.0
    %2061 = vmatpush1.xpose.msra.mxu0 0.0
    %2062 = vmatprep.subr.mxu0 0.0
    %2063 = vmatpush1.xpose.msra.mxu0 0.0
    %2064 = vmatprep.mubr.f32.mxu0 0.0
    %2065 = vmatmul.mubr.f32.gmra.mrb[0].mxu0 %v1992
    %v2066 = vpop.f32.mrb[0].mxu0
    %v2067 = vadd.f32 0.0, %v2066
    %v2068 = vpop.f32.mrb[0].mxu0
    %2069 = vdwg.mxu0
    %v2070 = vlaneseq
    %v2071 = vshrl.u32 %v2070, 7
    %v2072 = vsub.s32 0, %v2071
    %v2073 = vrot.slane %v34, %v2072
    %v2074 = vadd.f32 %v2067, %v2073
    %vm2075 = vcmask 60416
    %v2076 = vsel %vm2075, %v2074, -inf
    %2077 = vmax.xlane.f32.xlu0 %v2076
    %v2078 = vpop.xlane.xlu0 %2077
    %v2079 = vsub.f32 %v2074, %v2078
    %v2080 = vmul.f32 %v2079, 1.442695
    %v2081 = vpow.pop %v2080
    %v2082 = vsel %vm2075, %v2081, 0.0
    %2083 = vadd.xlane.f32.xlu0 %v2082
    %v2084 = vpop.xlane.xlu0 %2083
    %v2085 = vrcp.pop %v2084
    %v2086 = vmul.f32 %v2081, %v2085
    %vm2087 = vcmask 64512
    %v2089 = vsel %vm2087, %v2086, 0
    %2091 = vmatprep.subr.mxu0 0.0
    %2092 = vmatpush1.msra.mxu0 %v1868
    %2093 = vmatprep.subr.mxu0 0.0
    %2094 = vmatpush1.msra.mxu0 0.0
    %2095 = vmatprep.subr.mxu0 0.0
    %2096 = vmatpush1.msra.mxu0 0.0
    %2097 = vmatprep.subr.mxu0 0.0
    %2098 = vmatpush1.msra.mxu0 0.0
    %2099 = vmatprep.subr.mxu0 0.0
    %2100 = vmatpush1.msra.mxu0 0.0
    %2101 = vmatprep.subr.mxu0 0.0
    %2102 = vmatpush1.msra.mxu0 0.0
    %2103 = vmatprep.subr.mxu0 0.0
    %2104 = vmatpush1.msra.mxu0 0.0
    %2105 = vmatprep.subr.mxu0 0.0
    %2106 = vmatpush1.msra.mxu0 0.0
    %2107 = vmatprep.subr.mxu0 0.0
    %2108 = vmatpush1.msra.mxu0 0.0
    %2109 = vmatprep.subr.mxu0 0.0
    %2110 = vmatpush1.msra.mxu0 0.0
    %2111 = vmatprep.subr.mxu0 0.0
    %2112 = vmatpush1.msra.mxu0 0.0
    %2113 = vmatprep.subr.mxu0 0.0
    %2114 = vmatpush1.msra.mxu0 0.0
    %2115 = vmatprep.subr.mxu0 0.0
    %2116 = vmatpush1.msra.mxu0 0.0
    %2117 = vmatprep.subr.mxu0 0.0
    %2118 = vmatpush1.msra.mxu0 0.0
    %2119 = vmatprep.subr.mxu0 0.0
    %2120 = vmatpush1.msra.mxu0 0.0
    %2121 = vmatprep.subr.mxu0 0.0
    %2122 = vmatpush1.msra.mxu0 0.0
    %2123 = vmatprep.subr.mxu0 0.0
    %2124 = vmatpush1.msra.mxu0 0.0
    %2125 = vmatprep.subr.mxu0 0.0
    %2126 = vmatpush1.msra.mxu0 0.0
    %2127 = vmatprep.subr.mxu0 0.0
    %2128 = vmatpush1.msra.mxu0 0.0
    %2129 = vmatprep.subr.mxu0 0.0
    %2130 = vmatpush1.msra.mxu0 0.0
    %2131 = vmatprep.subr.mxu0 0.0
    %2132 = vmatpush1.msra.mxu0 0.0
    %2133 = vmatprep.subr.mxu0 0.0
    %2134 = vmatpush1.msra.mxu0 0.0
    %2135 = vmatprep.subr.mxu0 0.0
    %2136 = vmatpush1.msra.mxu0 0.0
    %2137 = vmatprep.subr.mxu0 0.0
    %2138 = vmatpush1.msra.mxu0 0.0
    %2139 = vmatprep.subr.mxu0 0.0
    %2140 = vmatpush1.msra.mxu0 0.0
    %2141 = vmatprep.subr.mxu0 0.0
    %2142 = vmatpush1.msra.mxu0 0.0
    %2143 = vmatprep.subr.mxu0 0.0
    %2144 = vmatpush1.msra.mxu0 0.0
    %2145 = vmatprep.subr.mxu0 0.0
    %2146 = vmatpush1.msra.mxu0 0.0
    %2147 = vmatprep.subr.mxu0 0.0
    %2148 = vmatpush1.msra.mxu0 0.0
    %2149 = vmatprep.subr.mxu0 0.0
    %2150 = vmatpush1.msra.mxu0 0.0
    %2151 = vmatprep.subr.mxu0 0.0
    %2152 = vmatpush1.msra.mxu0 0.0
    %2153 = vmatprep.subr.mxu0 0.0
    %2154 = vmatpush1.msra.mxu0 0.0
    %2155 = vmatprep.mubr.f32.mxu0 0.0
    %2156 = vmatmul.mubr.f32.gmra.mrb[0].mxu0 %v2089
    %v2157 = vpop.f32.mrb[0].mxu0
    %v2158 = vadd.f32 0.0, %v2157
    %v2159 = vpop.f32.mrb[0].mxu0
    %2160 = vdwg.mxu0
    %v2162 = vrot.slane %v2158, 1
    %2163 = vrot.lane.b32.xlu0 %v2162, 32
    %v2164 = vpop.permute.xlu0 %2163
    %v2166 = vrot.slane %v2158, 2
    %2167 = vrot.lane.b32.xlu0 %v2166, 64
    %v2168 = vpop.permute.xlu0 %2167
    %v2170 = vrot.slane %v2158, 3
    %2171 = vrot.lane.b32.xlu0 %v2170, 96
    %v2172 = vpop.permute.xlu0 %2171
    %v2174 = vsel %vm53, %v2158, %v2164
    %vm2175 = vcmask 523264
    %v2176 = vsel %vm2175, %v2174, %v2168
    %vm2177 = vcmask 785408
    %v2178 = vsel %vm2177, %v2176, %v2172
    %v2179 = vlaneseq
    %v2180 = vshrl.u32 %v2179, 7
    %v2181 = vsub.s32 1, %v2180
    %v2182 = vrot.slane %v34, %v2181
    %2184 = vrot.lane.b32.xlu0 %v2182, 8
    %v2185 = vpop.permute.xlu0 %2184
    %v2187 = vadd.f32 %v2067, %v2185
    %vm2188 = vcmask 126016
    %v2189 = vsel %vm2188, %v2187, -inf
    %2190 = vmax.xlane.f32.xlu0 %v2189
    %v2191 = vpop.xlane.xlu0 %2190
    %v2192 = vsub.f32 %v2187, %v2191
    %v2193 = vmul.f32 %v2192, 1.442695
    %v2194 = vpow.pop %v2193
    %2196 = vrot.lane.b32.xlu0 %v2194, 120
    %v2197 = vpop.permute.xlu0 %2196
    %v2199 = vsel %vm2075, %v2197, 0.0
    %2200 = vadd.xlane.f32.xlu0 %v2199
    %v2201 = vpop.xlane.xlu0 %2200
    %v2202 = vrcp.pop %v2201
    %v2203 = vmul.f32 %v2194, %v2202
    %2205 = vrot.lane.b32.xlu0 %v2203, 120
    %v2206 = vpop.permute.xlu0 %2205
    %v2207 = vsel %vm2087, %v2206, 0
    %2209 = vmatprep.subr.mxu0 0.0
    %2210 = vmatpush1.msra.mxu0 %v1869
    %2211 = vmatprep.subr.mxu0 0.0
    %2212 = vmatpush1.msra.mxu0 0.0
    %2213 = vmatprep.subr.mxu0 0.0
    %2214 = vmatpush1.msra.mxu0 0.0
    %2215 = vmatprep.subr.mxu0 0.0
    %2216 = vmatpush1.msra.mxu0 0.0
    %2217 = vmatprep.subr.mxu0 0.0
    %2218 = vmatpush1.msra.mxu0 0.0
    %2219 = vmatprep.subr.mxu0 0.0
    %2220 = vmatpush1.msra.mxu0 0.0
    %2221 = vmatprep.subr.mxu0 0.0
    %2222 = vmatpush1.msra.mxu0 0.0
    %2223 = vmatprep.subr.mxu0 0.0
    %2224 = vmatpush1.msra.mxu0 0.0
    %2225 = vmatprep.subr.mxu0 0.0
    %2226 = vmatpush1.msra.mxu0 0.0
    %2227 = vmatprep.subr.mxu0 0.0
    %2228 = vmatpush1.msra.mxu0 0.0
    %2229 = vmatprep.subr.mxu0 0.0
    %2230 = vmatpush1.msra.mxu0 0.0
    %2231 = vmatprep.subr.mxu0 0.0
    %2232 = vmatpush1.msra.mxu0 0.0
    %2233 = vmatprep.subr.mxu0 0.0
    %2234 = vmatpush1.msra.mxu0 0.0
    %2235 = vmatprep.subr.mxu0 0.0
    %2236 = vmatpush1.msra.mxu0 0.0
    %2237 = vmatprep.subr.mxu0 0.0
    %2238 = vmatpush1.msra.mxu0 0.0
    %2239 = vmatprep.subr.mxu0 0.0
    %2240 = vmatpush1.msra.mxu0 0.0
    %2241 = vmatprep.subr.mxu0 0.0
    %2242 = vmatpush1.msra.mxu0 0.0
    %2243 = vmatprep.subr.mxu0 0.0
    %2244 = vmatpush1.msra.mxu0 0.0
    %2245 = vmatprep.subr.mxu0 0.0
    %2246 = vmatpush1.msra.mxu0 0.0
    %2247 = vmatprep.subr.mxu0 0.0
    %2248 = vmatpush1.msra.mxu0 0.0
    %2249 = vmatprep.subr.mxu0 0.0
    %2250 = vmatpush1.msra.mxu0 0.0
    %2251 = vmatprep.subr.mxu0 0.0
    %2252 = vmatpush1.msra.mxu0 0.0
    %2253 = vmatprep.subr.mxu0 0.0
    %2254 = vmatpush1.msra.mxu0 0.0
    %2255 = vmatprep.subr.mxu0 0.0
    %2256 = vmatpush1.msra.mxu0 0.0
    %2257 = vmatprep.subr.mxu0 0.0
    %2258 = vmatpush1.msra.mxu0 0.0
    %2259 = vmatprep.subr.mxu0 0.0
    %2260 = vmatpush1.msra.mxu0 0.0
    %2261 = vmatprep.subr.mxu0 0.0
    %2262 = vmatpush1.msra.mxu0 0.0
    %2263 = vmatprep.subr.mxu0 0.0
    %2264 = vmatpush1.msra.mxu0 0.0
    %2265 = vmatprep.subr.mxu0 0.0
    %2266 = vmatpush1.msra.mxu0 0.0
    %2267 = vmatprep.subr.mxu0 0.0
    %2268 = vmatpush1.msra.mxu0 0.0
    %2269 = vmatprep.subr.mxu0 0.0
    %2270 = vmatpush1.msra.mxu0 0.0
    %2271 = vmatprep.subr.mxu0 0.0
    %2272 = vmatpush1.msra.mxu0 0.0
    %2273 = vmatprep.mubr.f32.mxu0 0.0
    %2274 = vmatmul.mubr.f32.gmra.mrb[0].mxu0 %v2207
    %v2275 = vpop.f32.mrb[0].mxu0
    %v2276 = vadd.f32 0.0, %v2275
    %v2277 = vpop.f32.mrb[0].mxu0
    %2278 = vdwg.mxu0
    %v2280 = vrot.slane %v2276, 1
    %2281 = vrot.lane.b32.xlu0 %v2280, 32
    %v2282 = vpop.permute.xlu0 %2281
    %v2284 = vrot.slane %v2276, 2
    %2285 = vrot.lane.b32.xlu0 %v2284, 64
    %v2286 = vpop.permute.xlu0 %2285
    %v2288 = vrot.slane %v2276, 3
    %2289 = vrot.lane.b32.xlu0 %v2288, 96
    %v2290 = vpop.permute.xlu0 %2289
    %v2292 = vsel %vm53, %v2276, %v2282
    %v2293 = vsel %vm2175, %v2292, %v2286
    %v2294 = vsel %vm2177, %v2293, %v2290
    %v2296 = vrot.slane %v2294, 7
    %vm2298 = vcmask 1040384
    %v2299 = vsel %vm2298, %v2178, %v2296
    %v2300 = vld [vmem:[#allocation2 + $0x280] sm:$0xff]
    %v2301 = vld [vmem:[#allocation2 + $0x288] sm:$0xff]
    %v2302 = vld [vmem:[#allocation2 + $0x290] sm:$0xff]
    %v2303 = vld [vmem:[#allocation2 + $0x298] sm:$0xff]
    %v2304 = vld [vmem:[#allocation2 + $0x2a0] sm:$0xff]
    %v2305 = vld [vmem:[#allocation2 + $0x2a8] sm:$0xff]
    %v2306 = vld [vmem:[#allocation2 + $0x2b0] sm:$0xff]
    %v2307 = vld [vmem:[#allocation2 + $0x2b8] sm:$0xff]
    %v2308 = vld [vmem:[#allocation2 + $0x2c0] sm:$0xff]
    %v2309 = vld [vmem:[#allocation2 + $0x2c8] sm:$0xff]
    %v2310 = vld [vmem:[#allocation2 + $0x2d0] sm:$0xff]
    %v2311 = vld [vmem:[#allocation2 + $0x2d8] sm:$0xff]
    %v2312 = vld [vmem:[#allocation2 + $0x2e0] sm:$0xff]
    %v2313 = vld [vmem:[#allocation2 + $0x2e8] sm:$0xff]
    %v2314 = vld [vmem:[#allocation2 + $0x2f0] sm:$0xff]
    %v2315 = vld [vmem:[#allocation2 + $0x2f8] sm:$0xff]
    %v2316 = vld [vmem:[#allocation2 + $0x300] sm:$0x1]
    %v2317 = vlaneseq
    %v2318 = vshrl.u32 %v2317, 7
    %v2319 = vsub.s32 0, %v2318
    %v2320 = vrot.slane %v2316, %v2319
    %2321 = vmatprep.subr.mxu0 0.0
    %2322 = vmatpush1.msra.mxu0 %v2300
    %2323 = vmatprep.subr.mxu0 0.0
    %2324 = vmatpush1.msra.mxu0 %v2301
    %2325 = vmatprep.subr.mxu0 0.0
    %2326 = vmatpush1.msra.mxu0 %v2302
    %2327 = vmatprep.subr.mxu0 0.0
    %2328 = vmatpush1.msra.mxu0 %v2303
    %2329 = vmatprep.subr.mxu0 0.0
    %2330 = vmatpush1.msra.mxu0 %v2304
    %2331 = vmatprep.subr.mxu0 0.0
    %2332 = vmatpush1.msra.mxu0 %v2305
    %2333 = vmatprep.subr.mxu0 0.0
    %2334 = vmatpush1.msra.mxu0 %v2306
    %2335 = vmatprep.subr.mxu0 0.0
    %2336 = vmatpush1.msra.mxu0 %v2307
    %2337 = vmatprep.subr.mxu0 0.0
    %2338 = vmatpush1.msra.mxu0 %v2308
    %2339 = vmatprep.subr.mxu0 0.0
    %2340 = vmatpush1.msra.mxu0 %v2309
    %2341 = vmatprep.subr.mxu0 0.0
    %2342 = vmatpush1.msra.mxu0 %v2310
    %2343 = vmatprep.subr.mxu0 0.0
    %2344 = vmatpush1.msra.mxu0 %v2311
    %2345 = vmatprep.subr.mxu0 0.0
    %2346 = vmatpush1.msra.mxu0 %v2312
    %2347 = vmatprep.subr.mxu0 0.0
    %2348 = vmatpush1.msra.mxu0 %v2313
    %2349 = vmatprep.subr.mxu0 0.0
    %2350 = vmatpush1.msra.mxu0 %v2314
    %2351 = vmatprep.subr.mxu0 0.0
    %2352 = vmatpush1.msra.mxu0 %v2315
    %2353 = vmatprep.subr.mxu0 0.0
    %2354 = vmatpush1.msra.mxu0 0.0
    %2355 = vmatprep.subr.mxu0 0.0
    %2356 = vmatpush1.msra.mxu0 0.0
    %2357 = vmatprep.subr.mxu0 0.0
    %2358 = vmatpush1.msra.mxu0 0.0
    %2359 = vmatprep.subr.mxu0 0.0
    %2360 = vmatpush1.msra.mxu0 0.0
    %2361 = vmatprep.subr.mxu0 0.0
    %2362 = vmatpush1.msra.mxu0 0.0
    %2363 = vmatprep.subr.mxu0 0.0
    %2364 = vmatpush1.msra.mxu0 0.0
    %2365 = vmatprep.subr.mxu0 0.0
    %2366 = vmatpush1.msra.mxu0 0.0
    %2367 = vmatprep.subr.mxu0 0.0
    %2368 = vmatpush1.msra.mxu0 0.0
    %2369 = vmatprep.subr.mxu0 0.0
    %2370 = vmatpush1.msra.mxu0 0.0
    %2371 = vmatprep.subr.mxu0 0.0
    %2372 = vmatpush1.msra.mxu0 0.0
    %2373 = vmatprep.subr.mxu0 0.0
    %2374 = vmatpush1.msra.mxu0 0.0
    %2375 = vmatprep.subr.mxu0 0.0
    %2376 = vmatpush1.msra.mxu0 0.0
    %2377 = vmatprep.subr.mxu0 0.0
    %2378 = vmatpush1.msra.mxu0 0.0
    %2379 = vmatprep.subr.mxu0 0.0
    %2380 = vmatpush1.msra.mxu0 0.0
    %2381 = vmatprep.subr.mxu0 0.0
    %2382 = vmatpush1.msra.mxu0 0.0
    %2383 = vmatprep.subr.mxu0 0.0
    %2384 = vmatpush1.msra.mxu0 0.0
    %2385 = vmatprep.mubr.f32.mxu0 0.0
    %2386 = vmatmul.mubr.f32.gmra.mrb[0].mxu0 %v2299
    %v2387 = vpop.f32.mrb[0].mxu0
    %v2388 = vadd.f32 %v2320, %v2387
    %v2389 = vpop.f32.mrb[0].mxu0
    %2390 = vdwg.mxu0
    %v2391 = vtanh.pop %v2388
    %v2392 = vld [vmem:[#allocation2 + $0x308] sm:$0xff]
    %v2393 = vld [vmem:[#allocation2 + $0x310] sm:$0xff]
    %v2394 = vld [vmem:[#allocation2 + $0x318] sm:$0xff]
    %v2395 = vld [vmem:[#allocation2 + $0x320] sm:$0xff]
    %v2396 = vld [vmem:[#allocation2 + $0x328] sm:$0x1]
    %v2397 = vlaneseq
    %v2398 = vshrl.u32 %v2397, 7
    %v2399 = vsub.s32 0, %v2398
    %v2400 = vrot.slane %v2396, %v2399
    %v2402 = vsel %vm53, %v2391, 0
    %2404 = vmatprep.subr.mxu0 0.0
    %2405 = vmatpush1.msra.mxu0 %v2392
    %2406 = vmatprep.subr.mxu0 0.0
    %2407 = vmatpush1.msra.mxu0 %v2393
    %2408 = vmatprep.subr.mxu0 0.0
    %2409 = vmatpush1.msra.mxu0 %v2394
    %2410 = vmatprep.subr.mxu0 0.0
    %2411 = vmatpush1.msra.mxu0 %v2395
    %2412 = vmatprep.subr.mxu0 0.0
    %2413 = vmatpush1.msra.mxu0 0.0
    %2414 = vmatprep.subr.mxu0 0.0
    %2415 = vmatpush1.msra.mxu0 0.0
    %2416 = vmatprep.subr.mxu0 0.0
    %2417 = vmatpush1.msra.mxu0 0.0
    %2418 = vmatprep.subr.mxu0 0.0
    %2419 = vmatpush1.msra.mxu0 0.0
    %2420 = vmatprep.subr.mxu0 0.0
    %2421 = vmatpush1.msra.mxu0 0.0
    %2422 = vmatprep.subr.mxu0 0.0
    %2423 = vmatpush1.msra.mxu0 0.0
    %2424 = vmatprep.subr.mxu0 0.0
    %2425 = vmatpush1.msra.mxu0 0.0
    %2426 = vmatprep.subr.mxu0 0.0
    %2427 = vmatpush1.msra.mxu0 0.0
    %2428 = vmatprep.subr.mxu0 0.0
    %2429 = vmatpush1.msra.mxu0 0.0
    %2430 = vmatprep.subr.mxu0 0.0
    %2431 = vmatpush1.msra.mxu0 0.0
    %2432 = vmatprep.subr.mxu0 0.0
    %2433 = vmatpush1.msra.mxu0 0.0
    %2434 = vmatprep.subr.mxu0 0.0
    %2435 = vmatpush1.msra.mxu0 0.0
    %2436 = vmatprep.subr.mxu0 0.0
    %2437 = vmatpush1.msra.mxu0 0.0
    %2438 = vmatprep.subr.mxu0 0.0
    %2439 = vmatpush1.msra.mxu0 0.0
    %2440 = vmatprep.subr.mxu0 0.0
    %2441 = vmatpush1.msra.mxu0 0.0
    %2442 = vmatprep.subr.mxu0 0.0
    %2443 = vmatpush1.msra.mxu0 0.0
    %2444 = vmatprep.subr.mxu0 0.0
    %2445 = vmatpush1.msra.mxu0 0.0
    %2446 = vmatprep.subr.mxu0 0.0
    %2447 = vmatpush1.msra.mxu0 0.0
    %2448 = vmatprep.subr.mxu0 0.0
    %2449 = vmatpush1.msra.mxu0 0.0
    %2450 = vmatprep.subr.mxu0 0.0
    %2451 = vmatpush1.msra.mxu0 0.0
    %2452 = vmatprep.subr.mxu0 0.0
    %2453 = vmatpush1.msra.mxu0 0.0
    %2454 = vmatprep.subr.mxu0 0.0
    %2455 = vmatpush1.msra.mxu0 0.0
    %2456 = vmatprep.subr.mxu0 0.0
    %2457 = vmatpush1.msra.mxu0 0.0
    %2458 = vmatprep.subr.mxu0 0.0
    %2459 = vmatpush1.msra.mxu0 0.0
    %2460 = vmatprep.subr.mxu0 0.0
    %2461 = vmatpush1.msra.mxu0 0.0
    %2462 = vmatprep.subr.mxu0 0.0
    %2463 = vmatpush1.msra.mxu0 0.0
    %2464 = vmatprep.subr.mxu0 0.0
    %2465 = vmatpush1.msra.mxu0 0.0
    %2466 = vmatprep.subr.mxu0 0.0
    %2467 = vmatpush1.msra.mxu0 0.0
    %2468 = vmatprep.mubr.f32.mxu0 0.0
    %2469 = vmatmul.mubr.f32.gmra.mrb[0].mxu0 %v2402
    %v2470 = vpop.f32.mrb[0].mxu0
    %v2471 = vadd.f32 %v2400, %v2470
    %v2472 = vpop.f32.mrb[0].mxu0
    %2473 = vdwg.mxu0
    %vm2474 = vcmask 17408
    %2475 = vst.msk [vmem:[#allocation5] sm:$0x3] %vm2474, %v2471
    %v2476 = vrot.slane %v2203, 4
    %2477 = vrot.lane.b32.xlu0 %v2476, 120
    %v2478 = vpop.permute.xlu0 %2477
    %vm2480 = vcmask 1043456
    %v2481 = vsel %vm2480, %v2086, %v2478
    %2482 = vst.msk [vmem:[#allocation6] sm:$0xff] %vm2087, %v2481
    // Predicated region
    $region18: #{self_attentive_gpt2_forward.1} parent=1 // pred_check
      _
    $region19: #{self_attentive_gpt2_forward.1} parent=1 // pred_check_branch
      %2484 = sbr.rel (0) target = $region21
    $region20: #{self_attentive_gpt2_forward.1} parent=1 // pred_region
      %s2486 = ssub.s32 32, 32
      %2487 = vsyncadd [#allocation4], %s2486
      %s2489 = sshll.u32 [#allocation5], 4
      %s2490 = int_to_ptr.vmem [resolvable:$true] %s2489
      %2492 = dma.vmem_to_hbm [thread:$0]  %s2490, 32, %s3, [#allocation4]
    $region21: #{self_attentive_gpt2_forward.1} parent=1 // pred_fallthru
      _
    // Predicated region
    $region22: #{self_attentive_gpt2_forward.1} parent=1 // pred_check
      _
    $region23: #{self_attentive_gpt2_forward.1} parent=1 // pred_check_branch
      %2494 = sbr.rel (0) target = $region25
    $region24: #{self_attentive_gpt2_forward.1} parent=1 // pred_region
      %s2496 = ssub.s32 128, 128
      %2497 = vsyncadd [#allocation7], %s2496
      %s2499 = sshll.u32 [#allocation6], 4
      %s2500 = int_to_ptr.vmem [resolvable:$true] %s2499
      %2502 = dma.vmem_to_hbm [thread:$0]  %s2500, 128, %s4, [#allocation7]
    $region25: #{self_attentive_gpt2_forward.1} parent=1 // pred_fallthru
      _
    // Predicated region
    $region26: #{self_attentive_gpt2_forward.1} parent=1 // pred_check
      _
    $region27: #{self_attentive_gpt2_forward.1} parent=1 // pred_check_branch
      %2504 = sbr.rel (0) target = $region29
    $region28: #{self_attentive_gpt2_forward.1} parent=1 // pred_region
      %2505 = dma.done [#allocation4], 32
    $region29: #{self_attentive_gpt2_forward.1} parent=1 // pred_fallthru
      _
    // Predicated region
    $region30: #{self_attentive_gpt2_forward.1} parent=1 // pred_check
      _
    $region31: #{self_attentive_gpt2_forward.1} parent=1 // pred_check_branch
      %2507 = sbr.rel (0) target = $region33
    $region32: #{self_attentive_gpt2_forward.1} parent=1 // pred_region
      %2508 = dma.done [#allocation7], 128
    $region33: #{self_attentive_gpt2_forward.1} parent=1 // pred_fallthru
      _
    %2509 = vsyncpa [#allocation3], 1
    %2510 = vsyncpa [#allocation4], 1
    %2511 = vsyncpa [#allocation7], 1

</llo_original>
